<compile_context>
chip_gen: v5e
topology: v5e:2x2
jax: 0.10.0
libtpu: 0.0.40
codegen_flags: <defaults>
</compile_context>

<pallas_src>
import functools
import math

import jax
import jax.numpy as jnp
from jax.experimental import pallas as pl
from jax.experimental.pallas import tpu as pltpu

_SQRT_2_OVER_PI = 0.7978845608028654


# ----------------------------------------------------------------------------
# Device-aware budgets / tile helpers
# ----------------------------------------------------------------------------
def _device_kind():
    try:
        return jax.devices()[0].device_kind.lower()
    except Exception:
        return ""


def _vmem_limit_bytes():
    kind = _device_kind()
    if "v7" in kind:
        return 48 * 1024 * 1024          # v7x: 64 MiB physical per TC
    if any(t in kind for t in ("v4", "v5", "v6")):
        return 96 * 1024 * 1024          # 128 MiB physical
    return 64 * 1024 * 1024


def _matmul_caps():
    if "v7" in _device_kind():
        return 256, 256, 512
    return 512, 512, 1024


def _attn_tile_cap(E, itemsize, vmem_limit):
    """E-aware tile cap so double-buffered q/k/v/out blocks + f32 acc fit VMEM."""
    row_bytes = E * (4 * itemsize + 4)   # q(2 bufs) + out(2 bufs) + f32 acc
    col_bytes = E * 4 * itemsize         # k(2 bufs) + v(2 bufs)
    cap = (vmem_limit // 2) // max(row_bytes + col_bytes, 1)
    cap = (cap // 128) * 128
    return int(max(128, min(512, cap)))


def _pick_tile(dim, cap, unit):
    """Largest tile <= cap that is a multiple of `unit` and divides `dim`
    (falling back to the full dim, which is always a legal block extent)."""
    # TODO(synk): no padding/masking path for awkward shapes; falls back to the
    # full dimension which may over-allocate VMEM for very large non-divisible dims.
    if dim <= cap:
        return dim
    t = (cap // unit) * unit
    while t >= unit:
        if dim % t == 0:
            return t
        t -= unit
    return dim


def _gelu_tanh(x):
    return 0.5 * x * (1.0 + jnp.tanh(_SQRT_2_OVER_PI * (x + 0.044715 * x * x * x)))


# ----------------------------------------------------------------------------
# Kernel 1: tiled matmul  y = act( [LN(x)] @ W + b ) [+ residual]
#   - optional fused LayerNorm on the input row block (applied once per row tile)
#   - bf16 MXU feed, f32 accumulation, fused bias / GELU / residual epilogue
# ----------------------------------------------------------------------------
def _matmul_kernel(*refs, activation, has_residual, has_ln, eps):
    idx = 0
    x_ref = refs[idx]; idx += 1
    if has_ln:
        g_ref = refs[idx]; bln_ref = refs[idx + 1]; idx += 2
    w_ref = refs[idx]; b_ref = refs[idx + 1]; idx += 2
    r_ref = None
    if has_residual:
        r_ref = refs[idx]; idx += 1
    o_ref = refs[idx]; idx += 1
    acc_ref = refs[idx]; idx += 1
    nx_ref = refs[idx] if has_ln else None

    k = pl.program_id(2)

    @pl.when(k == 0)
    def _init():
        acc_ref[...] = jnp.zeros(acc_ref.shape, acc_ref.dtype)

    if has_ln:
        # LN over the full row (x block spans the whole contraction dim K == E).
        @pl.when(k == 0)
        def _ln():
            xv = x_ref[...].astype(jnp.float32)
            mu = jnp.mean(xv, axis=-1, keepdims=True)
            xc = xv - mu
            var = jnp.mean(xc * xc, axis=-1, keepdims=True)
            y = xc * jax.lax.rsqrt(var + eps)
            y = y * g_ref[...].astype(jnp.float32) + bln_ref[...].astype(jnp.float32)
            nx_ref[...] = y.astype(nx_ref.dtype)          # stored in MXU dtype (bf16)

        a = nx_ref[...]
    else:
        a = x_ref[...].astype(w_ref.dtype)                 # bf16 MXU feed

    acc_ref[...] += jnp.dot(a, w_ref[...], preferred_element_type=jnp.float32)

    @pl.when(k == pl.num_programs(2) - 1)
    def _finalize():
        r = acc_ref[...] + b_ref[...].astype(jnp.float32)
        if activation == "gelu":
            r = _gelu_tanh(r)
        if r_ref is not None:
            r = r + r_ref[...].astype(jnp.float32)
        o_ref[...] = r.astype(o_ref.dtype)


def pallas_matmul(x, w, b, *, activation=None, residual=None, ln=None,
                  out_dtype=None, tm_cap=None, tn_cap=None, tk_cap=None):
    N, K = x.shape
    K2, M = w.shape
    assert K == K2
    cm, cn, ck = _matmul_caps()
    tm_cap = tm_cap or cm
    tn_cap = tn_cap or cn
    tk_cap = tk_cap or ck
    if out_dtype is None:
        out_dtype = residual.dtype if residual is not None else x.dtype

    unit_m = 16 if x.dtype == jnp.bfloat16 else 8
    tm = _pick_tile(N, tm_cap, unit_m)
    tn = _pick_tile(M, tn_cap, 128)
    # LN needs the full row; keep a single k step (K == E is modest for LN'd layers).
    tk = K if ln is not None else _pick_tile(K, tk_cap, 128)

    # Megacore (v7x): expose >= 2 parallel output blocks when cheaply possible.
    if (N // tm) * (M // tn) < 2 and tm % (2 * unit_m) == 0 and N % (tm // 2) == 0:
        tm //= 2

    in_specs = [pl.BlockSpec((tm, K) if ln is not None else (tm, tk),
                             (lambda i, j, k: (i, 0)) if ln is not None
                             else (lambda i, j, k: (i, k)))]
    args = [x]
    if ln is not None:
        gamma, beta, _ = ln
        in_specs += [pl.BlockSpec((1, K), lambda i, j, k: (0, 0)),
                     pl.BlockSpec((1, K), lambda i, j, k: (0, 0))]
        args += [gamma.reshape(1, K), beta.reshape(1, K)]
    in_specs += [pl.BlockSpec((tk, tn), lambda i, j, k: (k, j)),
                 pl.BlockSpec((1, tn), lambda i, j, k: (0, j))]
    args += [w, b.reshape(1, M)]
    if residual is not None:
        # NOTE: residual block stays resident across the (short) k loop; accounted
        # for in the VMEM budget.
        in_specs.append(pl.BlockSpec((tm, tn), lambda i, j, k: (i, j)))
        args.append(residual)

    scratch_shapes = [pltpu.VMEM((tm, tn), jnp.float32)]
    if ln is not None:
        scratch_shapes.append(pltpu.VMEM((tm, K), w.dtype))

    kernel = functools.partial(
        _matmul_kernel, activation=activation, has_residual=residual is not None,
        has_ln=ln is not None, eps=(ln[2] if ln is not None else 1e-5))

    return pl.pallas_call(
        kernel,
        out_shape=jax.ShapeDtypeStruct((N, M), out_dtype),
        grid_spec=pltpu.PrefetchScalarGridSpec(
            num_scalar_prefetch=0,
            grid=(N // tm, M // tn, K // tk),
            in_specs=in_specs,
            out_specs=pl.BlockSpec((tm, tn), lambda i, j, k: (i, j)),
            scratch_shapes=scratch_shapes,
        ),
        compiler_params=pltpu.CompilerParams(
            dimension_semantics=("parallel", "parallel", "arbitrary"),
            vmem_limit_bytes=_vmem_limit_bytes()),
    )(*args)


# ----------------------------------------------------------------------------
# Kernel 2: blockwise online-softmax multi-head attention
#   q/k/v are column-blocks of the fused QKV activation (bf16); the 1/sqrt(D)
#   scale is already folded into the QKV projection. The accumulator is a
#   contiguous (tq, E) f32 scratch updated full-width once per kv step, and the
#   finalize does a single lane-dense store of the (tq, E) output block.
# ----------------------------------------------------------------------------
def _flash_attn_kernel(q_ref, k_ref, v_ref, o_ref, m_ref, l_ref, acc_ref,
                       *, num_heads, head_dim, mxu_dtype):
    ki = pl.program_id(2)

    @pl.when(ki == 0)
    def _init():
        m_ref[...] = jnp.full(m_ref.shape, -jnp.inf, m_ref.dtype)
        l_ref[...] = jnp.zeros(l_ref.shape, l_ref.dtype)
        acc_ref[...] = jnp.zeros(acc_ref.shape, acc_ref.dtype)

    q = q_ref[0].astype(mxu_dtype)   # (tq, E), bf16 MXU feed, scale pre-folded
    k = k_ref[0].astype(mxu_dtype)   # (tk, E)
    v = v_ref[0].astype(mxu_dtype)   # (tk, E)
    tq = q.shape[0]

    pv_parts = []
    alpha_parts = []
    for h in range(num_heads):
        sl = slice(h * head_dim, (h + 1) * head_dim)
        q_h, k_h, v_h = q[:, sl], k[:, sl], v[:, sl]

        # q_h @ k_h^T as a contraction over the shared D axis (no materialized k.T).
        s = jax.lax.dot_general(q_h, k_h, (((1,), (1,)), ((), ())),
                                preferred_element_type=jnp.float32)   # (tq, tk)

        m_prev = m_ref[:, h:h + 1]                                    # (tq, 1)
        m_new = jnp.maximum(m_prev, jnp.max(s, axis=-1, keepdims=True))
        alpha = jnp.exp(m_prev - m_new)
        p = jnp.exp(s - m_new)                                        # (tq, tk) f32
        l_ref[:, h:h + 1] = alpha * l_ref[:, h:h + 1] + jnp.sum(p, -1, keepdims=True)
        m_ref[:, h:h + 1] = m_new

        pv_parts.append(jnp.dot(p.astype(mxu_dtype), v_h,
                                preferred_element_type=jnp.float32))  # (tq, D)
        alpha_parts.append(jnp.broadcast_to(alpha, (tq, head_dim)))

    # One full-width (lane-dense) accumulator read-modify-write per kv step.
    pv = jnp.concatenate(pv_parts, axis=-1)                           # (tq, E)
    alpha_full = jnp.concatenate(alpha_parts, axis=-1)                # (tq, E)
    acc_ref[...] = alpha_full * acc_ref[...] + pv

    @pl.when(ki == pl.num_programs(2) - 1)
    def _finalize():
        inv = 1.0 / l_ref[...]                                        # exact divide
        inv_full = jnp.concatenate(
            [jnp.broadcast_to(inv[:, h:h + 1], (inv.shape[0], head_dim))
             for h in range(num_heads)], axis=-1)                     # (tq, E)
        # Single full-width store of the output block.
        o_ref[0] = (acc_ref[...] * inv_full).astype(o_ref.dtype)


def pallas_attention(qkv, num_heads, *, out_dtype=None, tq_cap=None, tk_cap=None,
                     mxu_dtype=jnp.bfloat16):
    B, S, E3 = qkv.shape
    E = E3 // 3
    D = E // num_heads
    out_dtype = out_dtype or qkv.dtype

    vmem = _vmem_limit_bytes()
    cap = _attn_tile_cap(E, jnp.dtype(qkv.dtype).itemsize, vmem)
    tq = _pick_tile(S, tq_cap or cap, 128)
    tk = _pick_tile(S, tk_cap or cap, 128)
    # Megacore (v7x): expose >= 2 parallel (b, q-tile) blocks when cheaply possible.
    if B * (S // tq) < 2 and tq % 16 == 0 and S % (tq // 2) == 0:
        tq //= 2

    if E % 128 == 0:
        # Zero-copy: q/k/v are column-blocks 0/1/2 of the fused QKV activation.
        inputs = (qkv, qkv, qkv)
        cols = (0, 1, 2)
    else:
        q, k, v = jnp.split(qkv, 3, axis=-1)
        inputs = (q, k, v)
        cols = (0, 0, 0)

    def q_spec(c):
        return pl.BlockSpec((1, tq, E), lambda b, qi, ki: (b, qi, c))

    def kv_spec(c):
        return pl.BlockSpec((1, tk, E), lambda b, qi, ki: (b, ki, c))

    kernel = functools.partial(_flash_attn_kernel, num_heads=num_heads,
                               head_dim=D, mxu_dtype=mxu_dtype)
    return pl.pallas_call(
        kernel,
        out_shape=jax.ShapeDtypeStruct((B, S, E), out_dtype),
        grid_spec=pltpu.PrefetchScalarGridSpec(
            num_scalar_prefetch=0,
            grid=(B, S // tq, S // tk),
            in_specs=[q_spec(cols[0]), kv_spec(cols[1]), kv_spec(cols[2])],
            out_specs=pl.BlockSpec((1, tq, E), lambda b, qi, ki: (b, qi, 0)),
            scratch_shapes=[
                pltpu.VMEM((tq, num_heads), jnp.float32),   # running max m
                pltpu.VMEM((tq, num_heads), jnp.float32),   # running sum l
                pltpu.VMEM((tq, E), jnp.float32),           # contiguous output acc
            ],
        ),
        compiler_params=pltpu.CompilerParams(
            dimension_semantics=("parallel", "parallel", "arbitrary"),
            vmem_limit_bytes=vmem),
    )(*inputs)


# ----------------------------------------------------------------------------
# Parameter prep: fold attention scale into Q weights, cast weights to bf16
# ----------------------------------------------------------------------------
def prepare_params(p, num_heads, mxu_dtype=jnp.bfloat16):
    E = p["w_qkv"].shape[0]
    D = E // num_heads
    scale = 1.0 / math.sqrt(D)
    col_scale = jnp.concatenate([jnp.full((E,), scale, jnp.float32),
                                 jnp.ones((2 * E,), jnp.float32)])
    w_qkv = p["w_qkv"].astype(jnp.float32) * col_scale[None, :]
    b_qkv = p["b_qkv"].astype(jnp.float32) * col_scale
    q = dict(p)
    q["w_qkv"] = w_qkv.astype(mxu_dtype)
    q["b_qkv"] = b_qkv
    q["w_out"] = p["w_out"].astype(mxu_dtype)
    q["w_ffn1"] = p["w_ffn1"].astype(mxu_dtype)
    q["w_ffn2"] = p["w_ffn2"].astype(mxu_dtype)
    return q


# ----------------------------------------------------------------------------
# Full transformer block forward (all heavy ops in Pallas)
# ----------------------------------------------------------------------------
def transformer_forward(x, p, num_heads, eps=1e-5):
    B, S, E = x.shape
    x2 = x.reshape(B * S, E)
    compute_dtype = jnp.bfloat16 if p["w_qkv"].dtype == jnp.bfloat16 else x.dtype

    # --- attention sub-layer: LN1 fused into the fused QKV projection ---
    qkv = pallas_matmul(x2, p["w_qkv"], p["b_qkv"],
                        ln=(p["ln1_g"], p["ln1_b"], eps), out_dtype=compute_dtype)
    attn = pallas_attention(qkv.reshape(B, S, 3 * E), num_heads,
                            out_dtype=compute_dtype)                  # (B, S, E)
    x2 = pallas_matmul(attn.reshape(B * S, E), p["w_out"], p["b_out"],
                       residual=x2)                                   # x + attn (f32)

    # --- FFN sub-layer: LN2 fused into FFN1, GELU fused, bf16 intermediate ---
    h = pallas_matmul(x2, p["w_ffn1"], p["b_ffn1"], activation="gelu",
                      ln=(p["ln2_g"], p["ln2_b"], eps), out_dtype=compute_dtype)
    x2 = pallas_matmul(h, p["w_ffn2"], p["b_ffn2"], residual=x2)      # x + ffn (f32)

    return x2.reshape(B, S, E)


# ----------------------------------------------------------------------------
# Pure-JAX f32 reference (mirrors the PyTorch forward, eval mode, mask=None)
# ----------------------------------------------------------------------------
def reference_forward(x, p, num_heads):
    B, S, E = x.shape
    D = E // num_heads

    def ln(t, g, b, eps=1e-5):
        mu = jnp.mean(t, -1, keepdims=True)
        var = jnp.mean((t - mu) ** 2, -1, keepdims=True)
        return (t - mu) * jax.lax.rsqrt(var + eps) * g + b

    nx = ln(x, p["ln1_g"], p["ln1_b"])
    qkv = nx @ p["w_qkv"] + p["b_qkv"]
    q, k, v = jnp.split(qkv, 3, axis=-1)

    def heads(t):
        return t.reshape(B, S, num_heads, D).transpose(0, 2, 1, 3)

    q, k, v = heads(q), heads(k), heads(v)
    scores = jnp.einsum("bhqd,bhkd->bhqk", q, k) / math.sqrt(D)
    pw = jax.nn.softmax(scores, axis=-1)
    o = jnp.einsum("bhqk,bhkd->bhqd", pw, v)
    o = o.transpose(0, 2, 1, 3).reshape(B, S, E)
    x = x + (o @ p["w_out"] + p["b_out"])

    nx2 = ln(x, p["ln2_g"], p["ln2_b"])
    h = _gelu_tanh(nx2 @ p["w_ffn1"] + p["b_ffn1"])
    return x + (h @ p["w_ffn2"] + p["b_ffn2"])


def init_params(key, embedding_dim):
    E = embedding_dim
    ks = jax.random.split(key, 8)

    def lin(kw, kb, fan_in, fan_out):
        bound = 1.0 / math.sqrt(fan_in)
        w = jax.random.uniform(kw, (fan_in, fan_out), jnp.float32, -bound, bound)
        b = jax.random.uniform(kb, (fan_out,), jnp.float32, -bound, bound)
        return w, b

    w_qkv, b_qkv = lin(ks[0], ks[1], E, 3 * E)
    w_out, b_out = lin(ks[2], ks[3], E, E)
    w_f1, b_f1 = lin(ks[4], ks[5], E, 4 * E)
    w_f2, b_f2 = lin(ks[6], ks[7], 4 * E, E)
    ones, zeros = jnp.ones((E,), jnp.float32), jnp.zeros((E,), jnp.float32)
    return {
        "ln1_g": ones, "ln1_b": zeros,
        "w_qkv": w_qkv, "b_qkv": b_qkv,
        "w_out": w_out, "b_out": b_out,
        "ln2_g": ones, "ln2_b": zeros,
        "w_ffn1": w_f1, "b_ffn1": b_f1,
        "w_ffn2": w_f2, "b_ffn2": b_f2,
    }


if __name__ == "__main__":
    # Small shapes consistent with the module: batch=2, seq=8, embed=128, heads=4
    B, S, E, H = 2, 8, 128, 4
    key = jax.random.PRNGKey(0)
    kx, kp = jax.random.split(key)
    x = jax.random.normal(kx, (B, S, E), jnp.float32)
    params = init_params(kp, E)
    prepped = prepare_params(params, H)           # scale-folded, bf16-cast weights

    fwd = jax.jit(transformer_forward, static_argnums=(2,))
    out = jax.block_until_ready(fwd(x, prepped, H))

    ref = reference_forward(x, params, H)
    assert out.shape == (B, S, E)
    # Tolerance covers the bf16 MXU feed (intentional, per perf review) + tanh GELU.
    err = float(jnp.max(jnp.abs(out - ref)))
    assert jnp.allclose(out, ref, atol=3e-2, rtol=3e-2), f"mismatch vs reference (max abs err {err})"

    print("KERNEL_OK")
</pallas_src>

<mosaic_0001>
module attributes {stable_mosaic.version = 11 : i64} {
  func.func @_flash_attn_kernel(%arg0: i32, %arg1: i32, %arg2: i32, %arg3: memref<1x8x128xbf16, #tpu.memory_space<vmem>>, %arg4: memref<1x8x128xbf16, #tpu.memory_space<vmem>>, %arg5: memref<1x8x128xbf16, #tpu.memory_space<vmem>>, %arg6: memref<1x8x128xbf16, #tpu.memory_space<vmem>>, %arg7: memref<8x4xf32, #tpu.memory_space<vmem>>, %arg8: memref<8x4xf32, #tpu.memory_space<vmem>>, %arg9: memref<8x128xf32, #tpu.memory_space<vmem>>) attributes {dimension_semantics = [#tpu.dimension_semantics<parallel>, #tpu.dimension_semantics<parallel>, #tpu.dimension_semantics<arbitrary>], iteration_bounds = array<i64: 2, 1, 1>, scalar_prefetch = 0 : i64, scratch_operands = 3 : i64, tpu.core_type = #tpu.core_type<tc>, window_params = [{transform_indices = @transform_0, window_bounds = array<i64: 1, 8, 128>}, {transform_indices = @transform_1, window_bounds = array<i64: 1, 8, 128>}, {transform_indices = @transform_2, window_bounds = array<i64: 1, 8, 128>}, {transform_indices = @transform_3, window_bounds = array<i64: 1, 8, 128>}]} {
    %c0_i32 = arith.constant 0 : i32
    %0 = arith.cmpi eq, %arg2, %c0_i32 : i32
    %1 = arith.extui %0 : i1 to i32
    %c0_i32_0 = arith.constant 0 : i32
    %2 = arith.cmpi ne, %1, %c0_i32_0 : i32
    scf.if %2 {
      %cst_59 = arith.constant 0xFF800000 : f32
      %114 = vector.broadcast %cst_59 : f32 to vector<8x4xf32>
      %c0_60 = arith.constant 0 : index
      %c0_61 = arith.constant 0 : index
      %115 = vector.load %arg7[%c0_60, %c0_61] : memref<8x4xf32, #tpu.memory_space<vmem>>, vector<8x4xf32>
      tpu.vector_store %arg7[%c0_60, %c0_61], %114 {strides = array<i32>} : memref<8x4xf32, #tpu.memory_space<vmem>>, vector<8x4xf32>,
      %cst_62 = arith.constant 0.000000e+00 : f32
      %116 = vector.broadcast %cst_62 : f32 to vector<8x4xf32>
      %c0_63 = arith.constant 0 : index
      %c0_64 = arith.constant 0 : index
      %117 = vector.load %arg8[%c0_63, %c0_64] : memref<8x4xf32, #tpu.memory_space<vmem>>, vector<8x4xf32>
      tpu.vector_store %arg8[%c0_63, %c0_64], %116 {strides = array<i32>} : memref<8x4xf32, #tpu.memory_space<vmem>>, vector<8x4xf32>,
      %cst_65 = arith.constant 0.000000e+00 : f32
      %118 = vector.broadcast %cst_65 : f32 to vector<8x128xf32>
      %c0_66 = arith.constant 0 : index
      %c0_67 = arith.constant 0 : index
      %119 = vector.load %arg9[%c0_66, %c0_67] : memref<8x128xf32, #tpu.memory_space<vmem>>, vector<8x128xf32>
      tpu.vector_store %arg9[%c0_66, %c0_67], %118 {strides = array<i32>} : memref<8x128xf32, #tpu.memory_space<vmem>>, vector<8x128xf32>,
    } else {
    }
    %c0 = arith.constant 0 : index
    %c0_1 = arith.constant 0 : index
    %c0_2 = arith.constant 0 : index
    %3 = vector.load %arg3[%c0, %c0_1, %c0_2] : memref<1x8x128xbf16, #tpu.memory_space<vmem>>, vector<1x8x128xbf16>
    %4 = vector.shape_cast %3 : vector<1x8x128xbf16> to vector<8x128xbf16>
    %c0_3 = arith.constant 0 : index
    %c0_4 = arith.constant 0 : index
    %c0_5 = arith.constant 0 : index
    %5 = vector.load %arg4[%c0_3, %c0_4, %c0_5] : memref<1x8x128xbf16, #tpu.memory_space<vmem>>, vector<1x8x128xbf16>
    %6 = vector.shape_cast %5 : vector<1x8x128xbf16> to vector<8x128xbf16>
    %c0_6 = arith.constant 0 : index
    %c0_7 = arith.constant 0 : index
    %c0_8 = arith.constant 0 : index
    %7 = vector.load %arg5[%c0_6, %c0_7, %c0_8] : memref<1x8x128xbf16, #tpu.memory_space<vmem>>, vector<1x8x128xbf16>
    %8 = vector.shape_cast %7 : vector<1x8x128xbf16> to vector<8x128xbf16>
    %9 = vector.extract_strided_slice %4 {offsets = [0, 0], sizes = [8, 32], strides = [1, 1]} : vector<8x128xbf16> to vector<8x32xbf16>
    %10 = vector.extract_strided_slice %6 {offsets = [0, 0], sizes = [8, 32], strides = [1, 1]} : vector<8x128xbf16> to vector<8x32xbf16>
    %11 = vector.extract_strided_slice %8 {offsets = [0, 0], sizes = [8, 32], strides = [1, 1]} : vector<8x128xbf16> to vector<8x32xbf16>
    %cst = arith.constant dense<0.000000e+00> : vector<8x8xf32>
    %12 = tpu.matmul %9, %10, %cst {dimension_numbers = #tpu.dot_dimension_numbers<[1], [1], [0], [0], [0, 0, 1, 0], [], []>} : vector<8x32xbf16>, vector<8x32xbf16>, vector<8x8xf32> -> vector<8x8xf32>
    %c0_9 = arith.constant 0 : index
    %c0_10 = arith.constant 0 : index
    %13 = vector.load %arg7[%c0_9, %c0_10] : memref<8x4xf32, #tpu.memory_space<vmem>>, vector<8x1xf32>
    %cst_11 = arith.constant dense<0xFF800000> : vector<8xf32>
    %14 = vector.multi_reduction <maximumf>, %12, %cst_11 [1] : vector<8x8xf32> to vector<8xf32>
    %15 = vector.shape_cast %14 : vector<8xf32> to vector<8x1xf32>
    %16 = arith.maximumf %13, %15 : vector<8x1xf32>
    %17 = arith.subf %13, %16 : vector<8x1xf32>
    %18 = math.exp %17 : vector<8x1xf32>
    %19 = vector.broadcast %16 : vector<8x1xf32> to vector<8x8xf32>
    %20 = arith.subf %12, %19 : vector<8x8xf32>
    %21 = math.exp %20 : vector<8x8xf32>
    %c0_12 = arith.constant 0 : index
    %c0_13 = arith.constant 0 : index
    %22 = vector.load %arg8[%c0_12, %c0_13] : memref<8x4xf32, #tpu.memory_space<vmem>>, vector<8x1xf32>
    %23 = arith.mulf %18, %22 : vector<8x1xf32>
    %cst_14 = arith.constant dense<0.000000e+00> : vector<8xf32>
    %24 = vector.multi_reduction <add>, %21, %cst_14 [1] : vector<8x8xf32> to vector<8xf32>
    %25 = vector.shape_cast %24 : vector<8xf32> to vector<8x1xf32>
    %26 = arith.addf %23, %25 : vector<8x1xf32>
    %c0_15 = arith.constant 0 : index
    %c0_16 = arith.constant 0 : index
    %27 = vector.load %arg8[%c0_15, %c0_16] : memref<8x4xf32, #tpu.memory_space<vmem>>, vector<8x1xf32>
    tpu.vector_store %arg8[%c0_15, %c0_16], %26 {strides = array<i32>} : memref<8x4xf32, #tpu.memory_space<vmem>>, vector<8x1xf32>,
    %c0_17 = arith.constant 0 : index
    %c0_18 = arith.constant 0 : index
    %28 = vector.load %arg7[%c0_17, %c0_18] : memref<8x4xf32, #tpu.memory_space<vmem>>, vector<8x1xf32>
    tpu.vector_store %arg7[%c0_17, %c0_18], %16 {strides = array<i32>} : memref<8x4xf32, #tpu.memory_space<vmem>>, vector<8x1xf32>,
    %29 = arith.truncf %21 : vector<8x8xf32> to vector<8x8xbf16>
    %cst_19 = arith.constant dense<0.000000e+00> : vector<8x32xf32>
    %30 = tpu.matmul %29, %11, %cst_19 {dimension_numbers = #tpu.dot_dimension_numbers<[1], [0], [0], [1], [0, 0, 1, 1], [], []>} : vector<8x8xbf16>, vector<8x32xbf16>, vector<8x32xf32> -> vector<8x32xf32>
    %31 = vector.shape_cast %18 : vector<8x1xf32> to vector<8x1xf32>
    %32 = vector.broadcast %31 : vector<8x1xf32> to vector<8x32xf32>
    %33 = vector.extract_strided_slice %4 {offsets = [0, 32], sizes = [8, 32], strides = [1, 1]} : vector<8x128xbf16> to vector<8x32xbf16>
    %34 = vector.extract_strided_slice %6 {offsets = [0, 32], sizes = [8, 32], strides = [1, 1]} : vector<8x128xbf16> to vector<8x32xbf16>
    %35 = vector.extract_strided_slice %8 {offsets = [0, 32], sizes = [8, 32], strides = [1, 1]} : vector<8x128xbf16> to vector<8x32xbf16>
    %cst_20 = arith.constant dense<0.000000e+00> : vector<8x8xf32>
    %36 = tpu.matmul %33, %34, %cst_20 {dimension_numbers = #tpu.dot_dimension_numbers<[1], [1], [0], [0], [0, 0, 1, 0], [], []>} : vector<8x32xbf16>, vector<8x32xbf16>, vector<8x8xf32> -> vector<8x8xf32>
    %c0_21 = arith.constant 0 : index
    %c1 = arith.constant 1 : index
    %37 = vector.load %arg7[%c0_21, %c1] : memref<8x4xf32, #tpu.memory_space<vmem>>, vector<8x1xf32>
    %cst_22 = arith.constant dense<0xFF800000> : vector<8xf32>
    %38 = vector.multi_reduction <maximumf>, %36, %cst_22 [1] : vector<8x8xf32> to vector<8xf32>
    %39 = vector.shape_cast %38 : vector<8xf32> to vector<8x1xf32>
    %40 = arith.maximumf %37, %39 : vector<8x1xf32>
    %41 = arith.subf %37, %40 : vector<8x1xf32>
    %42 = math.exp %41 : vector<8x1xf32>
    %43 = vector.broadcast %40 : vector<8x1xf32> to vector<8x8xf32>
    %44 = arith.subf %36, %43 : vector<8x8xf32>
    %45 = math.exp %44 : vector<8x8xf32>
    %c0_23 = arith.constant 0 : index
    %c1_24 = arith.constant 1 : index
    %46 = vector.load %arg8[%c0_23, %c1_24] : memref<8x4xf32, #tpu.memory_space<vmem>>, vector<8x1xf32>
    %47 = arith.mulf %42, %46 : vector<8x1xf32>
    %cst_25 = arith.constant dense<0.000000e+00> : vector<8xf32>
    %48 = vector.multi_reduction <add>, %45, %cst_25 [1] : vector<8x8xf32> to vector<8xf32>
    %49 = vector.shape_cast %48 : vector<8xf32> to vector<8x1xf32>
    %50 = arith.addf %47, %49 : vector<8x1xf32>
    %c0_26 = arith.constant 0 : index
    %c1_27 = arith.constant 1 : index
    %51 = vector.load %arg8[%c0_26, %c1_27] : memref<8x4xf32, #tpu.memory_space<vmem>>, vector<8x1xf32>
    tpu.vector_store %arg8[%c0_26, %c1_27], %50 {strides = array<i32>} : memref<8x4xf32, #tpu.memory_space<vmem>>, vector<8x1xf32>,
    %c0_28 = arith.constant 0 : index
    %c1_29 = arith.constant 1 : index
    %52 = vector.load %arg7[%c0_28, %c1_29] : memref<8x4xf32, #tpu.memory_space<vmem>>, vector<8x1xf32>
    tpu.vector_store %arg7[%c0_28, %c1_29], %40 {strides = array<i32>} : memref<8x4xf32, #tpu.memory_space<vmem>>, vector<8x1xf32>,
    %53 = arith.truncf %45 : vector<8x8xf32> to vector<8x8xbf16>
    %cst_30 = arith.constant dense<0.000000e+00> : vector<8x32xf32>
    %54 = tpu.matmul %53, %35, %cst_30 {dimension_numbers = #tpu.dot_dimension_numbers<[1], [0], [0], [1], [0, 0, 1, 1], [], []>} : vector<8x8xbf16>, vector<8x32xbf16>, vector<8x32xf32> -> vector<8x32xf32>
    %55 = vector.shape_cast %42 : vector<8x1xf32> to vector<8x1xf32>
    %56 = vector.broadcast %55 : vector<8x1xf32> to vector<8x32xf32>
    %57 = vector.extract_strided_slice %4 {offsets = [0, 64], sizes = [8, 32], strides = [1, 1]} : vector<8x128xbf16> to vector<8x32xbf16>
    %58 = vector.extract_strided_slice %6 {offsets = [0, 64], sizes = [8, 32], strides = [1, 1]} : vector<8x128xbf16> to vector<8x32xbf16>
    %59 = vector.extract_strided_slice %8 {offsets = [0, 64], sizes = [8, 32], strides = [1, 1]} : vector<8x128xbf16> to vector<8x32xbf16>
    %cst_31 = arith.constant dense<0.000000e+00> : vector<8x8xf32>
    %60 = tpu.matmul %57, %58, %cst_31 {dimension_numbers = #tpu.dot_dimension_numbers<[1], [1], [0], [0], [0, 0, 1, 0], [], []>} : vector<8x32xbf16>, vector<8x32xbf16>, vector<8x8xf32> -> vector<8x8xf32>
    %c0_32 = arith.constant 0 : index
    %c2 = arith.constant 2 : index
    %61 = vector.load %arg7[%c0_32, %c2] : memref<8x4xf32, #tpu.memory_space<vmem>>, vector<8x1xf32>
    %cst_33 = arith.constant dense<0xFF800000> : vector<8xf32>
    %62 = vector.multi_reduction <maximumf>, %60, %cst_33 [1] : vector<8x8xf32> to vector<8xf32>
    %63 = vector.shape_cast %62 : vector<8xf32> to vector<8x1xf32>
    %64 = arith.maximumf %61, %63 : vector<8x1xf32>
    %65 = arith.subf %61, %64 : vector<8x1xf32>
    %66 = math.exp %65 : vector<8x1xf32>
    %67 = vector.broadcast %64 : vector<8x1xf32> to vector<8x8xf32>
    %68 = arith.subf %60, %67 : vector<8x8xf32>
    %69 = math.exp %68 : vector<8x8xf32>
    %c0_34 = arith.constant 0 : index
    %c2_35 = arith.constant 2 : index
    %70 = vector.load %arg8[%c0_34, %c2_35] : memref<8x4xf32, #tpu.memory_space<vmem>>, vector<8x1xf32>
    %71 = arith.mulf %66, %70 : vector<8x1xf32>
    %cst_36 = arith.constant dense<0.000000e+00> : vector<8xf32>
    %72 = vector.multi_reduction <add>, %69, %cst_36 [1] : vector<8x8xf32> to vector<8xf32>
    %73 = vector.shape_cast %72 : vector<8xf32> to vector<8x1xf32>
    %74 = arith.addf %71, %73 : vector<8x1xf32>
    %c0_37 = arith.constant 0 : index
    %c2_38 = arith.constant 2 : index
    %75 = vector.load %arg8[%c0_37, %c2_38] : memref<8x4xf32, #tpu.memory_space<vmem>>, vector<8x1xf32>
    tpu.vector_store %arg8[%c0_37, %c2_38], %74 {strides = array<i32>} : memref<8x4xf32, #tpu.memory_space<vmem>>, vector<8x1xf32>,
    %c0_39 = arith.constant 0 : index
    %c2_40 = arith.constant 2 : index
    %76 = vector.load %arg7[%c0_39, %c2_40] : memref<8x4xf32, #tpu.memory_space<vmem>>, vector<8x1xf32>
    tpu.vector_store %arg7[%c0_39, %c2_40], %64 {strides = array<i32>} : memref<8x4xf32, #tpu.memory_space<vmem>>, vector<8x1xf32>,
    %77 = arith.truncf %69 : vector<8x8xf32> to vector<8x8xbf16>
    %cst_41 = arith.constant dense<0.000000e+00> : vector<8x32xf32>
    %78 = tpu.matmul %77, %59, %cst_41 {dimension_numbers = #tpu.dot_dimension_numbers<[1], [0], [0], [1], [0, 0, 1, 1], [], []>} : vector<8x8xbf16>, vector<8x32xbf16>, vector<8x32xf32> -> vector<8x32xf32>
    %79 = vector.shape_cast %66 : vector<8x1xf32> to vector<8x1xf32>
    %80 = vector.broadcast %79 : vector<8x1xf32> to vector<8x32xf32>
    %81 = vector.extract_strided_slice %4 {offsets = [0, 96], sizes = [8, 32], strides = [1, 1]} : vector<8x128xbf16> to vector<8x32xbf16>
    %82 = vector.extract_strided_slice %6 {offsets = [0, 96], sizes = [8, 32], strides = [1, 1]} : vector<8x128xbf16> to vector<8x32xbf16>
    %83 = vector.extract_strided_slice %8 {offsets = [0, 96], sizes = [8, 32], strides = [1, 1]} : vector<8x128xbf16> to vector<8x32xbf16>
    %cst_42 = arith.constant dense<0.000000e+00> : vector<8x8xf32>
    %84 = tpu.matmul %81, %82, %cst_42 {dimension_numbers = #tpu.dot_dimension_numbers<[1], [1], [0], [0], [0, 0, 1, 0], [], []>} : vector<8x32xbf16>, vector<8x32xbf16>, vector<8x8xf32> -> vector<8x8xf32>
    %c0_43 = arith.constant 0 : index
    %c3 = arith.constant 3 : index
    %85 = vector.load %arg7[%c0_43, %c3] : memref<8x4xf32, #tpu.memory_space<vmem>>, vector<8x1xf32>
    %cst_44 = arith.constant dense<0xFF800000> : vector<8xf32>
    %86 = vector.multi_reduction <maximumf>, %84, %cst_44 [1] : vector<8x8xf32> to vector<8xf32>
    %87 = vector.shape_cast %86 : vector<8xf32> to vector<8x1xf32>
    %88 = arith.maximumf %85, %87 : vector<8x1xf32>
    %89 = arith.subf %85, %88 : vector<8x1xf32>
    %90 = math.exp %89 : vector<8x1xf32>
    %91 = vector.broadcast %88 : vector<8x1xf32> to vector<8x8xf32>
    %92 = arith.subf %84, %91 : vector<8x8xf32>
    %93 = math.exp %92 : vector<8x8xf32>
    %c0_45 = arith.constant 0 : index
    %c3_46 = arith.constant 3 : index
    %94 = vector.load %arg8[%c0_45, %c3_46] : memref<8x4xf32, #tpu.memory_space<vmem>>, vector<8x1xf32>
    %95 = arith.mulf %90, %94 : vector<8x1xf32>
    %cst_47 = arith.constant dense<0.000000e+00> : vector<8xf32>
    %96 = vector.multi_reduction <add>, %93, %cst_47 [1] : vector<8x8xf32> to vector<8xf32>
    %97 = vector.shape_cast %96 : vector<8xf32> to vector<8x1xf32>
    %98 = arith.addf %95, %97 : vector<8x1xf32>
    %c0_48 = arith.constant 0 : index
    %c3_49 = arith.constant 3 : index
    %99 = vector.load %arg8[%c0_48, %c3_49] : memref<8x4xf32, #tpu.memory_space<vmem>>, vector<8x1xf32>
    tpu.vector_store %arg8[%c0_48, %c3_49], %98 {strides = array<i32>} : memref<8x4xf32, #tpu.memory_space<vmem>>, vector<8x1xf32>,
    %c0_50 = arith.constant 0 : index
    %c3_51 = arith.constant 3 : index
    %100 = vector.load %arg7[%c0_50, %c3_51] : memref<8x4xf32, #tpu.memory_space<vmem>>, vector<8x1xf32>
    tpu.vector_store %arg7[%c0_50, %c3_51], %88 {strides = array<i32>} : memref<8x4xf32, #tpu.memory_space<vmem>>, vector<8x1xf32>,
    %101 = arith.truncf %93 : vector<8x8xf32> to vector<8x8xbf16>
    %cst_52 = arith.constant dense<0.000000e+00> : vector<8x32xf32>
    %102 = tpu.matmul %101, %83, %cst_52 {dimension_numbers = #tpu.dot_dimension_numbers<[1], [0], [0], [1], [0, 0, 1, 1], [], []>} : vector<8x8xbf16>, vector<8x32xbf16>, vector<8x32xf32> -> vector<8x32xf32>
    %103 = vector.shape_cast %90 : vector<8x1xf32> to vector<8x1xf32>
    %104 = vector.broadcast %103 : vector<8x1xf32> to vector<8x32xf32>
    %105 = tpu.concatenate %30, %54, %78, %102 in 1 : vector<8x32xf32>, vector<8x32xf32>, vector<8x32xf32>, vector<8x32xf32> -> vector<8x128xf32>
    %106 = tpu.concatenate %32, %56, %80, %104 in 1 : vector<8x32xf32>, vector<8x32xf32>, vector<8x32xf32>, vector<8x32xf32> -> vector<8x128xf32>
    %c0_53 = arith.constant 0 : index
    %c0_54 = arith.constant 0 : index
    %107 = vector.load %arg9[%c0_53, %c0_54] : memref<8x128xf32, #tpu.memory_space<vmem>>, vector<8x128xf32>
    %108 = arith.mulf %106, %107 : vector<8x128xf32>
    %109 = arith.addf %108, %105 : vector<8x128xf32>
    %c0_55 = arith.constant 0 : index
    %c0_56 = arith.constant 0 : index
    %110 = vector.load %arg9[%c0_55, %c0_56] : memref<8x128xf32, #tpu.memory_space<vmem>>, vector<8x128xf32>
    tpu.vector_store %arg9[%c0_55, %c0_56], %109 {strides = array<i32>} : memref<8x128xf32, #tpu.memory_space<vmem>>, vector<8x128xf32>,
    %c0_i32_57 = arith.constant 0 : i32
    %111 = arith.cmpi eq, %arg2, %c0_i32_57 : i32
    %112 = arith.extui %111 : i1 to i32
    %c0_i32_58 = arith.constant 0 : i32
    %113 = arith.cmpi ne, %112, %c0_i32_58 : i32
    scf.if %113 {
      %c0_59 = arith.constant 0 : index
      %c0_60 = arith.constant 0 : index
      %114 = vector.load %arg8[%c0_59, %c0_60] : memref<8x4xf32, #tpu.memory_space<vmem>>, vector<8x4xf32>
      %cst_61 = arith.constant 1.000000e+00 : f32
      %115 = vector.broadcast %cst_61 : f32 to vector<8x4xf32>
      %116 = arith.divf %115, %114 : vector<8x4xf32>
      %117 = vector.extract_strided_slice %116 {offsets = [0, 0], sizes = [8, 1], strides = [1, 1]} : vector<8x4xf32> to vector<8x1xf32>
      %118 = vector.shape_cast %117 : vector<8x1xf32> to vector<8x1xf32>
      %119 = vector.broadcast %118 : vector<8x1xf32> to vector<8x32xf32>
      %120 = vector.extract_strided_slice %116 {offsets = [0, 1], sizes = [8, 1], strides = [1, 1]} : vector<8x4xf32> to vector<8x1xf32>
      %121 = vector.shape_cast %120 : vector<8x1xf32> to vector<8x1xf32>
      %122 = vector.broadcast %121 : vector<8x1xf32> to vector<8x32xf32>
      %123 = vector.extract_strided_slice %116 {offsets = [0, 2], sizes = [8, 1], strides = [1, 1]} : vector<8x4xf32> to vector<8x1xf32>
      %124 = vector.shape_cast %123 : vector<8x1xf32> to vector<8x1xf32>
      %125 = vector.broadcast %124 : vector<8x1xf32> to vector<8x32xf32>
      %126 = vector.extract_strided_slice %116 {offsets = [0, 3], sizes = [8, 1], strides = [1, 1]} : vector<8x4xf32> to vector<8x1xf32>
      %127 = vector.shape_cast %126 : vector<8x1xf32> to vector<8x1xf32>
      %128 = vector.broadcast %127 : vector<8x1xf32> to vector<8x32xf32>
      %129 = tpu.concatenate %119, %122, %125, %128 in 1 : vector<8x32xf32>, vector<8x32xf32>, vector<8x32xf32>, vector<8x32xf32> -> vector<8x128xf32>
      %c0_62 = arith.constant 0 : index
      %c0_63 = arith.constant 0 : index
      %130 = vector.load %arg9[%c0_62, %c0_63] : memref<8x128xf32, #tpu.memory_space<vmem>>, vector<8x128xf32>
      %131 = arith.mulf %130, %129 : vector<8x128xf32>
      %132 = arith.truncf %131 : vector<8x128xf32> to vector<8x128xbf16>
      %c0_64 = arith.constant 0 : index
      %c0_65 = arith.constant 0 : index
      %c0_66 = arith.constant 0 : index
      %133 = vector.load %arg6[%c0_64, %c0_65, %c0_66] : memref<1x8x128xbf16, #tpu.memory_space<vmem>>, vector<1x8x128xbf16>
      %134 = vector.shape_cast %133 : vector<1x8x128xbf16> to vector<8x128xbf16>
      %135 = vector.shape_cast %132 : vector<8x128xbf16> to vector<1x8x128xbf16>
      tpu.vector_store %arg6[%c0_64, %c0_65, %c0_66], %135 {strides = array<i32>} : memref<1x8x128xbf16, #tpu.memory_space<vmem>>, vector<1x8x128xbf16>,
    } else {
    }
    return
  }
  func.func @transform_0(%arg0: i32, %arg1: i32, %arg2: i32) -> (i32, i32, i32) {
    %c0_i32 = arith.constant 0 : i32
    %c0_i32_0 = arith.constant 0 : i32
    return %arg0, %arg1, %c0_i32 : i32, i32, i32
  }
  func.func @transform_1(%arg0: i32, %arg1: i32, %arg2: i32) -> (i32, i32, i32) {
    %c1_i32 = arith.constant 1 : i32
    %c0_i32 = arith.constant 0 : i32
    return %arg0, %arg2, %c1_i32 : i32, i32, i32
  }
  func.func @transform_2(%arg0: i32, %arg1: i32, %arg2: i32) -> (i32, i32, i32) {
    %c2_i32 = arith.constant 2 : i32
    %c0_i32 = arith.constant 0 : i32
    return %arg0, %arg2, %c2_i32 : i32, i32, i32
  }
  func.func @transform_3(%arg0: i32, %arg1: i32, %arg2: i32) -> (i32, i32, i32) {
    %c0_i32 = arith.constant 0 : i32
    %c0_i32_0 = arith.constant 0 : i32
    return %arg0, %arg1, %c0_i32 : i32, i32, i32
  }
}

module attributes {stable_mosaic.version = 11 : i64} {
  func.func @_matmul_kernel(%arg0: i32, %arg1: i32, %arg2: i32, %arg3: memref<16x128xbf16, #tpu.memory_space<vmem>>, %arg4: memref<128x128xbf16, #tpu.memory_space<vmem>>, %arg5: memref<1x128xf32, #tpu.memory_space<vmem>>, %arg6: memref<16x128xf32, #tpu.memory_space<vmem>>, %arg7: memref<16x128xf32, #tpu.memory_space<vmem>>, %arg8: memref<16x128xf32, #tpu.memory_space<vmem>>) attributes {dimension_semantics = [#tpu.dimension_semantics<parallel>, #tpu.dimension_semantics<parallel>, #tpu.dimension_semantics<arbitrary>], iteration_bounds = array<i64: 1, 1, 1>, scalar_prefetch = 0 : i64, scratch_operands = 1 : i64, tpu.core_type = #tpu.core_type<tc>, window_params = [{transform_indices = @transform_0, window_bounds = array<i64: 16, 128>}, {transform_indices = @transform_1, window_bounds = array<i64: 128, 128>}, {transform_indices = @transform_2, window_bounds = array<i64: 1, 128>}, {transform_indices = @transform_3, window_bounds = array<i64: 16, 128>}, {transform_indices = @transform_4, window_bounds = array<i64: 16, 128>}]} {
    %c0_i32 = arith.constant 0 : i32
    %0 = arith.cmpi eq, %arg2, %c0_i32 : i32
    %1 = arith.extui %0 : i1 to i32
    %c0_i32_0 = arith.constant 0 : i32
    %2 = arith.cmpi ne, %1, %c0_i32_0 : i32
    scf.if %2 {
      %cst_10 = arith.constant 0.000000e+00 : f32
      %12 = vector.broadcast %cst_10 : f32 to vector<16x128xf32>
      %c0_11 = arith.constant 0 : index
      %c0_12 = arith.constant 0 : index
      %13 = vector.load %arg8[%c0_11, %c0_12] : memref<16x128xf32, #tpu.memory_space<vmem>>, vector<16x128xf32>
      tpu.vector_store %arg8[%c0_11, %c0_12], %12 {strides = array<i32>} : memref<16x128xf32, #tpu.memory_space<vmem>>, vector<16x128xf32>,
    } else {
    }
    %c0 = arith.constant 0 : index
    %c0_1 = arith.constant 0 : index
    %3 = vector.load %arg3[%c0, %c0_1] : memref<16x128xbf16, #tpu.memory_space<vmem>>, vector<16x128xbf16>
    %c0_2 = arith.constant 0 : index
    %c0_3 = arith.constant 0 : index
    %4 = vector.load %arg8[%c0_2, %c0_3] : memref<16x128xf32, #tpu.memory_space<vmem>>, vector<16x128xf32>
    %c0_4 = arith.constant 0 : index
    %c0_5 = arith.constant 0 : index
    %5 = vector.load %arg4[%c0_4, %c0_5] : memref<128x128xbf16, #tpu.memory_space<vmem>>, vector<128x128xbf16>
    %cst = arith.constant dense<0.000000e+00> : vector<16x128xf32>
    %6 = tpu.matmul %3, %5, %cst {dimension_numbers = #tpu.dot_dimension_numbers<[1], [0], [0], [1], [0, 0, 1, 1], [], []>} : vector<16x128xbf16>, vector<128x128xbf16>, vector<16x128xf32> -> vector<16x128xf32>
    %7 = arith.addf %4, %6 : vector<16x128xf32>
    %c0_6 = arith.constant 0 : index
    %c0_7 = arith.constant 0 : index
    %8 = vector.load %arg8[%c0_6, %c0_7] : memref<16x128xf32, #tpu.memory_space<vmem>>, vector<16x128xf32>
    tpu.vector_store %arg8[%c0_6, %c0_7], %7 {strides = array<i32>} : memref<16x128xf32, #tpu.memory_space<vmem>>, vector<16x128xf32>,
    %c0_i32_8 = arith.constant 0 : i32
    %9 = arith.cmpi eq, %arg2, %c0_i32_8 : i32
    %10 = arith.extui %9 : i1 to i32
    %c0_i32_9 = arith.constant 0 : i32
    %11 = arith.cmpi ne, %10, %c0_i32_9 : i32
    scf.if %11 {
      %c0_10 = arith.constant 0 : index
      %c0_11 = arith.constant 0 : index
      %12 = vector.load %arg8[%c0_10, %c0_11] : memref<16x128xf32, #tpu.memory_space<vmem>>, vector<16x128xf32>
      %c0_12 = arith.constant 0 : index
      %c0_13 = arith.constant 0 : index
      %13 = vector.load %arg5[%c0_12, %c0_13] : memref<1x128xf32, #tpu.memory_space<vmem>>, vector<1x128xf32>
      %14 = vector.broadcast %13 : vector<1x128xf32> to vector<16x128xf32>
      %15 = arith.addf %12, %14 : vector<16x128xf32>
      %c0_14 = arith.constant 0 : index
      %c0_15 = arith.constant 0 : index
      %16 = vector.load %arg6[%c0_14, %c0_15] : memref<16x128xf32, #tpu.memory_space<vmem>>, vector<16x128xf32>
      %17 = arith.addf %15, %16 : vector<16x128xf32>
      %c0_16 = arith.constant 0 : index
      %c0_17 = arith.constant 0 : index
      %18 = vector.load %arg7[%c0_16, %c0_17] : memref<16x128xf32, #tpu.memory_space<vmem>>, vector<16x128xf32>
      tpu.vector_store %arg7[%c0_16, %c0_17], %17 {strides = array<i32>} : memref<16x128xf32, #tpu.memory_space<vmem>>, vector<16x128xf32>,
    } else {
    }
    return
  }
  func.func @transform_0(%arg0: i32, %arg1: i32, %arg2: i32) -> (i32, i32) {
    %c0_i32 = arith.constant 0 : i32
    return %arg0, %arg2 : i32, i32
  }
  func.func @transform_1(%arg0: i32, %arg1: i32, %arg2: i32) -> (i32, i32) {
    %c0_i32 = arith.constant 0 : i32
    return %arg2, %arg1 : i32, i32
  }
  func.func @transform_2(%arg0: i32, %arg1: i32, %arg2: i32) -> (i32, i32) {
    %c0_i32 = arith.constant 0 : i32
    %c0_i32_0 = arith.constant 0 : i32
    return %c0_i32, %arg1 : i32, i32
  }
  func.func @transform_3(%arg0: i32, %arg1: i32, %arg2: i32) -> (i32, i32) {
    %c0_i32 = arith.constant 0 : i32
    return %arg0, %arg1 : i32, i32
  }
  func.func @transform_4(%arg0: i32, %arg1: i32, %arg2: i32) -> (i32, i32) {
    %c0_i32 = arith.constant 0 : i32
    return %arg0, %arg1 : i32, i32
  }
}

module attributes {stable_mosaic.version = 11 : i64} {
  func.func @_matmul_kernel(%arg0: i32, %arg1: i32, %arg2: i32, %arg3: memref<8x128xf32, #tpu.memory_space<vmem>>, %arg4: memref<1x128xf32, #tpu.memory_space<vmem>>, %arg5: memref<1x128xf32, #tpu.memory_space<vmem>>, %arg6: memref<128x384xbf16, #tpu.memory_space<vmem>>, %arg7: memref<1x384xf32, #tpu.memory_space<vmem>>, %arg8: memref<8x384xbf16, #tpu.memory_space<vmem>>, %arg9: memref<8x384xf32, #tpu.memory_space<vmem>>, %arg10: memref<8x128xbf16, #tpu.memory_space<vmem>>) attributes {dimension_semantics = [#tpu.dimension_semantics<parallel>, #tpu.dimension_semantics<parallel>, #tpu.dimension_semantics<arbitrary>], iteration_bounds = array<i64: 2, 1, 1>, scalar_prefetch = 0 : i64, scratch_operands = 2 : i64, tpu.core_type = #tpu.core_type<tc>, window_params = [{transform_indices = @transform_0, window_bounds = array<i64: 8, 128>}, {pipeline_mode = #tpu.pipeline_mode<synchronous>, transform_indices = @transform_1, window_bounds = array<i64: 1, 128>}, {pipeline_mode = #tpu.pipeline_mode<synchronous>, transform_indices = @transform_2, window_bounds = array<i64: 1, 128>}, {transform_indices = @transform_3, window_bounds = array<i64: 128, 384>}, {transform_indices = @transform_4, window_bounds = array<i64: 1, 384>}, {transform_indices = @transform_5, window_bounds = array<i64: 8, 384>}]} {
    %c0_i32 = arith.constant 0 : i32
    %0 = arith.cmpi eq, %arg2, %c0_i32 : i32
    %1 = arith.extui %0 : i1 to i32
    %c0_i32_0 = arith.constant 0 : i32
    %2 = arith.cmpi ne, %1, %c0_i32_0 : i32
    scf.if %2 {
      %cst_12 = arith.constant 0.000000e+00 : f32
      %15 = vector.broadcast %cst_12 : f32 to vector<8x384xf32>
      %c0_13 = arith.constant 0 : index
      %c0_14 = arith.constant 0 : index
      %16 = vector.load %arg9[%c0_13, %c0_14] : memref<8x384xf32, #tpu.memory_space<vmem>>, vector<8x384xf32>
      tpu.vector_store %arg9[%c0_13, %c0_14], %15 {strides = array<i32>} : memref<8x384xf32, #tpu.memory_space<vmem>>, vector<8x384xf32>,
    } else {
    }
    %c0_i32_1 = arith.constant 0 : i32
    %3 = arith.cmpi eq, %arg2, %c0_i32_1 : i32
    %4 = arith.extui %3 : i1 to i32
    %c0_i32_2 = arith.constant 0 : i32
    %5 = arith.cmpi ne, %4, %c0_i32_2 : i32
    scf.if %5 {
      %c0_12 = arith.constant 0 : index
      %c0_13 = arith.constant 0 : index
      %15 = vector.load %arg3[%c0_12, %c0_13] : memref<8x128xf32, #tpu.memory_space<vmem>>, vector<8x128xf32>
      %cst_14 = arith.constant dense<0.000000e+00> : vector<8xf32>
      %16 = vector.multi_reduction <add>, %15, %cst_14 [1] : vector<8x128xf32> to vector<8xf32>
      %17 = vector.shape_cast %16 : vector<8xf32> to vector<8x1xf32>
      %cst_15 = arith.constant 1.280000e+02 : f32
      %18 = vector.broadcast %cst_15 : f32 to vector<8x1xf32>
      %19 = arith.divf %17, %18 : vector<8x1xf32>
      %20 = vector.broadcast %19 : vector<8x1xf32> to vector<8x128xf32>
      %21 = arith.subf %15, %20 : vector<8x128xf32>
      %22 = arith.mulf %21, %21 : vector<8x128xf32>
      %cst_16 = arith.constant dense<0.000000e+00> : vector<8xf32>
      %23 = vector.multi_reduction <add>, %22, %cst_16 [1] : vector<8x128xf32> to vector<8xf32>
      %24 = vector.shape_cast %23 : vector<8xf32> to vector<8x1xf32>
      %cst_17 = arith.constant 1.280000e+02 : f32
      %25 = vector.broadcast %cst_17 : f32 to vector<8x1xf32>
      %26 = arith.divf %24, %25 : vector<8x1xf32>
      %cst_18 = arith.constant 9.99999974E-6 : f32
      %27 = vector.broadcast %cst_18 : f32 to vector<8x1xf32>
      %28 = arith.addf %26, %27 : vector<8x1xf32>
      %29 = math.rsqrt %28 : vector<8x1xf32>
      %30 = vector.broadcast %29 : vector<8x1xf32> to vector<8x128xf32>
      %31 = arith.mulf %21, %30 : vector<8x128xf32>
      %c0_19 = arith.constant 0 : index
      %c0_20 = arith.constant 0 : index
      %32 = vector.load %arg4[%c0_19, %c0_20] : memref<1x128xf32, #tpu.memory_space<vmem>>, vector<1x128xf32>
      %33 = vector.broadcast %32 : vector<1x128xf32> to vector<8x128xf32>
      %34 = arith.mulf %31, %33 : vector<8x128xf32>
      %c0_21 = arith.constant 0 : index
      %c0_22 = arith.constant 0 : index
      %35 = vector.load %arg5[%c0_21, %c0_22] : memref<1x128xf32, #tpu.memory_space<vmem>>, vector<1x128xf32>
      %36 = vector.broadcast %35 : vector<1x128xf32> to vector<8x128xf32>
      %37 = arith.addf %34, %36 : vector<8x128xf32>
      %38 = arith.truncf %37 : vector<8x128xf32> to vector<8x128xbf16>
      %c0_23 = arith.constant 0 : index
      %c0_24 = arith.constant 0 : index
      %39 = vector.load %arg10[%c0_23, %c0_24] : memref<8x128xbf16, #tpu.memory_space<vmem>>, vector<8x128xbf16>
      tpu.vector_store %arg10[%c0_23, %c0_24], %38 {strides = array<i32>} : memref<8x128xbf16, #tpu.memory_space<vmem>>, vector<8x128xbf16>,
    } else {
    }
    %c0 = arith.constant 0 : index
    %c0_3 = arith.constant 0 : index
    %6 = vector.load %arg10[%c0, %c0_3] : memref<8x128xbf16, #tpu.memory_space<vmem>>, vector<8x128xbf16>
    %c0_4 = arith.constant 0 : index
    %c0_5 = arith.constant 0 : index
    %7 = vector.load %arg9[%c0_4, %c0_5] : memref<8x384xf32, #tpu.memory_space<vmem>>, vector<8x384xf32>
    %c0_6 = arith.constant 0 : index
    %c0_7 = arith.constant 0 : index
    %8 = vector.load %arg6[%c0_6, %c0_7] : memref<128x384xbf16, #tpu.memory_space<vmem>>, vector<128x384xbf16>
    %cst = arith.constant dense<0.000000e+00> : vector<8x384xf32>
    %9 = tpu.matmul %6, %8, %cst {dimension_numbers = #tpu.dot_dimension_numbers<[1], [0], [0], [1], [0, 0, 1, 1], [], []>} : vector<8x128xbf16>, vector<128x384xbf16>, vector<8x384xf32> -> vector<8x384xf32>
    %10 = arith.addf %7, %9 : vector<8x384xf32>
    %c0_8 = arith.constant 0 : index
    %c0_9 = arith.constant 0 : index
    %11 = vector.load %arg9[%c0_8, %c0_9] : memref<8x384xf32, #tpu.memory_space<vmem>>, vector<8x384xf32>
    tpu.vector_store %arg9[%c0_8, %c0_9], %10 {strides = array<i32>} : memref<8x384xf32, #tpu.memory_space<vmem>>, vector<8x384xf32>,
    %c0_i32_10 = arith.constant 0 : i32
    %12 = arith.cmpi eq, %arg2, %c0_i32_10 : i32
    %13 = arith.extui %12 : i1 to i32
    %c0_i32_11 = arith.constant 0 : i32
    %14 = arith.cmpi ne, %13, %c0_i32_11 : i32
    scf.if %14 {
      %c0_12 = arith.constant 0 : index
      %c0_13 = arith.constant 0 : index
      %15 = vector.load %arg9[%c0_12, %c0_13] : memref<8x384xf32, #tpu.memory_space<vmem>>, vector<8x384xf32>
      %c0_14 = arith.constant 0 : index
      %c0_15 = arith.constant 0 : index
      %16 = vector.load %arg7[%c0_14, %c0_15] : memref<1x384xf32, #tpu.memory_space<vmem>>, vector<1x384xf32>
      %17 = vector.broadcast %16 : vector<1x384xf32> to vector<8x384xf32>
      %18 = arith.addf %15, %17 : vector<8x384xf32>
      %19 = arith.truncf %18 : vector<8x384xf32> to vector<8x384xbf16>
      %c0_16 = arith.constant 0 : index
      %c0_17 = arith.constant 0 : index
      %20 = vector.load %arg8[%c0_16, %c0_17] : memref<8x384xbf16, #tpu.memory_space<vmem>>, vector<8x384xbf16>
      tpu.vector_store %arg8[%c0_16, %c0_17], %19 {strides = array<i32>} : memref<8x384xbf16, #tpu.memory_space<vmem>>, vector<8x384xbf16>,
    } else {
    }
    return
  }
  func.func @transform_0(%arg0: i32, %arg1: i32, %arg2: i32) -> (i32, i32) {
    %c0_i32 = arith.constant 0 : i32
    %c0_i32_0 = arith.constant 0 : i32
    return %arg0, %c0_i32 : i32, i32
  }
  func.func @transform_1(%arg0: i32, %arg1: i32, %arg2: i32) -> (i32, i32) {
    %c0_i32 = arith.constant 0 : i32
    %c0_i32_0 = arith.constant 0 : i32
    %c0_i32_1 = arith.constant 0 : i32
    return %c0_i32, %c0_i32_0 : i32, i32
  }
  func.func @transform_2(%arg0: i32, %arg1: i32, %arg2: i32) -> (i32, i32) {
    %c0_i32 = arith.constant 0 : i32
    %c0_i32_0 = arith.constant 0 : i32
    %c0_i32_1 = arith.constant 0 : i32
    return %c0_i32, %c0_i32_0 : i32, i32
  }
  func.func @transform_3(%arg0: i32, %arg1: i32, %arg2: i32) -> (i32, i32) {
    %c0_i32 = arith.constant 0 : i32
    return %arg2, %arg1 : i32, i32
  }
  func.func @transform_4(%arg0: i32, %arg1: i32, %arg2: i32) -> (i32, i32) {
    %c0_i32 = arith.constant 0 : i32
    %c0_i32_0 = arith.constant 0 : i32
    return %c0_i32, %arg1 : i32, i32
  }
  func.func @transform_5(%arg0: i32, %arg1: i32, %arg2: i32) -> (i32, i32) {
    %c0_i32 = arith.constant 0 : i32
    return %arg0, %arg1 : i32, i32
  }
}

module attributes {stable_mosaic.version = 11 : i64} {
  func.func @_matmul_kernel(%arg0: i32, %arg1: i32, %arg2: i32, %arg3: memref<8x128xf32, #tpu.memory_space<vmem>>, %arg4: memref<1x128xf32, #tpu.memory_space<vmem>>, %arg5: memref<1x128xf32, #tpu.memory_space<vmem>>, %arg6: memref<128x512xbf16, #tpu.memory_space<vmem>>, %arg7: memref<1x512xf32, #tpu.memory_space<vmem>>, %arg8: memref<8x512xbf16, #tpu.memory_space<vmem>>, %arg9: memref<8x512xf32, #tpu.memory_space<vmem>>, %arg10: memref<8x128xbf16, #tpu.memory_space<vmem>>) attributes {dimension_semantics = [#tpu.dimension_semantics<parallel>, #tpu.dimension_semantics<parallel>, #tpu.dimension_semantics<arbitrary>], iteration_bounds = array<i64: 2, 1, 1>, scalar_prefetch = 0 : i64, scratch_operands = 2 : i64, tpu.core_type = #tpu.core_type<tc>, window_params = [{transform_indices = @transform_0, window_bounds = array<i64: 8, 128>}, {pipeline_mode = #tpu.pipeline_mode<synchronous>, transform_indices = @transform_1, window_bounds = array<i64: 1, 128>}, {pipeline_mode = #tpu.pipeline_mode<synchronous>, transform_indices = @transform_2, window_bounds = array<i64: 1, 128>}, {transform_indices = @transform_3, window_bounds = array<i64: 128, 512>}, {transform_indices = @transform_4, window_bounds = array<i64: 1, 512>}, {transform_indices = @transform_5, window_bounds = array<i64: 8, 512>}]} {
    %c0_i32 = arith.constant 0 : i32
    %0 = arith.cmpi eq, %arg2, %c0_i32 : i32
    %1 = arith.extui %0 : i1 to i32
    %c0_i32_0 = arith.constant 0 : i32
    %2 = arith.cmpi ne, %1, %c0_i32_0 : i32
    scf.if %2 {
      %cst_12 = arith.constant 0.000000e+00 : f32
      %15 = vector.broadcast %cst_12 : f32 to vector<8x512xf32>
      %c0_13 = arith.constant 0 : index
      %c0_14 = arith.constant 0 : index
      %16 = vector.load %arg9[%c0_13, %c0_14] : memref<8x512xf32, #tpu.memory_space<vmem>>, vector<8x512xf32>
      tpu.vector_store %arg9[%c0_13, %c0_14], %15 {strides = array<i32>} : memref<8x512xf32, #tpu.memory_space<vmem>>, vector<8x512xf32>,
    } else {
    }
    %c0_i32_1 = arith.constant 0 : i32
    %3 = arith.cmpi eq, %arg2, %c0_i32_1 : i32
    %4 = arith.extui %3 : i1 to i32
    %c0_i32_2 = arith.constant 0 : i32
    %5 = arith.cmpi ne, %4, %c0_i32_2 : i32
    scf.if %5 {
      %c0_12 = arith.constant 0 : index
      %c0_13 = arith.constant 0 : index
      %15 = vector.load %arg3[%c0_12, %c0_13] : memref<8x128xf32, #tpu.memory_space<vmem>>, vector<8x128xf32>
      %cst_14 = arith.constant dense<0.000000e+00> : vector<8xf32>
      %16 = vector.multi_reduction <add>, %15, %cst_14 [1] : vector<8x128xf32> to vector<8xf32>
      %17 = vector.shape_cast %16 : vector<8xf32> to vector<8x1xf32>
      %cst_15 = arith.constant 1.280000e+02 : f32
      %18 = vector.broadcast %cst_15 : f32 to vector<8x1xf32>
      %19 = arith.divf %17, %18 : vector<8x1xf32>
      %20 = vector.broadcast %19 : vector<8x1xf32> to vector<8x128xf32>
      %21 = arith.subf %15, %20 : vector<8x128xf32>
      %22 = arith.mulf %21, %21 : vector<8x128xf32>
      %cst_16 = arith.constant dense<0.000000e+00> : vector<8xf32>
      %23 = vector.multi_reduction <add>, %22, %cst_16 [1] : vector<8x128xf32> to vector<8xf32>
      %24 = vector.shape_cast %23 : vector<8xf32> to vector<8x1xf32>
      %cst_17 = arith.constant 1.280000e+02 : f32
      %25 = vector.broadcast %cst_17 : f32 to vector<8x1xf32>
      %26 = arith.divf %24, %25 : vector<8x1xf32>
      %cst_18 = arith.constant 9.99999974E-6 : f32
      %27 = vector.broadcast %cst_18 : f32 to vector<8x1xf32>
      %28 = arith.addf %26, %27 : vector<8x1xf32>
      %29 = math.rsqrt %28 : vector<8x1xf32>
      %30 = vector.broadcast %29 : vector<8x1xf32> to vector<8x128xf32>
      %31 = arith.mulf %21, %30 : vector<8x128xf32>
      %c0_19 = arith.constant 0 : index
      %c0_20 = arith.constant 0 : index
      %32 = vector.load %arg4[%c0_19, %c0_20] : memref<1x128xf32, #tpu.memory_space<vmem>>, vector<1x128xf32>
      %33 = vector.broadcast %32 : vector<1x128xf32> to vector<8x128xf32>
      %34 = arith.mulf %31, %33 : vector<8x128xf32>
      %c0_21 = arith.constant 0 : index
      %c0_22 = arith.constant 0 : index
      %35 = vector.load %arg5[%c0_21, %c0_22] : memref<1x128xf32, #tpu.memory_space<vmem>>, vector<1x128xf32>
      %36 = vector.broadcast %35 : vector<1x128xf32> to vector<8x128xf32>
      %37 = arith.addf %34, %36 : vector<8x128xf32>
      %38 = arith.truncf %37 : vector<8x128xf32> to vector<8x128xbf16>
      %c0_23 = arith.constant 0 : index
      %c0_24 = arith.constant 0 : index
      %39 = vector.load %arg10[%c0_23, %c0_24] : memref<8x128xbf16, #tpu.memory_space<vmem>>, vector<8x128xbf16>
      tpu.vector_store %arg10[%c0_23, %c0_24], %38 {strides = array<i32>} : memref<8x128xbf16, #tpu.memory_space<vmem>>, vector<8x128xbf16>,
    } else {
    }
    %c0 = arith.constant 0 : index
    %c0_3 = arith.constant 0 : index
    %6 = vector.load %arg10[%c0, %c0_3] : memref<8x128xbf16, #tpu.memory_space<vmem>>, vector<8x128xbf16>
    %c0_4 = arith.constant 0 : index
    %c0_5 = arith.constant 0 : index
    %7 = vector.load %arg9[%c0_4, %c0_5] : memref<8x512xf32, #tpu.memory_space<vmem>>, vector<8x512xf32>
    %c0_6 = arith.constant 0 : index
    %c0_7 = arith.constant 0 : index
    %8 = vector.load %arg6[%c0_6, %c0_7] : memref<128x512xbf16, #tpu.memory_space<vmem>>, vector<128x512xbf16>
    %cst = arith.constant dense<0.000000e+00> : vector<8x512xf32>
    %9 = tpu.matmul %6, %8, %cst {dimension_numbers = #tpu.dot_dimension_numbers<[1], [0], [0], [1], [0, 0, 1, 1], [], []>} : vector<8x128xbf16>, vector<128x512xbf16>, vector<8x512xf32> -> vector<8x512xf32>
    %10 = arith.addf %7, %9 : vector<8x512xf32>
    %c0_8 = arith.constant 0 : index
    %c0_9 = arith.constant 0 : index
    %11 = vector.load %arg9[%c0_8, %c0_9] : memref<8x512xf32, #tpu.memory_space<vmem>>, vector<8x512xf32>
    tpu.vector_store %arg9[%c0_8, %c0_9], %10 {strides = array<i32>} : memref<8x512xf32, #tpu.memory_space<vmem>>, vector<8x512xf32>,
    %c0_i32_10 = arith.constant 0 : i32
    %12 = arith.cmpi eq, %arg2, %c0_i32_10 : i32
    %13 = arith.extui %12 : i1 to i32
    %c0_i32_11 = arith.constant 0 : i32
    %14 = arith.cmpi ne, %13, %c0_i32_11 : i32
    scf.if %14 {
      %c0_12 = arith.constant 0 : index
      %c0_13 = arith.constant 0 : index
      %15 = vector.load %arg9[%c0_12, %c0_13] : memref<8x512xf32, #tpu.memory_space<vmem>>, vector<8x512xf32>
      %c0_14 = arith.constant 0 : index
      %c0_15 = arith.constant 0 : index
      %16 = vector.load %arg7[%c0_14, %c0_15] : memref<1x512xf32, #tpu.memory_space<vmem>>, vector<1x512xf32>
      %17 = vector.broadcast %16 : vector<1x512xf32> to vector<8x512xf32>
      %18 = arith.addf %15, %17 : vector<8x512xf32>
      %cst_16 = arith.constant 5.000000e-01 : f32
      %19 = vector.broadcast %cst_16 : f32 to vector<8x512xf32>
      %20 = arith.mulf %19, %18 : vector<8x512xf32>
      %cst_17 = arith.constant 4.471500e-02 : f32
      %21 = vector.broadcast %cst_17 : f32 to vector<8x512xf32>
      %22 = arith.mulf %21, %18 : vector<8x512xf32>
      %23 = arith.mulf %22, %18 : vector<8x512xf32>
      %24 = arith.mulf %23, %18 : vector<8x512xf32>
      %25 = arith.addf %18, %24 : vector<8x512xf32>
      %cst_18 = arith.constant 0.797884583 : f32
      %26 = vector.broadcast %cst_18 : f32 to vector<8x512xf32>
      %27 = arith.mulf %26, %25 : vector<8x512xf32>
      %28 = math.tanh %27 : vector<8x512xf32>
      %cst_19 = arith.constant 1.000000e+00 : f32
      %29 = vector.broadcast %cst_19 : f32 to vector<8x512xf32>
      %30 = arith.addf %29, %28 : vector<8x512xf32>
      %31 = arith.mulf %20, %30 : vector<8x512xf32>
      %32 = arith.truncf %31 : vector<8x512xf32> to vector<8x512xbf16>
      %c0_20 = arith.constant 0 : index
      %c0_21 = arith.constant 0 : index
      %33 = vector.load %arg8[%c0_20, %c0_21] : memref<8x512xbf16, #tpu.memory_space<vmem>>, vector<8x512xbf16>
      tpu.vector_store %arg8[%c0_20, %c0_21], %32 {strides = array<i32>} : memref<8x512xbf16, #tpu.memory_space<vmem>>, vector<8x512xbf16>,
    } else {
    }
    return
  }
  func.func @transform_0(%arg0: i32, %arg1: i32, %arg2: i32) -> (i32, i32) {
    %c0_i32 = arith.constant 0 : i32
    %c0_i32_0 = arith.constant 0 : i32
    return %arg0, %c0_i32 : i32, i32
  }
  func.func @transform_1(%arg0: i32, %arg1: i32, %arg2: i32) -> (i32, i32) {
    %c0_i32 = arith.constant 0 : i32
    %c0_i32_0 = arith.constant 0 : i32
    %c0_i32_1 = arith.constant 0 : i32
    return %c0_i32, %c0_i32_0 : i32, i32
  }
  func.func @transform_2(%arg0: i32, %arg1: i32, %arg2: i32) -> (i32, i32) {
    %c0_i32 = arith.constant 0 : i32
    %c0_i32_0 = arith.constant 0 : i32
    %c0_i32_1 = arith.constant 0 : i32
    return %c0_i32, %c0_i32_0 : i32, i32
  }
  func.func @transform_3(%arg0: i32, %arg1: i32, %arg2: i32) -> (i32, i32) {
    %c0_i32 = arith.constant 0 : i32
    return %arg2, %arg1 : i32, i32
  }
  func.func @transform_4(%arg0: i32, %arg1: i32, %arg2: i32) -> (i32, i32) {
    %c0_i32 = arith.constant 0 : i32
    %c0_i32_0 = arith.constant 0 : i32
    return %c0_i32, %arg1 : i32, i32
  }
  func.func @transform_5(%arg0: i32, %arg1: i32, %arg2: i32) -> (i32, i32) {
    %c0_i32 = arith.constant 0 : i32
    return %arg0, %arg1 : i32, i32
  }
}

module attributes {stable_mosaic.version = 11 : i64} {
  func.func @_matmul_kernel(%arg0: i32, %arg1: i32, %arg2: i32, %arg3: memref<16x512xbf16, #tpu.memory_space<vmem>>, %arg4: memref<512x128xbf16, #tpu.memory_space<vmem>>, %arg5: memref<1x128xf32, #tpu.memory_space<vmem>>, %arg6: memref<16x128xf32, #tpu.memory_space<vmem>>, %arg7: memref<16x128xf32, #tpu.memory_space<vmem>>, %arg8: memref<16x128xf32, #tpu.memory_space<vmem>>) attributes {dimension_semantics = [#tpu.dimension_semantics<parallel>, #tpu.dimension_semantics<parallel>, #tpu.dimension_semantics<arbitrary>], iteration_bounds = array<i64: 1, 1, 1>, scalar_prefetch = 0 : i64, scratch_operands = 1 : i64, tpu.core_type = #tpu.core_type<tc>, window_params = [{transform_indices = @transform_0, window_bounds = array<i64: 16, 512>}, {transform_indices = @transform_1, window_bounds = array<i64: 512, 128>}, {transform_indices = @transform_2, window_bounds = array<i64: 1, 128>}, {transform_indices = @transform_3, window_bounds = array<i64: 16, 128>}, {transform_indices = @transform_4, window_bounds = array<i64: 16, 128>}]} {
    %c0_i32 = arith.constant 0 : i32
    %0 = arith.cmpi eq, %arg2, %c0_i32 : i32
    %1 = arith.extui %0 : i1 to i32
    %c0_i32_0 = arith.constant 0 : i32
    %2 = arith.cmpi ne, %1, %c0_i32_0 : i32
    scf.if %2 {
      %cst_10 = arith.constant 0.000000e+00 : f32
      %12 = vector.broadcast %cst_10 : f32 to vector<16x128xf32>
      %c0_11 = arith.constant 0 : index
      %c0_12 = arith.constant 0 : index
      %13 = vector.load %arg8[%c0_11, %c0_12] : memref<16x128xf32, #tpu.memory_space<vmem>>, vector<16x128xf32>
      tpu.vector_store %arg8[%c0_11, %c0_12], %12 {strides = array<i32>} : memref<16x128xf32, #tpu.memory_space<vmem>>, vector<16x128xf32>,
    } else {
    }
    %c0 = arith.constant 0 : index
    %c0_1 = arith.constant 0 : index
    %3 = vector.load %arg3[%c0, %c0_1] : memref<16x512xbf16, #tpu.memory_space<vmem>>, vector<16x512xbf16>
    %c0_2 = arith.constant 0 : index
    %c0_3 = arith.constant 0 : index
    %4 = vector.load %arg8[%c0_2, %c0_3] : memref<16x128xf32, #tpu.memory_space<vmem>>, vector<16x128xf32>
    %c0_4 = arith.constant 0 : index
    %c0_5 = arith.constant 0 : index
    %5 = vector.load %arg4[%c0_4, %c0_5] : memref<512x128xbf16, #tpu.memory_space<vmem>>, vector<512x128xbf16>
    %cst = arith.constant dense<0.000000e+00> : vector<16x128xf32>
    %6 = tpu.matmul %3, %5, %cst {dimension_numbers = #tpu.dot_dimension_numbers<[1], [0], [0], [1], [0, 0, 1, 1], [], []>} : vector<16x512xbf16>, vector<512x128xbf16>, vector<16x128xf32> -> vector<16x128xf32>
    %7 = arith.addf %4, %6 : vector<16x128xf32>
    %c0_6 = arith.constant 0 : index
    %c0_7 = arith.constant 0 : index
    %8 = vector.load %arg8[%c0_6, %c0_7] : memref<16x128xf32, #tpu.memory_space<vmem>>, vector<16x128xf32>
    tpu.vector_store %arg8[%c0_6, %c0_7], %7 {strides = array<i32>} : memref<16x128xf32, #tpu.memory_space<vmem>>, vector<16x128xf32>,
    %c0_i32_8 = arith.constant 0 : i32
    %9 = arith.cmpi eq, %arg2, %c0_i32_8 : i32
    %10 = arith.extui %9 : i1 to i32
    %c0_i32_9 = arith.constant 0 : i32
    %11 = arith.cmpi ne, %10, %c0_i32_9 : i32
    scf.if %11 {
      %c0_10 = arith.constant 0 : index
      %c0_11 = arith.constant 0 : index
      %12 = vector.load %arg8[%c0_10, %c0_11] : memref<16x128xf32, #tpu.memory_space<vmem>>, vector<16x128xf32>
      %c0_12 = arith.constant 0 : index
      %c0_13 = arith.constant 0 : index
      %13 = vector.load %arg5[%c0_12, %c0_13] : memref<1x128xf32, #tpu.memory_space<vmem>>, vector<1x128xf32>
      %14 = vector.broadcast %13 : vector<1x128xf32> to vector<16x128xf32>
      %15 = arith.addf %12, %14 : vector<16x128xf32>
      %c0_14 = arith.constant 0 : index
      %c0_15 = arith.constant 0 : index
      %16 = vector.load %arg6[%c0_14, %c0_15] : memref<16x128xf32, #tpu.memory_space<vmem>>, vector<16x128xf32>
      %17 = arith.addf %15, %16 : vector<16x128xf32>
      %c0_16 = arith.constant 0 : index
      %c0_17 = arith.constant 0 : index
      %18 = vector.load %arg7[%c0_16, %c0_17] : memref<16x128xf32, #tpu.memory_space<vmem>>, vector<16x128xf32>
      tpu.vector_store %arg7[%c0_16, %c0_17], %17 {strides = array<i32>} : memref<16x128xf32, #tpu.memory_space<vmem>>, vector<16x128xf32>,
    } else {
    }
    return
  }
  func.func @transform_0(%arg0: i32, %arg1: i32, %arg2: i32) -> (i32, i32) {
    %c0_i32 = arith.constant 0 : i32
    return %arg0, %arg2 : i32, i32
  }
  func.func @transform_1(%arg0: i32, %arg1: i32, %arg2: i32) -> (i32, i32) {
    %c0_i32 = arith.constant 0 : i32
    return %arg2, %arg1 : i32, i32
  }
  func.func @transform_2(%arg0: i32, %arg1: i32, %arg2: i32) -> (i32, i32) {
    %c0_i32 = arith.constant 0 : i32
    %c0_i32_0 = arith.constant 0 : i32
    return %c0_i32, %arg1 : i32, i32
  }
  func.func @transform_3(%arg0: i32, %arg1: i32, %arg2: i32) -> (i32, i32) {
    %c0_i32 = arith.constant 0 : i32
    return %arg0, %arg1 : i32, i32
  }
  func.func @transform_4(%arg0: i32, %arg1: i32, %arg2: i32) -> (i32, i32) {
    %c0_i32 = arith.constant 0 : i32
    return %arg0, %arg1 : i32, i32
  }
}

</mosaic_0001>

<llo_original>
// kernel: transformer_forward.7
$region0: #{transformer_forward.7}
  #allocation0 [shape = 'u32[]', space=smem, size = 0x4, offset = 0x4, fixed_abs, tag = 'smem constant byte address 0x4 - core index']
  #allocation1 [shape = 'u32[72,128]{1,0:T(1,128)}', space=vmem, size = 0x9000, scoped, tag = 'internal scratch']
  #allocation2 [shape = 'f32[16,128]{1,0:T(8,128)}', space=vmem, size = 0x2000, scoped, tag = 'scratch operand']
  %s0 = inlined_call_operand.vmem [shape: bf16[16,128], index: 0, kind: input, shape index: {}]
  %s1 = inlined_call_operand.hbm [shape: bf16[128,128], index: 1, kind: input, shape index: {}]
  %s2 = inlined_call_operand.vmem [shape: f32[1,128], index: 2, kind: input, shape index: {}]
  %s3 = inlined_call_operand.hbm [shape: f32[16,128], index: 3, kind: input, shape index: {}]
  %s4 = inlined_call_operand.vmem [shape: f32[16,128], index: 4, kind: output, shape index: {}]
  %s5 = sld [smem:[#allocation0]]
  $region42: #{transformer_forward.7} parent=0
    _
  %s7 = ssub.s32 1, %s5
  %s8 = scalar_select 0, %s7, %s5
  $region1: #{transformer_forward.7} parent=0
    #allocation3 [shape = 'u8[32768]{0}', space=vmem, size = 0x8000, scoped, tag = 'input window, operand 1, single buffered']
    #allocation4 [shape = 's32[1]{0}', space=sflag, size = 0x4, scoped, tag = 'scoped memory for transformer_forward.7']
    #allocation5 [shape = 'u8[8192]{0}', space=vmem, size = 0x2000, scoped, tag = 'input window, operand 3, single buffered']
    #allocation6 [shape = 's32[1]{0}', space=sflag, size = 0x4, scoped, tag = 'scoped memory for transformer_forward.7']
    %9 = vsyncpa [#allocation4], 0
    %10 = vsyncpa [#allocation6], 0
    // Predicated region
    $region2: #{transformer_forward.7} parent=1 // pred_check
      _
    $region3: #{transformer_forward.7} parent=1 // pred_check_branch
      %12 = sbr.rel (0) target = $region5
    $region4: #{transformer_forward.7} parent=1 // pred_region
      _
    $region5: #{transformer_forward.7} parent=1 // pred_fallthru
      _
    // Predicated region
    $region6: #{transformer_forward.7} parent=1 // pred_check
      _
    $region7: #{transformer_forward.7} parent=1 // pred_check_branch
      %14 = sbr.rel (0) target = $region9
    $region8: #{transformer_forward.7} parent=1 // pred_region
      %16 = vsyncadd [#allocation4], 0
      %s17 = sshll.u32 %s1, 4
      %s18 = int_to_ptr.hbm [resolvable:$true] %s17
      %s19 = sshll.u32 [#allocation3], 4
      %s20 = int_to_ptr.vmem [resolvable:$true] %s19
      %25 = dma.hbm_to_vmem [thread:$0]  %s18, 1024, %s20, [#allocation4], 64, 64, 4
    $region9: #{transformer_forward.7} parent=1 // pred_fallthru
      _
    // Predicated region
    $region10: #{transformer_forward.7} parent=1 // pred_check
      _
    $region11: #{transformer_forward.7} parent=1 // pred_check_branch
      %27 = sbr.rel (0) target = $region13
    $region12: #{transformer_forward.7} parent=1 // pred_region
      _
    $region13: #{transformer_forward.7} parent=1 // pred_fallthru
      _
    // Predicated region
    $region14: #{transformer_forward.7} parent=1 // pred_check
      _
    $region15: #{transformer_forward.7} parent=1 // pred_check_branch
      %29 = sbr.rel (0) target = $region17
    $region16: #{transformer_forward.7} parent=1 // pred_region
      %31 = vsyncadd [#allocation6], 0
      %s32 = sshll.u32 %s3, 4
      %s33 = int_to_ptr.hbm [resolvable:$true] %s32
      %s34 = sshll.u32 [#allocation5], 4
      %s35 = int_to_ptr.vmem [resolvable:$true] %s34
      %40 = dma.hbm_to_vmem [thread:$0]  %s33, 256, %s35, [#allocation6], 128, 128, 8
    $region17: #{transformer_forward.7} parent=1 // pred_fallthru
      _
    // Predicated region
    $region18: #{transformer_forward.7} parent=1 // pred_check
      _
    $region19: #{transformer_forward.7} parent=1 // pred_check_branch
      %42 = sbr.rel (0) target = $region21
    $region20: #{transformer_forward.7} parent=1 // pred_region
      %44 = dma.done [#allocation4], 1024
    $region21: #{transformer_forward.7} parent=1 // pred_fallthru
      _
    // Predicated region
    $region22: #{transformer_forward.7} parent=1 // pred_check
      _
    $region23: #{transformer_forward.7} parent=1 // pred_check_branch
      %46 = sbr.rel (0) target = $region25
    $region24: #{transformer_forward.7} parent=1 // pred_region
      %48 = dma.done [#allocation6], 256
    $region25: #{transformer_forward.7} parent=1 // pred_fallthru
      _
    %p49 = scmp.eq.s32.totalorder 0, 0
    // Predicated region
    $region26: #{transformer_forward.7} parent=1 // pred_check
      %p50 = pneg %p49
    $region27: #{transformer_forward.7} parent=1 // pred_check_branch
      %52 = sbr.rel (%p50) target = $region29
    $region28: #{transformer_forward.7} parent=1 // pred_region
      %53 = vst [vmem:[#allocation2] sm:$0xff] 0.0
      %54 = vst [vmem:[#allocation2 + $0x8] sm:$0xff] 0.0
    $region29: #{transformer_forward.7} parent=1 // pred_fallthru
      _
    %v55 = vld [vmem:[%s0] sm:$0xf]
    %v56 = vld [vmem:[%s0 + $0x4] sm:$0xf]
    %v57 = vld [vmem:[#allocation2] sm:$0xff]
    %v58 = vld [vmem:[#allocation2 + $0x8] sm:$0xff]
    %v59 = vld [vmem:[#allocation3] sm:$0xf]
    %v60 = vld [vmem:[#allocation3 + $0x4] sm:$0xf]
    %v61 = vld [vmem:[#allocation3 + $0x8] sm:$0xf]
    %v62 = vld [vmem:[#allocation3 + $0xc] sm:$0xf]
    %v63 = vld [vmem:[#allocation3 + $0x10] sm:$0xf]
    %v64 = vld [vmem:[#allocation3 + $0x14] sm:$0xf]
    %v65 = vld [vmem:[#allocation3 + $0x18] sm:$0xf]
    %v66 = vld [vmem:[#allocation3 + $0x1c] sm:$0xf]
    %v67 = vld [vmem:[#allocation3 + $0x20] sm:$0xf]
    %v68 = vld [vmem:[#allocation3 + $0x24] sm:$0xf]
    %v69 = vld [vmem:[#allocation3 + $0x28] sm:$0xf]
    %v70 = vld [vmem:[#allocation3 + $0x2c] sm:$0xf]
    %v71 = vld [vmem:[#allocation3 + $0x30] sm:$0xf]
    %v72 = vld [vmem:[#allocation3 + $0x34] sm:$0xf]
    %v73 = vld [vmem:[#allocation3 + $0x38] sm:$0xf]
    %v74 = vld [vmem:[#allocation3 + $0x3c] sm:$0xf]
    %v77 = vunpack.c.l.b16 %v55
    %v78 = vunpack.c.l.b16 %v56
    %v79 = vpack.c.b16 %v78, %v77
    %v97 = vunpack.c.l.b16 %v59
    %v98 = vunpack.c.l.b16 %v60
    %v99 = vunpack.c.l.b16 %v61
    %v100 = vunpack.c.l.b16 %v62
    %v101 = vunpack.c.l.b16 %v63
    %v102 = vunpack.c.l.b16 %v64
    %v103 = vunpack.c.l.b16 %v65
    %v104 = vunpack.c.l.b16 %v66
    %v105 = vunpack.c.l.b16 %v67
    %v106 = vunpack.c.l.b16 %v68
    %v107 = vunpack.c.l.b16 %v69
    %v108 = vunpack.c.l.b16 %v70
    %v109 = vunpack.c.l.b16 %v71
    %v110 = vunpack.c.l.b16 %v72
    %v111 = vunpack.c.l.b16 %v73
    %v112 = vunpack.c.l.b16 %v74
    %v113 = vpack.c.b16 %v98, %v97
    %v114 = vpack.c.b16 %v100, %v99
    %v115 = vpack.c.b16 %v102, %v101
    %v116 = vpack.c.b16 %v104, %v103
    %v117 = vpack.c.b16 %v106, %v105
    %v118 = vpack.c.b16 %v108, %v107
    %v119 = vpack.c.b16 %v110, %v109
    %v120 = vpack.c.b16 %v112, %v111
    %129 = vmatpush.bf16.msra.mxu0 %v120
    %130 = vmatpush.bf16.msra.mxu0 %v119
    %131 = vmatpush.bf16.msra.mxu0 %v118
    %132 = vmatpush.bf16.msra.mxu0 %v117
    %133 = vmatpush.bf16.msra.mxu0 %v116
    %134 = vmatpush.bf16.msra.mxu0 %v115
    %135 = vmatpush.bf16.msra.mxu0 %v114
    %136 = vmatpush.bf16.msra.mxu0 %v113
    %137 = vmatmul.bf16.gmra.mxu0 %v79
    %v138 = vpop.f32.mrf.mxu0
    %v139 = vadd.f32 0.0, %v138
    %v140 = vpop.f32.mrf.mxu0
    %v141 = vadd.f32 0.0, %v140
    %142 = vdwg.mxu0
    %v143 = vadd.f32 %v57, %v139
    %v144 = vadd.f32 %v58, %v141
    %145 = vst [vmem:[#allocation2] sm:$0xff] %v143
    %146 = vst [vmem:[#allocation2 + $0x8] sm:$0xff] %v144
    // Predicated region
    $region30: #{transformer_forward.7} parent=1 // pred_check
      %p147 = pneg %p49
    $region31: #{transformer_forward.7} parent=1 // pred_check_branch
      %149 = sbr.rel (%p147) target = $region33
    $region32: #{transformer_forward.7} parent=1 // pred_region
      %v150 = vld [vmem:[#allocation2] sm:$0xff]
      %v151 = vld [vmem:[#allocation2 + $0x8] sm:$0xff]
      %v152 = vld [vmem:[%s2] sm:$0x1]
      %v154 = vperm.slane %v152, 0
      %v156 = vadd.f32 %v150, %v154
      %v157 = vadd.f32 %v151, %v154
      %v158 = vld [vmem:[#allocation5] sm:$0xff]
      %v159 = vld [vmem:[#allocation5 + $0x8] sm:$0xff]
      %v160 = vadd.f32 %v156, %v158
      %v161 = vadd.f32 %v157, %v159
      %162 = vst [vmem:[%s4] sm:$0xff] %v160
      %163 = vst [vmem:[%s4 + $0x8] sm:$0xff] %v161
    $region33: #{transformer_forward.7} parent=1 // pred_fallthru
      _
    // Predicated region
    $region34: #{transformer_forward.7} parent=1 // pred_check
      _
    $region35: #{transformer_forward.7} parent=1 // pred_check_branch
      %165 = sbr.rel (0) target = $region37
    $region36: #{transformer_forward.7} parent=1 // pred_region
      _
    $region37: #{transformer_forward.7} parent=1 // pred_fallthru
      _
    // Predicated region
    $region38: #{transformer_forward.7} parent=1 // pred_check
      _
    $region39: #{transformer_forward.7} parent=1 // pred_check_branch
      %167 = sbr.rel (0) target = $region41
    $region40: #{transformer_forward.7} parent=1 // pred_region
      _
    $region41: #{transformer_forward.7} parent=1 // pred_fallthru
      _
    %168 = vsyncpa [#allocation4], 1
    %169 = vsyncpa [#allocation6], 1

// kernel: transformer_forward.6
$region0: #{transformer_forward.6}
  #allocation0 [shape = 'u32[]', space=smem, size = 0x4, offset = 0x4, fixed_abs, tag = 'smem constant byte address 0x4 - core index']
  #allocation1 [shape = 'u32[72,128]{1,0:T(1,128)}', space=vmem, size = 0x9000, scoped, tag = 'internal scratch']
  #allocation2 [shape = 'f32[8,4]{1,0:T(8,128)}', space=vmem, size = 0x1000, scoped, tag = 'scratch operand']
  #allocation3 [shape = 'f32[8,4]{1,0:T(8,128)}', space=vmem, size = 0x1000, scoped, tag = 'scratch operand']
  #allocation4 [shape = 'f32[8,128]{1,0:T(8,128)}', space=vmem, size = 0x1000, scoped, tag = 'scratch operand']
  %s0 = inlined_call_operand.vmem [shape: bf16[2,8,384], index: 0, kind: input, shape index: {}, may-alias: {0,1,2}]
  %s1 = inlined_call_operand.vmem [shape: bf16[2,8,384], index: 1, kind: input, shape index: {}, may-alias: {0,1,2}]
  %s2 = inlined_call_operand.vmem [shape: bf16[2,8,384], index: 2, kind: input, shape index: {}, may-alias: {0,1,2}]
  %s3 = inlined_call_operand.vmem [shape: bf16[2,8,128], index: 3, kind: output, shape index: {}]
  %s4 = sld [smem:[#allocation0]]
  $region53: #{transformer_forward.6} parent=0
    _
  %s6 = ssub.s32 1, %s4
  %s7 = scalar_select 0, %s6, %s4
  loop: start=0, step=1, limit=4
  $region2: #{transformer_forward.6} parent=0 // loop_pre_header
    _
  $region3: #{transformer_forward.6} parent=0 // loop_header
    %s9 = sphi 0, %s13
    %p10 = scmp.ge.s32.totalorder %s9, 4
    %s16 = sphi 0, %s35
    %s17 = sphi 0, %s31
    %s18 = sphi 0, %s27
    %s19 = sphi 0, %s16
    %s20 = sphi 0, %s17
    %s21 = sphi 0, %s18
    %s22 = sphi 0, %s19
    %s23 = sphi 0, %s20
    %s24 = sphi 0, %s21
    %s40 = sphi 0, %s42
    %s43 = sphi 0, %s40
    %s44 = sphi 0, %s43
    %s60 = sphi 0, %s44
    %s68 = sphi 0, %s70
    %s71 = sphi 0, %s68
    %s72 = sphi 0, %s71
    %s88 = sphi 0, %s72
    %s96 = sphi 0, %s98
    %s99 = sphi 0, %s96
    %s100 = sphi 0, %s99
    %s116 = sphi 0, %s100
    %s124 = sphi 0, %s126
    %s127 = sphi 0, %s124
    %s128 = sphi 0, %s127
    %s144 = sphi 0, %s128
  $region4: #{transformer_forward.6} parent=0 // loop_header_branch
    %12 = sbr.rel (%p10) target = $region8
  $region5: #{transformer_forward.6} parent=0 // loop_body
    %s14 = ssub.s32 %s9, 1
    %s15 = ssub.s32 %s9, 2
    %s25 = sadd.s32 1, %s18
    %p26 = scmp.ge.s32.totalorder %s25, 1
    %s27 = scalar_select %p26, 0, %s25
    %s28 = sadd.s32 1, %s17
    %s29 = scalar_select %p26, %s28, %s17
    %p30 = scmp.ge.s32.totalorder %s29, 1
    %s31 = scalar_select %p30, 0, %s29
    %s32 = sadd.s32 1, %s16
    %s33 = scalar_select %p30, %s32, %s16
    %p34 = scmp.ge.s32.totalorder %s33, 2
    %s35 = scalar_select %p34, 0, %s33
    %s36 = ssub.s32 %s16, %s35
    %s37 = ssub.s32 %s17, %s31
    %s38 = sor.u32 %s36, %s37
    %p39 = scmp.eq.s32.totalorder %s38, 0
    %s41 = sadd.s32 %s40, 1
    %s42 = scalar_select %p39, %s40, %s41
    %p45 = pneg %p39
    %p46 = scmp.eq.s32.totalorder %s9, 1
    %p47 = por %p45, %p46
    %p48 = scmp.ne.s32.totalorder %s40, %s43
    %p49 = scmp.eq.s32.totalorder %s9, 0
    %p50 = por %p48, %p49
    %p51 = scmp.ne.s32.totalorder %s40, %s43
    %p52 = scmp.eq.s32.totalorder %s14, 1
    %p53 = por %p51, %p52
    %p54 = scmp.ne.s32.totalorder %s43, %s44
    %p55 = scmp.eq.s32.totalorder %s14, 0
    %p56 = por %p54, %p55
    %p57 = scmp.ne.s32.totalorder %s43, %s44
    %p58 = scmp.eq.s32.totalorder %s15, 1
    %p59 = por %p57, %p58
    %p61 = scmp.ne.s32.totalorder %s44, %s60
    %p62 = scmp.eq.s32.totalorder %s15, 0
    %p63 = por %p61, %p62
    %s64 = ssub.s32 %s16, %s35
    %s65 = ssub.s32 %s18, %s27
    %s66 = sor.u32 %s64, %s65
    %p67 = scmp.eq.s32.totalorder %s66, 0
    %s69 = sadd.s32 %s68, 1
    %s70 = scalar_select %p67, %s68, %s69
    %p73 = pneg %p67
    %p74 = scmp.eq.s32.totalorder %s9, 1
    %p75 = por %p73, %p74
    %p76 = scmp.ne.s32.totalorder %s68, %s71
    %p77 = scmp.eq.s32.totalorder %s9, 0
    %p78 = por %p76, %p77
    %p79 = scmp.ne.s32.totalorder %s68, %s71
    %p80 = scmp.eq.s32.totalorder %s14, 1
    %p81 = por %p79, %p80
    %p82 = scmp.ne.s32.totalorder %s71, %s72
    %p83 = scmp.eq.s32.totalorder %s14, 0
    %p84 = por %p82, %p83
    %p85 = scmp.ne.s32.totalorder %s71, %s72
    %p86 = scmp.eq.s32.totalorder %s15, 1
    %p87 = por %p85, %p86
    %p89 = scmp.ne.s32.totalorder %s72, %s88
    %p90 = scmp.eq.s32.totalorder %s15, 0
    %p91 = por %p89, %p90
    %s92 = ssub.s32 %s16, %s35
    %s93 = ssub.s32 %s18, %s27
    %s94 = sor.u32 %s92, %s93
    %p95 = scmp.eq.s32.totalorder %s94, 0
    %s97 = sadd.s32 %s96, 1
    %s98 = scalar_select %p95, %s96, %s97
    %p101 = pneg %p95
    %p102 = scmp.eq.s32.totalorder %s9, 1
    %p103 = por %p101, %p102
    %p104 = scmp.ne.s32.totalorder %s96, %s99
    %p105 = scmp.eq.s32.totalorder %s9, 0
    %p106 = por %p104, %p105
    %p107 = scmp.ne.s32.totalorder %s96, %s99
    %p108 = scmp.eq.s32.totalorder %s14, 1
    %p109 = por %p107, %p108
    %p110 = scmp.ne.s32.totalorder %s99, %s100
    %p111 = scmp.eq.s32.totalorder %s14, 0
    %p112 = por %p110, %p111
    %p113 = scmp.ne.s32.totalorder %s99, %s100
    %p114 = scmp.eq.s32.totalorder %s15, 1
    %p115 = por %p113, %p114
    %p117 = scmp.ne.s32.totalorder %s100, %s116
    %p118 = scmp.eq.s32.totalorder %s15, 0
    %p119 = por %p117, %p118
    %s120 = ssub.s32 %s16, %s35
    %s121 = ssub.s32 %s17, %s31
    %s122 = sor.u32 %s120, %s121
    %p123 = scmp.eq.s32.totalorder %s122, 0
    %s125 = sadd.s32 %s124, 1
    %s126 = scalar_select %p123, %s124, %s125
    %p129 = pneg %p123
    %p130 = scmp.eq.s32.totalorder %s9, 1
    %p131 = por %p129, %p130
    %p132 = scmp.ne.s32.totalorder %s124, %s127
    %p133 = scmp.eq.s32.totalorder %s9, 0
    %p134 = por %p132, %p133
    %p135 = scmp.ne.s32.totalorder %s124, %s127
    %p136 = scmp.eq.s32.totalorder %s14, 1
    %p137 = por %p135, %p136
    %p138 = scmp.ne.s32.totalorder %s127, %s128
    %p139 = scmp.eq.s32.totalorder %s14, 0
    %p140 = por %p138, %p139
    %p141 = scmp.ne.s32.totalorder %s127, %s128
    %p142 = scmp.eq.s32.totalorder %s15, 1
    %p143 = por %p141, %p142
    %p145 = scmp.ne.s32.totalorder %s128, %s144
    %p146 = scmp.eq.s32.totalorder %s15, 0
    %p147 = por %p145, %p146
    %p148 = scmp.le.s32.totalorder 1, %s9
    %p149 = scmp.lt.s32.totalorder %s9, 3
    %p150 = pnand %p148, %p149
    %p151 = pneg %p150
    // Predicated region
    $region9: #{transformer_forward.6} parent=5 // pred_check
      _
    $region10: #{transformer_forward.6} parent=5 // pred_check_branch
      %153 = sbr.rel (%p150) target = $region12
    $region11: #{transformer_forward.6} parent=5 // pred_region
      %s154 = ssub.s32 %s9, 1
    $region12: #{transformer_forward.6} parent=5 // pred_fallthru
      _
    %p155 = scmp.lt.s32.totalorder %s9, 2
    // Predicated region
    $region13: #{transformer_forward.6} parent=5 // pred_check
      %p156 = pneg %p155
    $region14: #{transformer_forward.6} parent=5 // pred_check_branch
      %158 = sbr.rel (%p156) target = $region16
    $region15: #{transformer_forward.6} parent=5 // pred_region
      // Predicated region
      $region17: #{transformer_forward.6} parent=15 // pred_check
        %p159 = pneg %p50
      $region18: #{transformer_forward.6} parent=15 // pred_check_branch
        %161 = sbr.rel (%p159) target = $region20
      $region19: #{transformer_forward.6} parent=15 // pred_region
        %p162 = scmp.lt.s32.totalorder %s16, 1
        %s163 = scalar_select %p162, %s16, 1
        %p164 = scmp.lt.s32.totalorder %s17, 0
        %s165 = scalar_select %p164, %s17, 0
        %s166 = smul.addr %s165, 3
        %s167 = smul.addr %s163, 3
        %s168 = sadd.s32 %s166, %s167
        %s169 = smul.addr %s168, 4
        %s170 = scalar_lea.vmem %s0, %s169
      $region20: #{transformer_forward.6} parent=15 // pred_fallthru
        _
      // Predicated region
      $region21: #{transformer_forward.6} parent=15 // pred_check
        %p171 = pneg %p78
      $region22: #{transformer_forward.6} parent=15 // pred_check_branch
        %173 = sbr.rel (%p171) target = $region24
      $region23: #{transformer_forward.6} parent=15 // pred_region
        %p174 = scmp.lt.s32.totalorder %s16, 1
        %s175 = scalar_select %p174, %s16, 1
        %p176 = scmp.lt.s32.totalorder %s18, 0
        %s177 = scalar_select %p176, %s18, 0
        %s178 = smul.addr %s177, 3
        %s179 = sadd.s32 1, %s178
        %s180 = smul.addr %s175, 3
        %s181 = sadd.s32 %s179, %s180
        %s182 = smul.addr %s181, 4
        %s183 = scalar_lea.vmem %s1, %s182
      $region24: #{transformer_forward.6} parent=15 // pred_fallthru
        _
      // Predicated region
      $region25: #{transformer_forward.6} parent=15 // pred_check
        %p184 = pneg %p106
      $region26: #{transformer_forward.6} parent=15 // pred_check_branch
        %186 = sbr.rel (%p184) target = $region28
      $region27: #{transformer_forward.6} parent=15 // pred_region
        %p187 = scmp.lt.s32.totalorder %s16, 1
        %s188 = scalar_select %p187, %s16, 1
        %p189 = scmp.lt.s32.totalorder %s18, 0
        %s190 = scalar_select %p189, %s18, 0
        %s191 = smul.addr %s190, 3
        %s192 = sadd.s32 2, %s191
        %s193 = smul.addr %s188, 3
        %s194 = sadd.s32 %s192, %s193
        %s195 = smul.addr %s194, 4
        %s196 = scalar_lea.vmem %s2, %s195
      $region28: #{transformer_forward.6} parent=15 // pred_fallthru
        _
    $region16: #{transformer_forward.6} parent=5 // pred_fallthru
      _
    %p197 = scmp.le.s32.totalorder 1, %s9
    %p198 = scmp.lt.s32.totalorder %s9, 3
    %p199 = pnand %p197, %p198
    %p200 = pneg %p199
    // Predicated region
    $region29: #{transformer_forward.6} parent=5 // pred_check
      _
    $region30: #{transformer_forward.6} parent=5 // pred_check_branch
      %202 = sbr.rel (%p199) target = $region32
    $region31: #{transformer_forward.6} parent=5 // pred_region
      %s203 = ssub.s32 %s9, 1
      %p204 = scmp.lt.s32.totalorder %s19, 1
      %s205 = scalar_select %p204, %s19, 1
      %p206 = scmp.lt.s32.totalorder %s20, 0
      %s207 = scalar_select %p206, %s20, 0
      %s208 = smul.addr %s207, 3
      %s209 = smul.addr %s205, 3
      %s210 = sadd.s32 %s208, %s209
      %s211 = smul.addr %s210, 4
      %s212 = scalar_lea.vmem %s0, %s211
      %p213 = pneg %p56
      %p214 = pneg %p53
      %p215 = scmp.lt.s32.totalorder %s19, 1
      %s216 = scalar_select %p215, %s19, 1
      %p217 = scmp.lt.s32.totalorder %s21, 0
      %s218 = scalar_select %p217, %s21, 0
      %s219 = smul.addr %s218, 3
      %s220 = sadd.s32 1, %s219
      %s221 = smul.addr %s216, 3
      %s222 = sadd.s32 %s220, %s221
      %s223 = smul.addr %s222, 4
      %s224 = scalar_lea.vmem %s1, %s223
      %p225 = pneg %p84
      %p226 = pneg %p81
      %p227 = scmp.lt.s32.totalorder %s19, 1
      %s228 = scalar_select %p227, %s19, 1
      %p229 = scmp.lt.s32.totalorder %s21, 0
      %s230 = scalar_select %p229, %s21, 0
      %s231 = smul.addr %s230, 3
      %s232 = sadd.s32 2, %s231
      %s233 = smul.addr %s228, 3
      %s234 = sadd.s32 %s232, %s233
      %s235 = smul.addr %s234, 4
      %s236 = scalar_lea.vmem %s2, %s235
      %p237 = pneg %p112
      %p238 = pneg %p109
      %p239 = pneg %p140
      %p240 = pneg %p137
      %p241 = scmp.lt.s32.totalorder %s19, 1
      %s242 = scalar_select %p241, %s19, 1
      %p243 = scmp.lt.s32.totalorder %s20, 0
      %s244 = scalar_select %p243, %s20, 0
      %s245 = sadd.s32 %s244, %s242
      %s246 = smul.addr %s245, 4
      %s247 = scalar_lea.vmem %s3, %s246
      %p248 = scmp.lt.s32.totalorder %s19, 1
      %s249 = scalar_select %p248, %s19, 1
      %p250 = scmp.lt.s32.totalorder %s20, 0
      %s251 = scalar_select %p250, %s20, 0
      %s252 = smul.addr %s251, 3
      %s253 = smul.addr %s249, 3
      %s254 = sadd.s32 %s252, %s253
      %s255 = smul.addr %s254, 4
      %s256 = scalar_lea.vmem %s0, %s255
      %p257 = scmp.lt.s32.totalorder %s19, 1
      %s258 = scalar_select %p257, %s19, 1
      %p259 = scmp.lt.s32.totalorder %s21, 0
      %s260 = scalar_select %p259, %s21, 0
      %s261 = smul.addr %s260, 3
      %s262 = sadd.s32 1, %s261
      %s263 = smul.addr %s258, 3
      %s264 = sadd.s32 %s262, %s263
      %s265 = smul.addr %s264, 4
      %s266 = scalar_lea.vmem %s1, %s265
      %p267 = scmp.lt.s32.totalorder %s19, 1
      %s268 = scalar_select %p267, %s19, 1
      %p269 = scmp.lt.s32.totalorder %s21, 0
      %s270 = scalar_select %p269, %s21, 0
      %s271 = smul.addr %s270, 3
      %s272 = sadd.s32 2, %s271
      %s273 = smul.addr %s268, 3
      %s274 = sadd.s32 %s272, %s273
      %s275 = smul.addr %s274, 4
      %s276 = scalar_lea.vmem %s2, %s275
      %p277 = scmp.lt.s32.totalorder %s19, 1
      %s278 = scalar_select %p277, %s19, 1
      %p279 = scmp.lt.s32.totalorder %s20, 0
      %s280 = scalar_select %p279, %s20, 0
      %s281 = sadd.s32 %s280, %s278
      %s282 = smul.addr %s281, 4
      %s283 = scalar_lea.vmem %s3, %s282
      %p285 = scmp.eq.s32.totalorder %s21, 0
      // Predicated region
      $region33: #{transformer_forward.6} parent=31 // pred_check
        %p286 = pneg %p285
      $region34: #{transformer_forward.6} parent=31 // pred_check_branch
        %288 = sbr.rel (%p286) target = $region36
      $region35: #{transformer_forward.6} parent=31 // pred_region
        %vm289 = vcmask 31744
        %290 = vst.msk [vmem:[#allocation2] sm:$0xff] %vm289, -inf
        %291 = vst.msk [vmem:[#allocation3] sm:$0xff] %vm289, 0.0
        %292 = vst [vmem:[#allocation4] sm:$0xff] 0.0
      $region36: #{transformer_forward.6} parent=31 // pred_fallthru
        _
      %v293 = vld [vmem:[%s256] sm:$0xf]
      %v294 = vld [vmem:[%s266] sm:$0xf]
      %v295 = vld [vmem:[%s276] sm:$0xf]
      %vm296 = vcmask 261120
      %v298 = vsel %vm296, %v293, 0
      %v301 = vsel %vm296, %v294, 0
      %303 = vmatpush.bf16.xpose.msra.mxu0 0
      %304 = vmatpush.bf16.xpose.msra.mxu0 0
      %305 = vmatpush.bf16.xpose.msra.mxu0 0
      %306 = vmatpush.bf16.xpose.msra.mxu0 0
      %307 = vmatpush.bf16.xpose.msra.mxu0 0
      %308 = vmatpush.bf16.xpose.msra.mxu0 0
      %309 = vmatpush.bf16.xpose.msra.mxu0 0
      %310 = vmatpush.bf16.xpose.msra.mxu0 %v301
      %311 = vmatmul.bf16.gmra.mxu0 %v298
      %v312 = vpop.f32.mrf.mxu0
      %v313 = vadd.f32 0.0, %v312
      %v314 = vpop.f32.mrf.mxu0
      %315 = vdwg.mxu0
      %v316 = vld [vmem:[#allocation2] sm:$0xff]
      %vm317 = vcmask 64512
      %v318 = vsel %vm317, %v313, -inf
      %319 = vmax.xlane.f32.xlu0 %v318
      %v320 = vpop.xlane.xlu0 %319
      %v321 = vmax.f32 %v316, %v320
      %v322 = vsub.f32 %v316, %v321
      %v323 = vmul.f32 %v322, 1.442695
      %v324 = vpow.pop %v323
      %326 = vset.pattern.permute.xlu0 0
      %327 = vperm.xlu0 %326, %v321
      %v328 = vpop.permute.xlu0 %327
      %v330 = vsub.f32 %v313, %v328
      %v331 = vmul.f32 %v330, 1.442695
      %v332 = vpow.pop %v331
      %v333 = vld [vmem:[#allocation3] sm:$0xff]
      %v334 = vmul.f32 %v324, %v333
      %v335 = vsel %vm317, %v332, 0.0
      %336 = vadd.xlane.f32.xlu0 %v335
      %v337 = vpop.xlane.xlu0 %336
      %v338 = vadd.f32 %v334, %v337
      %vm339 = vcmask 7168
      %340 = vst.msk [vmem:[#allocation3] sm:$0xff] %vm339, %v338
      %341 = vst.msk [vmem:[#allocation2] sm:$0xff] %vm339, %v321
      %v342 = vpack.c.bf16 %v332, %v332
      %v344 = vsel %vm317, %v342, 0
      %vm346 = vcmask 1043456
      %v348 = vsel %vm346, %v295, 0
      %350 = vmatpush.bf16.msra.mxu0 0
      %351 = vmatpush.bf16.msra.mxu0 0
      %352 = vmatpush.bf16.msra.mxu0 0
      %353 = vmatpush.bf16.msra.mxu0 0
      %354 = vmatpush.bf16.msra.mxu0 0
      %355 = vmatpush.bf16.msra.mxu0 0
      %356 = vmatpush.bf16.msra.mxu0 0
      %357 = vmatpush.bf16.msra.mxu0 %v348
      %358 = vmatmul.bf16.gmra.mxu0 %v344
      %v359 = vpop.f32.mrf.mxu0
      %v360 = vadd.f32 0.0, %v359
      %v361 = vpop.f32.mrf.mxu0
      %362 = vdwg.mxu0
      %364 = vset.pattern.permute.xlu0 0
      %365 = vperm.xlu0 %364, %v324
      %v366 = vpop.permute.xlu0 %365
      %v369 = vunpack.c.l.b16 %v293
      %v370 = vpack.c.b16 %v369, %v369
      %371 = vrot.lane.b32.xlu0 %v370, 96
      %v372 = vpop.permute.xlu0 %371
      %v374 = vunpack.c.l.b16 %v294
      %v375 = vpack.c.b16 %v374, %v374
      %376 = vrot.lane.b32.xlu0 %v375, 96
      %v377 = vpop.permute.xlu0 %376
      %v379 = vsel %vm296, %v372, 0
      %v382 = vsel %vm296, %v377, 0
      %384 = vmatpush.bf16.xpose.msra.mxu0 0
      %385 = vmatpush.bf16.xpose.msra.mxu0 0
      %386 = vmatpush.bf16.xpose.msra.mxu0 0
      %387 = vmatpush.bf16.xpose.msra.mxu0 0
      %388 = vmatpush.bf16.xpose.msra.mxu0 0
      %389 = vmatpush.bf16.xpose.msra.mxu0 0
      %390 = vmatpush.bf16.xpose.msra.mxu0 0
      %391 = vmatpush.bf16.xpose.msra.mxu0 %v382
      %392 = vmatmul.bf16.gmra.mxu0 %v379
      %v393 = vpop.f32.mrf.mxu0
      %v394 = vadd.f32 0.0, %v393
      %v395 = vpop.f32.mrf.mxu0
      %396 = vdwg.mxu0
      %v397 = vld [vmem:[#allocation2] sm:$0xff]
      %v398 = vsel %vm317, %v394, -inf
      %399 = vmax.xlane.f32.xlu0 %v398
      %v400 = vpop.xlane.xlu0 %399
      %v401 = vmax.f32 %v397, %v400
      %v402 = vsub.f32 %v397, %v401
      %v403 = vmul.f32 %v402, 1.442695
      %v404 = vpow.pop %v403
      %406 = vset.pattern.permute.xlu0 1
      %407 = vperm.xlu0 %406, %v401
      %v408 = vpop.permute.xlu0 %407
      %v410 = vsub.f32 %v394, %v408
      %v411 = vmul.f32 %v410, 1.442695
      %v412 = vpow.pop %v411
      %v413 = vld [vmem:[#allocation3] sm:$0xff]
      %v414 = vmul.f32 %v404, %v413
      %v415 = vsel %vm317, %v412, 0.0
      %416 = vadd.xlane.f32.xlu0 %v415
      %v417 = vpop.xlane.xlu0 %416
      %v418 = vadd.f32 %v414, %v417
      %vm419 = vcmask 15368
      %420 = vst.msk [vmem:[#allocation3] sm:$0xff] %vm419, %v418
      %421 = vst.msk [vmem:[#allocation2] sm:$0xff] %vm419, %v401
      %v422 = vpack.c.bf16 %v412, %v412
      %v424 = vunpack.c.l.b16 %v295
      %v425 = vpack.c.b16 %v424, %v424
      %426 = vrot.lane.b32.xlu0 %v425, 96
      %v427 = vpop.permute.xlu0 %426
      %v429 = vsel %vm317, %v422, 0
      %v432 = vsel %vm346, %v427, 0
      %434 = vmatpush.bf16.msra.mxu0 0
      %435 = vmatpush.bf16.msra.mxu0 0
      %436 = vmatpush.bf16.msra.mxu0 0
      %437 = vmatpush.bf16.msra.mxu0 0
      %438 = vmatpush.bf16.msra.mxu0 0
      %439 = vmatpush.bf16.msra.mxu0 0
      %440 = vmatpush.bf16.msra.mxu0 0
      %441 = vmatpush.bf16.msra.mxu0 %v432
      %442 = vmatmul.bf16.gmra.mxu0 %v429
      %v443 = vpop.f32.mrf.mxu0
      %v444 = vadd.f32 0.0, %v443
      %v445 = vpop.f32.mrf.mxu0
      %446 = vdwg.mxu0
      %448 = vset.pattern.permute.xlu0 1
      %449 = vperm.xlu0 %448, %v404
      %v450 = vpop.permute.xlu0 %449
      %452 = vrot.lane.b32.xlu0 %v370, 64
      %v453 = vpop.permute.xlu0 %452
      %454 = vrot.lane.b32.xlu0 %v375, 64
      %v455 = vpop.permute.xlu0 %454
      %v457 = vsel %vm296, %v453, 0
      %v460 = vsel %vm296, %v455, 0
      %462 = vmatpush.bf16.xpose.msra.mxu0 0
      %463 = vmatpush.bf16.xpose.msra.mxu0 0
      %464 = vmatpush.bf16.xpose.msra.mxu0 0
      %465 = vmatpush.bf16.xpose.msra.mxu0 0
      %466 = vmatpush.bf16.xpose.msra.mxu0 0
      %467 = vmatpush.bf16.xpose.msra.mxu0 0
      %468 = vmatpush.bf16.xpose.msra.mxu0 0
      %469 = vmatpush.bf16.xpose.msra.mxu0 %v460
      %470 = vmatmul.bf16.gmra.mxu0 %v457
      %v471 = vpop.f32.mrf.mxu0
      %v472 = vadd.f32 0.0, %v471
      %v473 = vpop.f32.mrf.mxu0
      %474 = vdwg.mxu0
      %v475 = vld [vmem:[#allocation2] sm:$0xff]
      %v476 = vsel %vm317, %v472, -inf
      %477 = vmax.xlane.f32.xlu0 %v476
      %v478 = vpop.xlane.xlu0 %477
      %v479 = vmax.f32 %v475, %v478
      %v480 = vsub.f32 %v475, %v479
      %v481 = vmul.f32 %v480, 1.442695
      %v482 = vpow.pop %v481
      %484 = vset.pattern.permute.xlu0 2
      %485 = vperm.xlu0 %484, %v479
      %v486 = vpop.permute.xlu0 %485
      %v488 = vsub.f32 %v472, %v486
      %v489 = vmul.f32 %v488, 1.442695
      %v490 = vpow.pop %v489
      %v491 = vld [vmem:[#allocation3] sm:$0xff]
      %v492 = vmul.f32 %v482, %v491
      %v493 = vsel %vm317, %v490, 0.0
      %494 = vadd.xlane.f32.xlu0 %v493
      %v495 = vpop.xlane.xlu0 %494
      %v496 = vadd.f32 %v492, %v495
      %vm497 = vcmask 23568
      %498 = vst.msk [vmem:[#allocation3] sm:$0xff] %vm497, %v496
      %499 = vst.msk [vmem:[#allocation2] sm:$0xff] %vm497, %v479
      %v500 = vpack.c.bf16 %v490, %v490
      %501 = vrot.lane.b32.xlu0 %v425, 64
      %v502 = vpop.permute.xlu0 %501
      %v504 = vsel %vm317, %v500, 0
      %v507 = vsel %vm346, %v502, 0
      %509 = vmatpush.bf16.msra.mxu0 0
      %510 = vmatpush.bf16.msra.mxu0 0
      %511 = vmatpush.bf16.msra.mxu0 0
      %512 = vmatpush.bf16.msra.mxu0 0
      %513 = vmatpush.bf16.msra.mxu0 0
      %514 = vmatpush.bf16.msra.mxu0 0
      %515 = vmatpush.bf16.msra.mxu0 0
      %516 = vmatpush.bf16.msra.mxu0 %v507
      %517 = vmatmul.bf16.gmra.mxu0 %v504
      %v518 = vpop.f32.mrf.mxu0
      %v519 = vadd.f32 0.0, %v518
      %v520 = vpop.f32.mrf.mxu0
      %521 = vdwg.mxu0
      %523 = vset.pattern.permute.xlu0 2
      %524 = vperm.xlu0 %523, %v482
      %v525 = vpop.permute.xlu0 %524
      %527 = vrot.lane.b32.xlu0 %v370, 32
      %v528 = vpop.permute.xlu0 %527
      %529 = vrot.lane.b32.xlu0 %v375, 32
      %v530 = vpop.permute.xlu0 %529
      %v532 = vsel %vm296, %v528, 0
      %v535 = vsel %vm296, %v530, 0
      %537 = vmatpush.bf16.xpose.msra.mxu0 0
      %538 = vmatpush.bf16.xpose.msra.mxu0 0
      %539 = vmatpush.bf16.xpose.msra.mxu0 0
      %540 = vmatpush.bf16.xpose.msra.mxu0 0
      %541 = vmatpush.bf16.xpose.msra.mxu0 0
      %542 = vmatpush.bf16.xpose.msra.mxu0 0
      %543 = vmatpush.bf16.xpose.msra.mxu0 0
      %544 = vmatpush.bf16.xpose.msra.mxu0 %v535
      %545 = vmatmul.bf16.gmra.mxu0 %v532
      %v546 = vpop.f32.mrf.mxu0
      %v547 = vadd.f32 0.0, %v546
      %v548 = vpop.f32.mrf.mxu0
      %549 = vdwg.mxu0
      %v550 = vld [vmem:[#allocation2] sm:$0xff]
      %v551 = vsel %vm317, %v547, -inf
      %552 = vmax.xlane.f32.xlu0 %v551
      %v553 = vpop.xlane.xlu0 %552
      %v554 = vmax.f32 %v550, %v553
      %v555 = vsub.f32 %v550, %v554
      %v556 = vmul.f32 %v555, 1.442695
      %v557 = vpow.pop %v556
      %559 = vset.pattern.permute.xlu0 3
      %560 = vperm.xlu0 %559, %v554
      %v561 = vpop.permute.xlu0 %560
      %v563 = vsub.f32 %v547, %v561
      %v564 = vmul.f32 %v563, 1.442695
      %v565 = vpow.pop %v564
      %v566 = vld [vmem:[#allocation3] sm:$0xff]
      %v567 = vmul.f32 %v557, %v566
      %v568 = vsel %vm317, %v565, 0.0
      %569 = vadd.xlane.f32.xlu0 %v568
      %v570 = vpop.xlane.xlu0 %569
      %v571 = vadd.f32 %v567, %v570
      %vm572 = vcmask 31768
      %573 = vst.msk [vmem:[#allocation3] sm:$0xff] %vm572, %v571
      %574 = vst.msk [vmem:[#allocation2] sm:$0xff] %vm572, %v554
      %v575 = vpack.c.bf16 %v565, %v565
      %576 = vrot.lane.b32.xlu0 %v425, 32
      %v577 = vpop.permute.xlu0 %576
      %v579 = vsel %vm317, %v575, 0
      %v582 = vsel %vm346, %v577, 0
      %584 = vmatpush.bf16.msra.mxu0 0
      %585 = vmatpush.bf16.msra.mxu0 0
      %586 = vmatpush.bf16.msra.mxu0 0
      %587 = vmatpush.bf16.msra.mxu0 0
      %588 = vmatpush.bf16.msra.mxu0 0
      %589 = vmatpush.bf16.msra.mxu0 0
      %590 = vmatpush.bf16.msra.mxu0 0
      %591 = vmatpush.bf16.msra.mxu0 %v582
      %592 = vmatmul.bf16.gmra.mxu0 %v579
      %v593 = vpop.f32.mrf.mxu0
      %v594 = vadd.f32 0.0, %v593
      %v595 = vpop.f32.mrf.mxu0
      %596 = vdwg.mxu0
      %598 = vset.pattern.permute.xlu0 3
      %599 = vperm.xlu0 %598, %v557
      %v600 = vpop.permute.xlu0 %599
      %603 = vrot.lane.b32.xlu0 %v444, 32
      %v604 = vpop.permute.xlu0 %603
      %607 = vrot.lane.b32.xlu0 %v519, 64
      %v608 = vpop.permute.xlu0 %607
      %611 = vrot.lane.b32.xlu0 %v594, 96
      %v612 = vpop.permute.xlu0 %611
      %v614 = vsel %vm296, %v360, %v604
      %vm615 = vcmask 523264
      %v616 = vsel %vm615, %v614, %v608
      %vm617 = vcmask 785408
      %v618 = vsel %vm617, %v616, %v612
      %v619 = vsel %vm296, %v366, %v450
      %v620 = vsel %vm615, %v619, %v525
      %v621 = vsel %vm617, %v620, %v600
      %v622 = vld [vmem:[#allocation4] sm:$0xff]
      %v623 = vmul.f32 %v621, %v622
      %v624 = vadd.f32 %v623, %v618
      %625 = vst [vmem:[#allocation4] sm:$0xff] %v624
      // Predicated region
      $region37: #{transformer_forward.6} parent=31 // pred_check
        %p626 = pneg %p285
      $region38: #{transformer_forward.6} parent=31 // pred_check_branch
        %628 = sbr.rel (%p626) target = $region40
      $region39: #{transformer_forward.6} parent=31 // pred_region
        %v629 = vld [vmem:[#allocation3] sm:$0xff]
        %v630 = vrcp.pop %v629
        %v631 = vmul.f32 %v629, %v630
        %v632 = vsub.f32 1.0, %v631
        %v633 = vmul.f32 %v630, %v632
        %v634 = vadd.f32 %v630, %v633
        %vm635 = vweird.f32 %v629
        %vm636 = vweird.f32 %v630
        %vm637 = vmor %vm635, %vm636
        %v638 = vsel %vm637, %v630, %v634
        %v639 = vand.u32 2147483647, %v629
        %vm640 = vcmp.eq.f32.partialorder %v639, 8.507059e+37
        %v641 = vand.u32 %v629, 2147483648
        %v642 = vor.u32 1.1754944e-38, %v641
        %v643 = vsel %vm640, %v642, %v638
        %v644 = vmul.f32 1.0, %v643
        %646 = vset.pattern.permute.xlu0 0
        %647 = vperm.xlu0 %646, %v644
        %v648 = vpop.permute.xlu0 %647
        %650 = vset.pattern.permute.xlu0 1
        %651 = vperm.xlu0 %650, %v644
        %v652 = vpop.permute.xlu0 %651
        %654 = vset.pattern.permute.xlu0 2
        %655 = vperm.xlu0 %654, %v644
        %v656 = vpop.permute.xlu0 %655
        %658 = vset.pattern.permute.xlu0 3
        %659 = vperm.xlu0 %658, %v644
        %v660 = vpop.permute.xlu0 %659
        %v662 = vsel %vm296, %v648, %v652
        %v663 = vsel %vm615, %v662, %v656
        %v664 = vsel %vm617, %v663, %v660
        %v665 = vld [vmem:[#allocation4] sm:$0xff]
        %v666 = vmul.f32 %v665, %v664
        %v667 = vpack.c.bf16 %v666, %v666
        %668 = vst [vmem:[%s283] sm:$0xf] %v667
      $region40: #{transformer_forward.6} parent=31 // pred_fallthru
        _
      %p669 = scmp.lt.s32.totalorder %s19, 1
      %s670 = scalar_select %p669, %s19, 1
      %p671 = scmp.lt.s32.totalorder %s20, 0
      %s672 = scalar_select %p671, %s20, 0
      %s673 = sadd.s32 %s672, %s670
      %s674 = smul.addr %s673, 4
      %s675 = scalar_lea.vmem %s3, %s674
      // Predicated region
      $region41: #{transformer_forward.6} parent=31 // pred_check
        %p676 = pneg %p137
      $region42: #{transformer_forward.6} parent=31 // pred_check_branch
        %678 = sbr.rel (%p676) target = $region44
      $region43: #{transformer_forward.6} parent=31 // pred_region
        _
      $region44: #{transformer_forward.6} parent=31 // pred_fallthru
        _
    $region32: #{transformer_forward.6} parent=5 // pred_fallthru
      _
    %p679 = scmp.le.s32.totalorder 2, %s9
    // Predicated region
    $region45: #{transformer_forward.6} parent=5 // pred_check
      %p680 = pneg %p679
    $region46: #{transformer_forward.6} parent=5 // pred_check_branch
      %682 = sbr.rel (%p680) target = $region48
    $region47: #{transformer_forward.6} parent=5 // pred_region
      %s683 = ssub.s32 %s9, 2
      // Predicated region
      $region49: #{transformer_forward.6} parent=47 // pred_check
        %p684 = pneg %p143
      $region50: #{transformer_forward.6} parent=47 // pred_check_branch
        %686 = sbr.rel (%p684) target = $region52
      $region51: #{transformer_forward.6} parent=47 // pred_region
        %p687 = scmp.lt.s32.totalorder %s22, 1
        %s688 = scalar_select %p687, %s22, 1
        %p689 = scmp.lt.s32.totalorder %s23, 0
        %s690 = scalar_select %p689, %s23, 0
        %s691 = sadd.s32 %s690, %s688
        %s692 = smul.addr %s691, 4
        %s693 = scalar_lea.vmem %s3, %s692
      $region52: #{transformer_forward.6} parent=47 // pred_fallthru
        _
    $region48: #{transformer_forward.6} parent=5 // pred_fallthru
      _
  $region6: #{transformer_forward.6} parent=0 // loop_footer
    %s13 = sadd.s32 1, %s9
  $region7: #{transformer_forward.6} parent=0 // loop_footer_branch
    %8 = sbr.rel target = $region3
  $region8: #{transformer_forward.6} parent=0 // loop_exit
    _

// kernel: transformer_forward.5
$region0: #{transformer_forward.5}
  #allocation0 [shape = 'u32[]', space=smem, size = 0x4, offset = 0x4, fixed_abs, tag = 'smem constant byte address 0x4 - core index']
  #allocation1 [shape = 'u32[72,128]{1,0:T(1,128)}', space=vmem, size = 0x9000, scoped, tag = 'internal scratch']
  #allocation2 [shape = 'f32[8,384]{1,0:T(8,128)}', space=vmem, size = 0x3000, scoped, tag = 'scratch operand']
  #allocation3 [shape = 'bf16[8,128]{1,0:T(8,128)(2,1)}', space=vmem, size = 0x800, scoped, tag = 'scratch operand']
  %s0 = inlined_call_operand.hbm [shape: f32[16,128], index: 0, kind: input, shape index: {}]
  %s1 = inlined_call_operand.vmem [shape: f32[1,128], index: 1, kind: input, shape index: {}]
  %s2 = inlined_call_operand.vmem [shape: f32[1,128], index: 2, kind: input, shape index: {}]
  %s3 = inlined_call_operand.hbm [shape: bf16[128,384], index: 3, kind: input, shape index: {}]
  %s4 = inlined_call_operand.vmem [shape: f32[1,384], index: 4, kind: input, shape index: {}]
  %s5 = inlined_call_operand.vmem [shape: bf16[16,384], index: 5, kind: output, shape index: {}]
  %s6 = sld [smem:[#allocation0]]
  $region69: #{transformer_forward.5} parent=0
    _
  %s8 = ssub.s32 1, %s6
  %s9 = scalar_select 0, %s8, %s6
  $region1: #{transformer_forward.5} parent=0
    #allocation4 [shape = 'u8[8192]{0}', space=vmem, size = 0x2000, scoped, tag = 'input window, operand 0']
    #allocation5 [shape = 's32[2]{0}', space=sflag, size = 0x8, scoped, tag = 'scoped memory for transformer_forward.5']
    #allocation6 [shape = 'u8[98304]{0}', space=vmem, size = 0x18000, scoped, tag = 'input window, operand 3, single buffered']
    #allocation7 [shape = 's32[1]{0}', space=sflag, size = 0x4, scoped, tag = 'scoped memory for transformer_forward.5']
    %10 = vsyncpa [#allocation5], 0
    %s11 = scalar_lea.sflag [#allocation5], 1
    %12 = vsyncpa %s11, 0
    %13 = vsyncpa [#allocation7], 0
    loop: start=0, step=1, limit=4
    $region2: #{transformer_forward.5} parent=1 // loop_pre_header
      _
    $region3: #{transformer_forward.5} parent=1 // loop_header
      %s15 = sphi 0, %s19
      %p16 = scmp.ge.s32.totalorder %s15, 4
      %s22 = sphi 0, %s41
      %s23 = sphi 0, %s37
      %s24 = sphi 0, %s33
      %s25 = sphi 0, %s22
      %s26 = sphi 0, %s23
      %s27 = sphi 0, %s24
      %s28 = sphi 0, %s25
      %s29 = sphi 0, %s26
      %s30 = sphi 0, %s27
      %s44 = sphi 0, %s46
      %s47 = sphi 0, %s44
      %s48 = sphi 0, %s47
      %s64 = sphi 0, %s48
      %s68 = sphi 0, %s68
      %s70 = sphi 0, %s68
      %s71 = sphi 0, %s70
      %s85 = sphi 0, %s71
      %s89 = sphi 0, %s89
      %s91 = sphi 0, %s89
      %s92 = sphi 0, %s91
      %s106 = sphi 0, %s92
      %s114 = sphi 0, %s116
      %s117 = sphi 0, %s114
      %s118 = sphi 0, %s117
      %s134 = sphi 0, %s118
      %s140 = sphi 0, %s142
      %s143 = sphi 0, %s140
      %s144 = sphi 0, %s143
      %s160 = sphi 0, %s144
      %s168 = sphi 0, %s170
      %s171 = sphi 0, %s168
      %s172 = sphi 0, %s171
      %s188 = sphi 0, %s172
    $region4: #{transformer_forward.5} parent=1 // loop_header_branch
      %18 = sbr.rel (%p16) target = $region8
    $region5: #{transformer_forward.5} parent=1 // loop_body
      %s20 = ssub.s32 %s15, 1
      %s21 = ssub.s32 %s15, 2
      %s31 = sadd.s32 1, %s24
      %p32 = scmp.ge.s32.totalorder %s31, 1
      %s33 = scalar_select %p32, 0, %s31
      %s34 = sadd.s32 1, %s23
      %s35 = scalar_select %p32, %s34, %s23
      %p36 = scmp.ge.s32.totalorder %s35, 1
      %s37 = scalar_select %p36, 0, %s35
      %s38 = sadd.s32 1, %s22
      %s39 = scalar_select %p36, %s38, %s22
      %p40 = scmp.ge.s32.totalorder %s39, 2
      %s41 = scalar_select %p40, 0, %s39
      %s42 = ssub.s32 %s22, %s41
      %p43 = scmp.eq.s32.totalorder %s42, 0
      %s45 = sadd.s32 %s44, 1
      %s46 = scalar_select %p43, %s44, %s45
      %p49 = pneg %p43
      %p50 = scmp.eq.s32.totalorder %s15, 1
      %p51 = por %p49, %p50
      %p52 = scmp.ne.s32.totalorder %s44, %s47
      %p53 = scmp.eq.s32.totalorder %s15, 0
      %p54 = por %p52, %p53
      %p55 = scmp.ne.s32.totalorder %s44, %s47
      %p56 = scmp.eq.s32.totalorder %s20, 1
      %p57 = por %p55, %p56
      %p58 = scmp.ne.s32.totalorder %s47, %s48
      %p59 = scmp.eq.s32.totalorder %s20, 0
      %p60 = por %p58, %p59
      %p61 = scmp.ne.s32.totalorder %s47, %s48
      %p62 = scmp.eq.s32.totalorder %s21, 1
      %p63 = por %p61, %p62
      %p65 = scmp.ne.s32.totalorder %s48, %s64
      %p66 = scmp.eq.s32.totalorder %s21, 0
      %p67 = por %p65, %p66
      %s69 = sadd.s32 %s68, 1
      %p72 = scmp.eq.s32.totalorder %s15, 1
      %p73 = scmp.ne.s32.totalorder %s68, %s70
      %p74 = scmp.eq.s32.totalorder %s15, 0
      %p75 = por %p73, %p74
      %p76 = scmp.ne.s32.totalorder %s68, %s70
      %p77 = scmp.eq.s32.totalorder %s20, 1
      %p78 = por %p76, %p77
      %p79 = scmp.ne.s32.totalorder %s70, %s71
      %p80 = scmp.eq.s32.totalorder %s20, 0
      %p81 = por %p79, %p80
      %p82 = scmp.ne.s32.totalorder %s70, %s71
      %p83 = scmp.eq.s32.totalorder %s21, 1
      %p84 = por %p82, %p83
      %p86 = scmp.ne.s32.totalorder %s71, %s85
      %p87 = scmp.eq.s32.totalorder %s21, 0
      %p88 = por %p86, %p87
      %s90 = sadd.s32 %s89, 1
      %p93 = scmp.eq.s32.totalorder %s15, 1
      %p94 = scmp.ne.s32.totalorder %s89, %s91
      %p95 = scmp.eq.s32.totalorder %s15, 0
      %p96 = por %p94, %p95
      %p97 = scmp.ne.s32.totalorder %s89, %s91
      %p98 = scmp.eq.s32.totalorder %s20, 1
      %p99 = por %p97, %p98
      %p100 = scmp.ne.s32.totalorder %s91, %s92
      %p101 = scmp.eq.s32.totalorder %s20, 0
      %p102 = por %p100, %p101
      %p103 = scmp.ne.s32.totalorder %s91, %s92
      %p104 = scmp.eq.s32.totalorder %s21, 1
      %p105 = por %p103, %p104
      %p107 = scmp.ne.s32.totalorder %s92, %s106
      %p108 = scmp.eq.s32.totalorder %s21, 0
      %p109 = por %p107, %p108
      %s110 = ssub.s32 %s24, %s33
      %s111 = ssub.s32 %s23, %s37
      %s112 = sor.u32 %s110, %s111
      %p113 = scmp.eq.s32.totalorder %s112, 0
      %s115 = sadd.s32 %s114, 1
      %s116 = scalar_select %p113, %s114, %s115
      %p119 = pneg %p113
      %p120 = scmp.eq.s32.totalorder %s15, 1
      %p121 = por %p119, %p120
      %p122 = scmp.ne.s32.totalorder %s114, %s117
      %p123 = scmp.eq.s32.totalorder %s15, 0
      %p124 = por %p122, %p123
      %p125 = scmp.ne.s32.totalorder %s114, %s117
      %p126 = scmp.eq.s32.totalorder %s20, 1
      %p127 = por %p125, %p126
      %p128 = scmp.ne.s32.totalorder %s117, %s118
      %p129 = scmp.eq.s32.totalorder %s20, 0
      %p130 = por %p128, %p129
      %p131 = scmp.ne.s32.totalorder %s117, %s118
      %p132 = scmp.eq.s32.totalorder %s21, 1
      %p133 = por %p131, %p132
      %p135 = scmp.ne.s32.totalorder %s118, %s134
      %p136 = scmp.eq.s32.totalorder %s21, 0
      %p137 = por %p135, %p136
      %s138 = ssub.s32 %s23, %s37
      %p139 = scmp.eq.s32.totalorder %s138, 0
      %s141 = sadd.s32 %s140, 1
      %s142 = scalar_select %p139, %s140, %s141
      %p145 = pneg %p139
      %p146 = scmp.eq.s32.totalorder %s15, 1
      %p147 = por %p145, %p146
      %p148 = scmp.ne.s32.totalorder %s140, %s143
      %p149 = scmp.eq.s32.totalorder %s15, 0
      %p150 = por %p148, %p149
      %p151 = scmp.ne.s32.totalorder %s140, %s143
      %p152 = scmp.eq.s32.totalorder %s20, 1
      %p153 = por %p151, %p152
      %p154 = scmp.ne.s32.totalorder %s143, %s144
      %p155 = scmp.eq.s32.totalorder %s20, 0
      %p156 = por %p154, %p155
      %p157 = scmp.ne.s32.totalorder %s143, %s144
      %p158 = scmp.eq.s32.totalorder %s21, 1
      %p159 = por %p157, %p158
      %p161 = scmp.ne.s32.totalorder %s144, %s160
      %p162 = scmp.eq.s32.totalorder %s21, 0
      %p163 = por %p161, %p162
      %s164 = ssub.s32 %s22, %s41
      %s165 = ssub.s32 %s23, %s37
      %s166 = sor.u32 %s164, %s165
      %p167 = scmp.eq.s32.totalorder %s166, 0
      %s169 = sadd.s32 %s168, 1
      %s170 = scalar_select %p167, %s168, %s169
      %p173 = pneg %p167
      %p174 = scmp.eq.s32.totalorder %s15, 1
      %p175 = por %p173, %p174
      %p176 = scmp.ne.s32.totalorder %s168, %s171
      %p177 = scmp.eq.s32.totalorder %s15, 0
      %p178 = por %p176, %p177
      %p179 = scmp.ne.s32.totalorder %s168, %s171
      %p180 = scmp.eq.s32.totalorder %s20, 1
      %p181 = por %p179, %p180
      %p182 = scmp.ne.s32.totalorder %s171, %s172
      %p183 = scmp.eq.s32.totalorder %s20, 0
      %p184 = por %p182, %p183
      %p185 = scmp.ne.s32.totalorder %s171, %s172
      %p186 = scmp.eq.s32.totalorder %s21, 1
      %p187 = por %p185, %p186
      %p189 = scmp.ne.s32.totalorder %s172, %s188
      %p190 = scmp.eq.s32.totalorder %s21, 0
      %p191 = por %p189, %p190
      %p192 = scmp.le.s32.totalorder 1, %s15
      %p193 = scmp.lt.s32.totalorder %s15, 3
      %p194 = pnand %p192, %p193
      %p195 = pneg %p194
      // Predicated region
      $region9: #{transformer_forward.5} parent=5 // pred_check
        _
      $region10: #{transformer_forward.5} parent=5 // pred_check_branch
        %197 = sbr.rel (%p194) target = $region12
      $region11: #{transformer_forward.5} parent=5 // pred_region
        %s198 = ssub.s32 %s15, 1
        // Predicated region
        $region13: #{transformer_forward.5} parent=11 // pred_check
          %p199 = pneg %p81
        $region14: #{transformer_forward.5} parent=11 // pred_check_branch
          %201 = sbr.rel (%p199) target = $region16
        $region15: #{transformer_forward.5} parent=11 // pred_region
          _
        $region16: #{transformer_forward.5} parent=11 // pred_fallthru
          _
        // Predicated region
        $region17: #{transformer_forward.5} parent=11 // pred_check
          %p202 = pneg %p102
        $region18: #{transformer_forward.5} parent=11 // pred_check_branch
          %204 = sbr.rel (%p202) target = $region20
        $region19: #{transformer_forward.5} parent=11 // pred_region
          _
        $region20: #{transformer_forward.5} parent=11 // pred_fallthru
          _
        // Predicated region
        $region21: #{transformer_forward.5} parent=11 // pred_check
          %p205 = pneg %p130
        $region22: #{transformer_forward.5} parent=11 // pred_check_branch
          %207 = sbr.rel (%p205) target = $region24
        $region23: #{transformer_forward.5} parent=11 // pred_region
          %s208 = smul.u32 16, %s27
          %s209 = smul.u32 3, %s26
          %211 = vsyncadd [#allocation7], 0
          %s212 = smul.addr %s208, 3
          %s213 = sadd.s32 %s209, %s212
          %s214 = smul.addr %s213, 4
          %s215 = scalar_lea.hbm %s3, %s214
          %s216 = sshll.u32 %s215, 4
          %s217 = int_to_ptr.hbm [resolvable:$true] %s216
          %s218 = sshll.u32 [#allocation6], 4
          %s219 = int_to_ptr.vmem [resolvable:$true] %s218
          %224 = dma.hbm_to_vmem [thread:$0]  %s217, 3072, %s219, [#allocation7], 192, 192, 12
        $region24: #{transformer_forward.5} parent=11 // pred_fallthru
          _
        // Predicated region
        $region25: #{transformer_forward.5} parent=11 // pred_check
          %p225 = pneg %p156
        $region26: #{transformer_forward.5} parent=11 // pred_check_branch
          %227 = sbr.rel (%p225) target = $region28
        $region27: #{transformer_forward.5} parent=11 // pred_region
          %s228 = smul.u32 3, %s26
          %p229 = scmp.lt.s32.totalorder %s228, 2
          %s230 = scalar_select %p229, %s228, 2
          %s231 = scalar_lea.vmem %s4, %s230
          %s232 = smul.u32 3, %s26
        $region28: #{transformer_forward.5} parent=11 // pred_fallthru
          _
      $region12: #{transformer_forward.5} parent=5 // pred_fallthru
        _
      %p233 = scmp.lt.s32.totalorder %s15, 2
      // Predicated region
      $region29: #{transformer_forward.5} parent=5 // pred_check
        %p234 = pneg %p233
      $region30: #{transformer_forward.5} parent=5 // pred_check_branch
        %236 = sbr.rel (%p234) target = $region32
      $region31: #{transformer_forward.5} parent=5 // pred_region
        // Predicated region
        $region33: #{transformer_forward.5} parent=31 // pred_check
          %p237 = pneg %p54
        $region34: #{transformer_forward.5} parent=31 // pred_check_branch
          %239 = sbr.rel (%p237) target = $region36
        $region35: #{transformer_forward.5} parent=31 // pred_region
          %s240 = sand.u32 %s44, 1
          %s241 = scalar_lea.sflag [#allocation5], %s240
          %s242 = sand.u32 %s44, 1
          %s243 = smul.addr %s242, 8
          %s244 = scalar_lea.vmem [#allocation4], %s243
          %246 = vsyncadd %s241, 0
          %s247 = smul.addr %s22, 8
          %s248 = scalar_lea.hbm %s0, %s247
          %s250 = sshll.u32 %s248, 4
          %s251 = int_to_ptr.hbm [resolvable:$true] %s250
          %s252 = sshll.u32 %s244, 4
          %s253 = int_to_ptr.vmem [resolvable:$true] %s252
          %255 = dma.hbm_to_vmem [thread:$0]  %s251, 128, %s253, %s241
        $region36: #{transformer_forward.5} parent=31 // pred_fallthru
          _
      $region32: #{transformer_forward.5} parent=5 // pred_fallthru
        _
      %p256 = scmp.le.s32.totalorder 1, %s15
      %p257 = scmp.lt.s32.totalorder %s15, 3
      %p258 = pnand %p256, %p257
      %p259 = pneg %p258
      // Predicated region
      $region37: #{transformer_forward.5} parent=5 // pred_check
        _
      $region38: #{transformer_forward.5} parent=5 // pred_check_branch
        %261 = sbr.rel (%p258) target = $region40
      $region39: #{transformer_forward.5} parent=5 // pred_region
        %s262 = ssub.s32 %s15, 1
        %s263 = sand.u32 %s47, 1
        %s264 = scalar_lea.sflag [#allocation5], %s263
        %s265 = sand.u32 %s47, 1
        %s266 = smul.addr %s265, 8
        %s267 = scalar_lea.vmem [#allocation4], %s266
        // Predicated region
        $region41: #{transformer_forward.5} parent=39 // pred_check
          %p268 = pneg %p60
        $region42: #{transformer_forward.5} parent=39 // pred_check_branch
          %270 = sbr.rel (%p268) target = $region44
        $region43: #{transformer_forward.5} parent=39 // pred_region
          %272 = dma.done %s264, 128
        $region44: #{transformer_forward.5} parent=39 // pred_fallthru
          _
        // Predicated region
        $region45: #{transformer_forward.5} parent=39 // pred_check
          %p273 = pneg %p130
        $region46: #{transformer_forward.5} parent=39 // pred_check_branch
          %275 = sbr.rel (%p273) target = $region48
        $region47: #{transformer_forward.5} parent=39 // pred_region
          %277 = dma.done [#allocation7], 3072
        $region48: #{transformer_forward.5} parent=39 // pred_fallthru
          _
        %s278 = sand.u32 %s47, 1
        %s279 = scalar_lea.sflag [#allocation5], %s278
        %s280 = sand.u32 %s47, 1
        %s281 = smul.addr %s280, 8
        %s282 = scalar_lea.vmem [#allocation4], %s281
        %p283 = pneg %p60
        %p284 = pneg %p57
        %p285 = pneg %p81
        %p286 = pneg %p78
        %p287 = pneg %p102
        %p288 = pneg %p99
        %p289 = pneg %p130
        %p290 = pneg %p127
        %s291 = smul.u32 3, %s26
        %p292 = scmp.lt.s32.totalorder %s291, 2
        %s293 = scalar_select %p292, %s291, 2
        %s294 = scalar_lea.vmem %s4, %s293
        %p295 = pneg %p156
        %p296 = pneg %p153
        %p297 = pneg %p184
        %p298 = pneg %p181
        %s299 = smul.u32 3, %s26
        %p300 = scmp.lt.s32.totalorder %s25, 1
        %s301 = scalar_select %p300, %s25, 1
        %p302 = scmp.lt.s32.totalorder %s299, 2
        %s303 = scalar_select %p302, %s299, 2
        %s304 = smul.addr %s301, 3
        %s305 = sadd.s32 %s303, %s304
        %s306 = smul.addr %s305, 4
        %s307 = scalar_lea.vmem %s5, %s306
        %s308 = smul.u32 16, %s27
        %s309 = smul.u32 3, %s26
        %s310 = smul.u32 3, %s26
        %p311 = scmp.lt.s32.totalorder %s310, 2
        %s312 = scalar_select %p311, %s310, 2
        %s313 = scalar_lea.vmem %s4, %s312
        %s314 = smul.u32 3, %s26
        %s315 = smul.u32 3, %s26
        %p316 = scmp.lt.s32.totalorder %s25, 1
        %s317 = scalar_select %p316, %s25, 1
        %p318 = scmp.lt.s32.totalorder %s315, 2
        %s319 = scalar_select %p318, %s315, 2
        %s320 = smul.addr %s317, 3
        %s321 = sadd.s32 %s319, %s320
        %s322 = smul.addr %s321, 4
        %s323 = scalar_lea.vmem %s5, %s322
        %s324 = smul.u32 3, %s26
        %p325 = scmp.eq.s32.totalorder %s27, 0
        // Predicated region
        $region49: #{transformer_forward.5} parent=39 // pred_check
          %p326 = pneg %p325
        $region50: #{transformer_forward.5} parent=39 // pred_check_branch
          %328 = sbr.rel (%p326) target = $region52
        $region51: #{transformer_forward.5} parent=39 // pred_region
          %329 = vst [vmem:[#allocation2] sm:$0xff] 0.0
          %330 = vst [vmem:[#allocation2 + $0x8] sm:$0xff] 0.0
          %331 = vst [vmem:[#allocation2 + $0x10] sm:$0xff] 0.0
          %v332 = vld [vmem:[%s267] sm:$0xff]
          %333 = vadd.xlane.f32.xlu0 %v332
          %v334 = vpop.xlane.xlu0 %333
          %v335 = vrcp.pop 128.0
          %v336 = vmul.f32 128.0, %v335
          %v337 = vsub.f32 1.0, %v336
          %v338 = vmul.f32 %v335, %v337
          %v339 = vadd.f32 %v335, %v338
          %vm340 = vweird.f32 %v335
          %v341 = vsel %vm340, %v335, %v339
          %v342 = vmul.f32 %v334, %v341
          %v343 = vsub.f32 %v332, %v342
          %v344 = vmul.f32 %v343, %v343
          %345 = vadd.xlane.f32.xlu0 %v344
          %v346 = vpop.xlane.xlu0 %345
          %v347 = vmul.f32 %v346, %v341
          %v348 = vadd.f32 %v347, 1e-05
          %v349 = vrsqrt.pop %v348
          %v350 = vmul.f32 %v349, %v348
          %v351 = vmul.f32 %v350, %v349
          %v352 = vmul.f32 0.5, %v351
          %v353 = vsub.f32 1.5, %v352
          %v354 = vmul.f32 %v349, %v353
          %vm355 = vweird.f32 %v348
          %vm356 = vweird.f32 %v349
          %vm357 = vmor %vm355, %vm356
          %v358 = vsel %vm357, %v349, %v354
          %v359 = vmul.f32 %v343, %v358
          %v360 = vld [vmem:[%s1] sm:$0x1]
          %v362 = vperm.slane %v360, 0
          %v364 = vmul.f32 %v359, %v362
          %v365 = vld [vmem:[%s2] sm:$0x1]
          %v367 = vperm.slane %v365, 0
          %v369 = vadd.f32 %v364, %v367
          %v370 = vpack.c.bf16 %v369, %v369
          %371 = vst [vmem:[#allocation3] sm:$0xf] %v370
        $region52: #{transformer_forward.5} parent=39 // pred_fallthru
          _
        %v372 = vld [vmem:[#allocation3] sm:$0xf]
        %v373 = vld [vmem:[#allocation2] sm:$0xff]
        %v374 = vld [vmem:[#allocation2 + $0x8] sm:$0xff]
        %v375 = vld [vmem:[#allocation2 + $0x10] sm:$0xff]
        %v376 = vld [vmem:[#allocation6] sm:$0xff]
        %v377 = vld [vmem:[#allocation6 + $0x8] sm:$0xf]
        %v378 = vld [vmem:[#allocation6 + $0xc] sm:$0xff]
        %v379 = vld [vmem:[#allocation6 + $0x14] sm:$0xf]
        %v380 = vld [vmem:[#allocation6 + $0x18] sm:$0xff]
        %v381 = vld [vmem:[#allocation6 + $0x20] sm:$0xf]
        %v382 = vld [vmem:[#allocation6 + $0x24] sm:$0xff]
        %v383 = vld [vmem:[#allocation6 + $0x2c] sm:$0xf]
        %v384 = vld [vmem:[#allocation6 + $0x30] sm:$0xff]
        %v385 = vld [vmem:[#allocation6 + $0x38] sm:$0xf]
        %v386 = vld [vmem:[#allocation6 + $0x3c] sm:$0xff]
        %v387 = vld [vmem:[#allocation6 + $0x44] sm:$0xf]
        %v388 = vld [vmem:[#allocation6 + $0x48] sm:$0xff]
        %v389 = vld [vmem:[#allocation6 + $0x50] sm:$0xf]
        %v390 = vld [vmem:[#allocation6 + $0x54] sm:$0xff]
        %v391 = vld [vmem:[#allocation6 + $0x5c] sm:$0xf]
        %v392 = vld [vmem:[#allocation6 + $0x60] sm:$0xff]
        %v393 = vld [vmem:[#allocation6 + $0x68] sm:$0xf]
        %v394 = vld [vmem:[#allocation6 + $0x6c] sm:$0xff]
        %v395 = vld [vmem:[#allocation6 + $0x74] sm:$0xf]
        %v396 = vld [vmem:[#allocation6 + $0x78] sm:$0xff]
        %v397 = vld [vmem:[#allocation6 + $0x80] sm:$0xf]
        %v398 = vld [vmem:[#allocation6 + $0x84] sm:$0xff]
        %v399 = vld [vmem:[#allocation6 + $0x8c] sm:$0xf]
        %v400 = vld [vmem:[#allocation6 + $0x90] sm:$0xff]
        %v401 = vld [vmem:[#allocation6 + $0x98] sm:$0xf]
        %v402 = vld [vmem:[#allocation6 + $0x9c] sm:$0xff]
        %v403 = vld [vmem:[#allocation6 + $0xa4] sm:$0xf]
        %v404 = vld [vmem:[#allocation6 + $0xa8] sm:$0xff]
        %v405 = vld [vmem:[#allocation6 + $0xb0] sm:$0xf]
        %v406 = vld [vmem:[#allocation6 + $0xb4] sm:$0xff]
        %v407 = vld [vmem:[#allocation6 + $0xbc] sm:$0xf]
        %v440 = vunpack.c.l.b16 %v376
        %v441 = vunpack.c.h.b16 %v376
        %v442 = vunpack.c.l.b16 %v377
        %v443 = vunpack.c.l.b16 %v378
        %v444 = vunpack.c.h.b16 %v378
        %v445 = vunpack.c.l.b16 %v379
        %v446 = vunpack.c.l.b16 %v380
        %v447 = vunpack.c.h.b16 %v380
        %v448 = vunpack.c.l.b16 %v381
        %v449 = vunpack.c.l.b16 %v382
        %v450 = vunpack.c.h.b16 %v382
        %v451 = vunpack.c.l.b16 %v383
        %v452 = vunpack.c.l.b16 %v384
        %v453 = vunpack.c.h.b16 %v384
        %v454 = vunpack.c.l.b16 %v385
        %v455 = vunpack.c.l.b16 %v386
        %v456 = vunpack.c.h.b16 %v386
        %v457 = vunpack.c.l.b16 %v387
        %v458 = vunpack.c.l.b16 %v388
        %v459 = vunpack.c.h.b16 %v388
        %v460 = vunpack.c.l.b16 %v389
        %v461 = vunpack.c.l.b16 %v390
        %v462 = vunpack.c.h.b16 %v390
        %v463 = vunpack.c.l.b16 %v391
        %v464 = vunpack.c.l.b16 %v392
        %v465 = vunpack.c.h.b16 %v392
        %v466 = vunpack.c.l.b16 %v393
        %v467 = vunpack.c.l.b16 %v394
        %v468 = vunpack.c.h.b16 %v394
        %v469 = vunpack.c.l.b16 %v395
        %v470 = vunpack.c.l.b16 %v396
        %v471 = vunpack.c.h.b16 %v396
        %v472 = vunpack.c.l.b16 %v397
        %v473 = vunpack.c.l.b16 %v398
        %v474 = vunpack.c.h.b16 %v398
        %v475 = vunpack.c.l.b16 %v399
        %v476 = vunpack.c.l.b16 %v400
        %v477 = vunpack.c.h.b16 %v400
        %v478 = vunpack.c.l.b16 %v401
        %v479 = vunpack.c.l.b16 %v402
        %v480 = vunpack.c.h.b16 %v402
        %v481 = vunpack.c.l.b16 %v403
        %v482 = vunpack.c.l.b16 %v404
        %v483 = vunpack.c.h.b16 %v404
        %v484 = vunpack.c.l.b16 %v405
        %v485 = vunpack.c.l.b16 %v406
        %v486 = vunpack.c.h.b16 %v406
        %v487 = vunpack.c.l.b16 %v407
        %v488 = vpack.c.b16 %v443, %v440
        %v489 = vpack.c.b16 %v444, %v441
        %v490 = vpack.c.b16 %v445, %v442
        %v491 = vpack.c.b16 %v449, %v446
        %v492 = vpack.c.b16 %v450, %v447
        %v493 = vpack.c.b16 %v451, %v448
        %v494 = vpack.c.b16 %v455, %v452
        %v495 = vpack.c.b16 %v456, %v453
        %v496 = vpack.c.b16 %v457, %v454
        %v497 = vpack.c.b16 %v461, %v458
        %v498 = vpack.c.b16 %v462, %v459
        %v499 = vpack.c.b16 %v463, %v460
        %v500 = vpack.c.b16 %v467, %v464
        %v501 = vpack.c.b16 %v468, %v465
        %v502 = vpack.c.b16 %v469, %v466
        %v503 = vpack.c.b16 %v473, %v470
        %v504 = vpack.c.b16 %v474, %v471
        %v505 = vpack.c.b16 %v475, %v472
        %v506 = vpack.c.b16 %v479, %v476
        %v507 = vpack.c.b16 %v480, %v477
        %v508 = vpack.c.b16 %v481, %v478
        %v509 = vpack.c.b16 %v485, %v482
        %v510 = vpack.c.b16 %v486, %v483
        %v511 = vpack.c.b16 %v487, %v484
        %536 = vmatpush.bf16.msra.mxu0 %v509
        %537 = vmatpush.bf16.msra.mxu0 %v506
        %538 = vmatpush.bf16.msra.mxu0 %v503
        %539 = vmatpush.bf16.msra.mxu0 %v500
        %540 = vmatpush.bf16.msra.mxu0 %v497
        %541 = vmatpush.bf16.msra.mxu0 %v494
        %542 = vmatpush.bf16.msra.mxu0 %v491
        %543 = vmatpush.bf16.msra.mxu0 %v488
        %544 = vmatmul.bf16.gmra.mxu0 %v372
        %v545 = vpop.f32.mrf.mxu0
        %v546 = vadd.f32 0.0, %v545
        %v547 = vpop.f32.mrf.mxu0
        %548 = vdwg.mxu0
        %549 = vmatpush.bf16.msra.mxu0 %v510
        %550 = vmatpush.bf16.msra.mxu0 %v507
        %551 = vmatpush.bf16.msra.mxu0 %v504
        %552 = vmatpush.bf16.msra.mxu0 %v501
        %553 = vmatpush.bf16.msra.mxu0 %v498
        %554 = vmatpush.bf16.msra.mxu0 %v495
        %555 = vmatpush.bf16.msra.mxu0 %v492
        %556 = vmatpush.bf16.msra.mxu0 %v489
        %557 = vmatmul.bf16.gmra.mxu0 %v372
        %v558 = vpop.f32.mrf.mxu0
        %v559 = vadd.f32 0.0, %v558
        %v560 = vpop.f32.mrf.mxu0
        %561 = vdwg.mxu0
        %562 = vmatpush.bf16.msra.mxu0 %v511
        %563 = vmatpush.bf16.msra.mxu0 %v508
        %564 = vmatpush.bf16.msra.mxu0 %v505
        %565 = vmatpush.bf16.msra.mxu0 %v502
        %566 = vmatpush.bf16.msra.mxu0 %v499
        %567 = vmatpush.bf16.msra.mxu0 %v496
        %568 = vmatpush.bf16.msra.mxu0 %v493
        %569 = vmatpush.bf16.msra.mxu0 %v490
        %570 = vmatmul.bf16.gmra.mxu0 %v372
        %v571 = vpop.f32.mrf.mxu0
        %v572 = vadd.f32 0.0, %v571
        %v573 = vpop.f32.mrf.mxu0
        %574 = vdwg.mxu0
        %v575 = vadd.f32 %v373, %v546
        %v576 = vadd.f32 %v374, %v559
        %v577 = vadd.f32 %v375, %v572
        %578 = vst [vmem:[#allocation2] sm:$0xff] %v575
        %579 = vst [vmem:[#allocation2 + $0x8] sm:$0xff] %v576
        %580 = vst [vmem:[#allocation2 + $0x10] sm:$0xff] %v577
        // Predicated region
        $region53: #{transformer_forward.5} parent=39 // pred_check
          %p581 = pneg %p325
        $region54: #{transformer_forward.5} parent=39 // pred_check_branch
          %583 = sbr.rel (%p581) target = $region56
        $region55: #{transformer_forward.5} parent=39 // pred_region
          %v584 = vld [vmem:[#allocation2] sm:$0xff]
          %v585 = vld [vmem:[#allocation2 + $0x8] sm:$0xff]
          %v586 = vld [vmem:[#allocation2 + $0x10] sm:$0xff]
          %v587 = vld [vmem:[%s313] sm:$0x7]
          %v589 = vperm.slane %v587, 0
          %v590 = vperm.slane %v587, 1
          %v591 = vperm.slane %v587, 2
          %v595 = vadd.f32 %v584, %v589
          %v596 = vadd.f32 %v585, %v590
          %v597 = vadd.f32 %v586, %v591
          %v598 = vpack.c.bf16 %v596, %v595
          %v599 = vpack.c.bf16 %v597, %v597
          %600 = vst [vmem:[%s323] sm:$0xff] %v598
          %601 = vst [vmem:[%s323 + $0x8] sm:$0xf] %v599
        $region56: #{transformer_forward.5} parent=39 // pred_fallthru
          _
        %s602 = smul.u32 3, %s26
        %p603 = scmp.lt.s32.totalorder %s25, 1
        %s604 = scalar_select %p603, %s25, 1
        %p605 = scmp.lt.s32.totalorder %s602, 2
        %s606 = scalar_select %p605, %s602, 2
        %s607 = smul.addr %s604, 3
        %s608 = sadd.s32 %s606, %s607
        %s609 = smul.addr %s608, 4
        %s610 = scalar_lea.vmem %s5, %s609
        // Predicated region
        $region57: #{transformer_forward.5} parent=39 // pred_check
          %p611 = pneg %p181
        $region58: #{transformer_forward.5} parent=39 // pred_check_branch
          %613 = sbr.rel (%p611) target = $region60
        $region59: #{transformer_forward.5} parent=39 // pred_region
          %s614 = smul.u32 3, %s26
        $region60: #{transformer_forward.5} parent=39 // pred_fallthru
          _
      $region40: #{transformer_forward.5} parent=5 // pred_fallthru
        _
      %p615 = scmp.le.s32.totalorder 2, %s15
      // Predicated region
      $region61: #{transformer_forward.5} parent=5 // pred_check
        %p616 = pneg %p615
      $region62: #{transformer_forward.5} parent=5 // pred_check_branch
        %618 = sbr.rel (%p616) target = $region64
      $region63: #{transformer_forward.5} parent=5 // pred_region
        %s619 = ssub.s32 %s15, 2
        // Predicated region
        $region65: #{transformer_forward.5} parent=63 // pred_check
          %p620 = pneg %p187
        $region66: #{transformer_forward.5} parent=63 // pred_check_branch
          %622 = sbr.rel (%p620) target = $region68
        $region67: #{transformer_forward.5} parent=63 // pred_region
          %s623 = smul.u32 3, %s29
          %p624 = scmp.lt.s32.totalorder %s28, 1
          %s625 = scalar_select %p624, %s28, 1
          %p626 = scmp.lt.s32.totalorder %s623, 2
          %s627 = scalar_select %p626, %s623, 2
          %s628 = smul.addr %s625, 3
          %s629 = sadd.s32 %s627, %s628
          %s630 = smul.addr %s629, 4
          %s631 = scalar_lea.vmem %s5, %s630
        $region68: #{transformer_forward.5} parent=63 // pred_fallthru
          _
      $region64: #{transformer_forward.5} parent=5 // pred_fallthru
        _
    $region6: #{transformer_forward.5} parent=1 // loop_footer
      %s19 = sadd.s32 1, %s15
    $region7: #{transformer_forward.5} parent=1 // loop_footer_branch
      %14 = sbr.rel target = $region3
    $region8: #{transformer_forward.5} parent=1 // loop_exit
      _
    %632 = vsyncpa [#allocation5], 1
    %s633 = scalar_lea.sflag [#allocation5], 1
    %634 = vsyncpa %s633, 1
    %635 = vsyncpa [#allocation7], 1

// kernel: transformer_forward.8
$region0: #{transformer_forward.8}
  #allocation0 [shape = 'u32[]', space=smem, size = 0x4, offset = 0x4, fixed_abs, tag = 'smem constant byte address 0x4 - core index']
  #allocation1 [shape = 'u32[72,128]{1,0:T(1,128)}', space=vmem, size = 0x9000, scoped, tag = 'internal scratch']
  #allocation2 [shape = 'f32[8,512]{1,0:T(8,128)}', space=vmem, size = 0x4000, scoped, tag = 'scratch operand']
  #allocation3 [shape = 'bf16[8,128]{1,0:T(8,128)(2,1)}', space=vmem, size = 0x800, scoped, tag = 'scratch operand']
  %s0 = inlined_call_operand.vmem [shape: f32[16,128], index: 0, kind: input, shape index: {}]
  %s1 = inlined_call_operand.vmem [shape: f32[1,128], index: 1, kind: input, shape index: {}]
  %s2 = inlined_call_operand.vmem [shape: f32[1,128], index: 2, kind: input, shape index: {}]
  %s3 = inlined_call_operand.hbm [shape: bf16[128,512], index: 3, kind: input, shape index: {}]
  %s4 = inlined_call_operand.vmem [shape: f32[1,512], index: 4, kind: input, shape index: {}]
  %s5 = inlined_call_operand.vmem [shape: bf16[16,512], index: 5, kind: output, shape index: {}]
  %s6 = sld [smem:[#allocation0]]
  $region65: #{transformer_forward.8} parent=0
    _
  %s8 = ssub.s32 1, %s6
  %s9 = scalar_select 0, %s8, %s6
  $region1: #{transformer_forward.8} parent=0
    #allocation4 [shape = 'u8[131072]{0}', space=vmem, size = 0x20000, scoped, tag = 'input window, operand 3, single buffered']
    #allocation5 [shape = 's32[2]{0}', space=sflag, size = 0x8, scoped, tag = 'scoped memory for transformer_forward.8']
    %10 = vsyncpa [#allocation5], 0
    loop: start=0, step=1, limit=4
    $region2: #{transformer_forward.8} parent=1 // loop_pre_header
      _
    $region3: #{transformer_forward.8} parent=1 // loop_header
      %s12 = sphi 0, %s16
      %p13 = scmp.ge.s32.totalorder %s12, 4
      %s19 = sphi 0, %s38
      %s20 = sphi 0, %s34
      %s21 = sphi 0, %s30
      %s22 = sphi 0, %s19
      %s23 = sphi 0, %s20
      %s24 = sphi 0, %s21
      %s25 = sphi 0, %s22
      %s26 = sphi 0, %s23
      %s27 = sphi 0, %s24
      %s41 = sphi 0, %s43
      %s44 = sphi 0, %s41
      %s45 = sphi 0, %s44
      %s61 = sphi 0, %s45
      %s65 = sphi 0, %s65
      %s67 = sphi 0, %s65
      %s68 = sphi 0, %s67
      %s82 = sphi 0, %s68
      %s86 = sphi 0, %s86
      %s88 = sphi 0, %s86
      %s89 = sphi 0, %s88
      %s103 = sphi 0, %s89
      %s111 = sphi 0, %s113
      %s114 = sphi 0, %s111
      %s115 = sphi 0, %s114
      %s131 = sphi 0, %s115
      %s137 = sphi 0, %s139
      %s140 = sphi 0, %s137
      %s141 = sphi 0, %s140
      %s157 = sphi 0, %s141
      %s165 = sphi 0, %s167
      %s168 = sphi 0, %s165
      %s169 = sphi 0, %s168
      %s185 = sphi 0, %s169
    $region4: #{transformer_forward.8} parent=1 // loop_header_branch
      %15 = sbr.rel (%p13) target = $region8
    $region5: #{transformer_forward.8} parent=1 // loop_body
      %s17 = ssub.s32 %s12, 1
      %s18 = ssub.s32 %s12, 2
      %s28 = sadd.s32 1, %s21
      %p29 = scmp.ge.s32.totalorder %s28, 1
      %s30 = scalar_select %p29, 0, %s28
      %s31 = sadd.s32 1, %s20
      %s32 = scalar_select %p29, %s31, %s20
      %p33 = scmp.ge.s32.totalorder %s32, 1
      %s34 = scalar_select %p33, 0, %s32
      %s35 = sadd.s32 1, %s19
      %s36 = scalar_select %p33, %s35, %s19
      %p37 = scmp.ge.s32.totalorder %s36, 2
      %s38 = scalar_select %p37, 0, %s36
      %s39 = ssub.s32 %s19, %s38
      %p40 = scmp.eq.s32.totalorder %s39, 0
      %s42 = sadd.s32 %s41, 1
      %s43 = scalar_select %p40, %s41, %s42
      %p46 = pneg %p40
      %p47 = scmp.eq.s32.totalorder %s12, 1
      %p48 = por %p46, %p47
      %p49 = scmp.ne.s32.totalorder %s41, %s44
      %p50 = scmp.eq.s32.totalorder %s12, 0
      %p51 = por %p49, %p50
      %p52 = scmp.ne.s32.totalorder %s41, %s44
      %p53 = scmp.eq.s32.totalorder %s17, 1
      %p54 = por %p52, %p53
      %p55 = scmp.ne.s32.totalorder %s44, %s45
      %p56 = scmp.eq.s32.totalorder %s17, 0
      %p57 = por %p55, %p56
      %p58 = scmp.ne.s32.totalorder %s44, %s45
      %p59 = scmp.eq.s32.totalorder %s18, 1
      %p60 = por %p58, %p59
      %p62 = scmp.ne.s32.totalorder %s45, %s61
      %p63 = scmp.eq.s32.totalorder %s18, 0
      %p64 = por %p62, %p63
      %s66 = sadd.s32 %s65, 1
      %p69 = scmp.eq.s32.totalorder %s12, 1
      %p70 = scmp.ne.s32.totalorder %s65, %s67
      %p71 = scmp.eq.s32.totalorder %s12, 0
      %p72 = por %p70, %p71
      %p73 = scmp.ne.s32.totalorder %s65, %s67
      %p74 = scmp.eq.s32.totalorder %s17, 1
      %p75 = por %p73, %p74
      %p76 = scmp.ne.s32.totalorder %s67, %s68
      %p77 = scmp.eq.s32.totalorder %s17, 0
      %p78 = por %p76, %p77
      %p79 = scmp.ne.s32.totalorder %s67, %s68
      %p80 = scmp.eq.s32.totalorder %s18, 1
      %p81 = por %p79, %p80
      %p83 = scmp.ne.s32.totalorder %s68, %s82
      %p84 = scmp.eq.s32.totalorder %s18, 0
      %p85 = por %p83, %p84
      %s87 = sadd.s32 %s86, 1
      %p90 = scmp.eq.s32.totalorder %s12, 1
      %p91 = scmp.ne.s32.totalorder %s86, %s88
      %p92 = scmp.eq.s32.totalorder %s12, 0
      %p93 = por %p91, %p92
      %p94 = scmp.ne.s32.totalorder %s86, %s88
      %p95 = scmp.eq.s32.totalorder %s17, 1
      %p96 = por %p94, %p95
      %p97 = scmp.ne.s32.totalorder %s88, %s89
      %p98 = scmp.eq.s32.totalorder %s17, 0
      %p99 = por %p97, %p98
      %p100 = scmp.ne.s32.totalorder %s88, %s89
      %p101 = scmp.eq.s32.totalorder %s18, 1
      %p102 = por %p100, %p101
      %p104 = scmp.ne.s32.totalorder %s89, %s103
      %p105 = scmp.eq.s32.totalorder %s18, 0
      %p106 = por %p104, %p105
      %s107 = ssub.s32 %s21, %s30
      %s108 = ssub.s32 %s20, %s34
      %s109 = sor.u32 %s107, %s108
      %p110 = scmp.eq.s32.totalorder %s109, 0
      %s112 = sadd.s32 %s111, 1
      %s113 = scalar_select %p110, %s111, %s112
      %p116 = pneg %p110
      %p117 = scmp.eq.s32.totalorder %s12, 1
      %p118 = por %p116, %p117
      %p119 = scmp.ne.s32.totalorder %s111, %s114
      %p120 = scmp.eq.s32.totalorder %s12, 0
      %p121 = por %p119, %p120
      %p122 = scmp.ne.s32.totalorder %s111, %s114
      %p123 = scmp.eq.s32.totalorder %s17, 1
      %p124 = por %p122, %p123
      %p125 = scmp.ne.s32.totalorder %s114, %s115
      %p126 = scmp.eq.s32.totalorder %s17, 0
      %p127 = por %p125, %p126
      %p128 = scmp.ne.s32.totalorder %s114, %s115
      %p129 = scmp.eq.s32.totalorder %s18, 1
      %p130 = por %p128, %p129
      %p132 = scmp.ne.s32.totalorder %s115, %s131
      %p133 = scmp.eq.s32.totalorder %s18, 0
      %p134 = por %p132, %p133
      %s135 = ssub.s32 %s20, %s34
      %p136 = scmp.eq.s32.totalorder %s135, 0
      %s138 = sadd.s32 %s137, 1
      %s139 = scalar_select %p136, %s137, %s138
      %p142 = pneg %p136
      %p143 = scmp.eq.s32.totalorder %s12, 1
      %p144 = por %p142, %p143
      %p145 = scmp.ne.s32.totalorder %s137, %s140
      %p146 = scmp.eq.s32.totalorder %s12, 0
      %p147 = por %p145, %p146
      %p148 = scmp.ne.s32.totalorder %s137, %s140
      %p149 = scmp.eq.s32.totalorder %s17, 1
      %p150 = por %p148, %p149
      %p151 = scmp.ne.s32.totalorder %s140, %s141
      %p152 = scmp.eq.s32.totalorder %s17, 0
      %p153 = por %p151, %p152
      %p154 = scmp.ne.s32.totalorder %s140, %s141
      %p155 = scmp.eq.s32.totalorder %s18, 1
      %p156 = por %p154, %p155
      %p158 = scmp.ne.s32.totalorder %s141, %s157
      %p159 = scmp.eq.s32.totalorder %s18, 0
      %p160 = por %p158, %p159
      %s161 = ssub.s32 %s19, %s38
      %s162 = ssub.s32 %s20, %s34
      %s163 = sor.u32 %s161, %s162
      %p164 = scmp.eq.s32.totalorder %s163, 0
      %s166 = sadd.s32 %s165, 1
      %s167 = scalar_select %p164, %s165, %s166
      %p170 = pneg %p164
      %p171 = scmp.eq.s32.totalorder %s12, 1
      %p172 = por %p170, %p171
      %p173 = scmp.ne.s32.totalorder %s165, %s168
      %p174 = scmp.eq.s32.totalorder %s12, 0
      %p175 = por %p173, %p174
      %p176 = scmp.ne.s32.totalorder %s165, %s168
      %p177 = scmp.eq.s32.totalorder %s17, 1
      %p178 = por %p176, %p177
      %p179 = scmp.ne.s32.totalorder %s168, %s169
      %p180 = scmp.eq.s32.totalorder %s17, 0
      %p181 = por %p179, %p180
      %p182 = scmp.ne.s32.totalorder %s168, %s169
      %p183 = scmp.eq.s32.totalorder %s18, 1
      %p184 = por %p182, %p183
      %p186 = scmp.ne.s32.totalorder %s169, %s185
      %p187 = scmp.eq.s32.totalorder %s18, 0
      %p188 = por %p186, %p187
      %p189 = scmp.le.s32.totalorder 1, %s12
      %p190 = scmp.lt.s32.totalorder %s12, 3
      %p191 = pnand %p189, %p190
      %p192 = pneg %p191
      // Predicated region
      $region9: #{transformer_forward.8} parent=5 // pred_check
        _
      $region10: #{transformer_forward.8} parent=5 // pred_check_branch
        %194 = sbr.rel (%p191) target = $region12
      $region11: #{transformer_forward.8} parent=5 // pred_region
        %s195 = ssub.s32 %s12, 1
        // Predicated region
        $region13: #{transformer_forward.8} parent=11 // pred_check
          %p196 = pneg %p78
        $region14: #{transformer_forward.8} parent=11 // pred_check_branch
          %198 = sbr.rel (%p196) target = $region16
        $region15: #{transformer_forward.8} parent=11 // pred_region
          _
        $region16: #{transformer_forward.8} parent=11 // pred_fallthru
          _
        // Predicated region
        $region17: #{transformer_forward.8} parent=11 // pred_check
          %p199 = pneg %p99
        $region18: #{transformer_forward.8} parent=11 // pred_check_branch
          %201 = sbr.rel (%p199) target = $region20
        $region19: #{transformer_forward.8} parent=11 // pred_region
          _
        $region20: #{transformer_forward.8} parent=11 // pred_fallthru
          _
        // Predicated region
        $region21: #{transformer_forward.8} parent=11 // pred_check
          %p202 = pneg %p127
        $region22: #{transformer_forward.8} parent=11 // pred_check_branch
          %204 = sbr.rel (%p202) target = $region24
        $region23: #{transformer_forward.8} parent=11 // pred_region
          %s205 = smul.u32 16, %s24
          %s206 = smul.u32 4, %s23
          %208 = vsyncadd [#allocation5], 0
          %s209 = smul.addr %s205, 4
          %s210 = sadd.s32 %s206, %s209
          %s211 = smul.addr %s210, 4
          %s212 = scalar_lea.hbm %s3, %s211
          %s213 = sshll.u32 %s212, 4
          %s214 = int_to_ptr.hbm [resolvable:$true] %s213
          %s215 = sshll.u32 [#allocation4], 4
          %s216 = int_to_ptr.vmem [resolvable:$true] %s215
          %221 = dma.hbm_to_vmem [thread:$0]  %s214, 4096, %s216, [#allocation5], 256, 256, 16
        $region24: #{transformer_forward.8} parent=11 // pred_fallthru
          _
        // Predicated region
        $region25: #{transformer_forward.8} parent=11 // pred_check
          %p222 = pneg %p153
        $region26: #{transformer_forward.8} parent=11 // pred_check_branch
          %224 = sbr.rel (%p222) target = $region28
        $region27: #{transformer_forward.8} parent=11 // pred_region
          %s225 = smul.u32 4, %s23
          %p226 = scmp.lt.s32.totalorder %s225, 3
          %s227 = scalar_select %p226, %s225, 3
          %s228 = scalar_lea.vmem %s4, %s227
          %s229 = smul.u32 4, %s23
        $region28: #{transformer_forward.8} parent=11 // pred_fallthru
          _
      $region12: #{transformer_forward.8} parent=5 // pred_fallthru
        _
      %p230 = scmp.lt.s32.totalorder %s12, 2
      // Predicated region
      $region29: #{transformer_forward.8} parent=5 // pred_check
        %p231 = pneg %p230
      $region30: #{transformer_forward.8} parent=5 // pred_check_branch
        %233 = sbr.rel (%p231) target = $region32
      $region31: #{transformer_forward.8} parent=5 // pred_region
        // Predicated region
        $region33: #{transformer_forward.8} parent=31 // pred_check
          %p234 = pneg %p51
        $region34: #{transformer_forward.8} parent=31 // pred_check_branch
          %236 = sbr.rel (%p234) target = $region36
        $region35: #{transformer_forward.8} parent=31 // pred_region
          %p237 = scmp.lt.s32.totalorder %s19, 1
          %s238 = scalar_select %p237, %s19, 1
          %s239 = smul.addr %s238, 8
          %s240 = scalar_lea.vmem %s0, %s239
        $region36: #{transformer_forward.8} parent=31 // pred_fallthru
          _
      $region32: #{transformer_forward.8} parent=5 // pred_fallthru
        _
      %p241 = scmp.le.s32.totalorder 1, %s12
      %p242 = scmp.lt.s32.totalorder %s12, 3
      %p243 = pnand %p241, %p242
      %p244 = pneg %p243
      // Predicated region
      $region37: #{transformer_forward.8} parent=5 // pred_check
        _
      $region38: #{transformer_forward.8} parent=5 // pred_check_branch
        %246 = sbr.rel (%p243) target = $region40
      $region39: #{transformer_forward.8} parent=5 // pred_region
        %s247 = ssub.s32 %s12, 1
        // Predicated region
        $region41: #{transformer_forward.8} parent=39 // pred_check
          %p248 = pneg %p127
        $region42: #{transformer_forward.8} parent=39 // pred_check_branch
          %250 = sbr.rel (%p248) target = $region44
        $region43: #{transformer_forward.8} parent=39 // pred_region
          %252 = dma.done [#allocation5], 4096
        $region44: #{transformer_forward.8} parent=39 // pred_fallthru
          _
        %p253 = scmp.lt.s32.totalorder %s22, 1
        %s254 = scalar_select %p253, %s22, 1
        %s255 = smul.addr %s254, 8
        %s256 = scalar_lea.vmem %s0, %s255
        %p257 = pneg %p57
        %p258 = pneg %p54
        %p259 = pneg %p78
        %p260 = pneg %p75
        %p261 = pneg %p99
        %p262 = pneg %p96
        %p263 = pneg %p127
        %p264 = pneg %p124
        %s265 = smul.u32 4, %s23
        %p266 = scmp.lt.s32.totalorder %s265, 3
        %s267 = scalar_select %p266, %s265, 3
        %s268 = scalar_lea.vmem %s4, %s267
        %p269 = pneg %p153
        %p270 = pneg %p150
        %p271 = pneg %p181
        %p272 = pneg %p178
        %s273 = smul.u32 4, %s23
        %p274 = scmp.lt.s32.totalorder %s22, 1
        %s275 = scalar_select %p274, %s22, 1
        %p276 = scmp.lt.s32.totalorder %s273, 3
        %s277 = scalar_select %p276, %s273, 3
        %s278 = smul.addr %s275, 4
        %s279 = sadd.s32 %s277, %s278
        %s280 = smul.addr %s279, 4
        %s281 = scalar_lea.vmem %s5, %s280
        %p282 = scmp.lt.s32.totalorder %s22, 1
        %s283 = scalar_select %p282, %s22, 1
        %s284 = smul.addr %s283, 8
        %s285 = scalar_lea.vmem %s0, %s284
        %s286 = smul.u32 16, %s24
        %s287 = smul.u32 4, %s23
        %s288 = smul.u32 4, %s23
        %p289 = scmp.lt.s32.totalorder %s288, 3
        %s290 = scalar_select %p289, %s288, 3
        %s291 = scalar_lea.vmem %s4, %s290
        %s292 = smul.u32 4, %s23
        %s293 = smul.u32 4, %s23
        %p294 = scmp.lt.s32.totalorder %s22, 1
        %s295 = scalar_select %p294, %s22, 1
        %p296 = scmp.lt.s32.totalorder %s293, 3
        %s297 = scalar_select %p296, %s293, 3
        %s298 = smul.addr %s295, 4
        %s299 = sadd.s32 %s297, %s298
        %s300 = smul.addr %s299, 4
        %s301 = scalar_lea.vmem %s5, %s300
        %s302 = smul.u32 4, %s23
        %p303 = scmp.eq.s32.totalorder %s24, 0
        // Predicated region
        $region45: #{transformer_forward.8} parent=39 // pred_check
          %p304 = pneg %p303
        $region46: #{transformer_forward.8} parent=39 // pred_check_branch
          %306 = sbr.rel (%p304) target = $region48
        $region47: #{transformer_forward.8} parent=39 // pred_region
          %307 = vst [vmem:[#allocation2] sm:$0xff] 0.0
          %308 = vst [vmem:[#allocation2 + $0x8] sm:$0xff] 0.0
          %309 = vst [vmem:[#allocation2 + $0x10] sm:$0xff] 0.0
          %310 = vst [vmem:[#allocation2 + $0x18] sm:$0xff] 0.0
          %v311 = vld [vmem:[%s285] sm:$0xff]
          %312 = vadd.xlane.f32.xlu0 %v311
          %v313 = vpop.xlane.xlu0 %312
          %v314 = vrcp.pop 128.0
          %v315 = vmul.f32 128.0, %v314
          %v316 = vsub.f32 1.0, %v315
          %v317 = vmul.f32 %v314, %v316
          %v318 = vadd.f32 %v314, %v317
          %vm319 = vweird.f32 %v314
          %v320 = vsel %vm319, %v314, %v318
          %v321 = vmul.f32 %v313, %v320
          %v322 = vsub.f32 %v311, %v321
          %v323 = vmul.f32 %v322, %v322
          %324 = vadd.xlane.f32.xlu0 %v323
          %v325 = vpop.xlane.xlu0 %324
          %v326 = vmul.f32 %v325, %v320
          %v327 = vadd.f32 %v326, 1e-05
          %v328 = vrsqrt.pop %v327
          %v329 = vmul.f32 %v328, %v327
          %v330 = vmul.f32 %v329, %v328
          %v331 = vmul.f32 0.5, %v330
          %v332 = vsub.f32 1.5, %v331
          %v333 = vmul.f32 %v328, %v332
          %vm334 = vweird.f32 %v327
          %vm335 = vweird.f32 %v328
          %vm336 = vmor %vm334, %vm335
          %v337 = vsel %vm336, %v328, %v333
          %v338 = vmul.f32 %v322, %v337
          %v339 = vld [vmem:[%s1] sm:$0x1]
          %v341 = vperm.slane %v339, 0
          %v343 = vmul.f32 %v338, %v341
          %v344 = vld [vmem:[%s2] sm:$0x1]
          %v346 = vperm.slane %v344, 0
          %v348 = vadd.f32 %v343, %v346
          %v349 = vpack.c.bf16 %v348, %v348
          %350 = vst [vmem:[#allocation3] sm:$0xf] %v349
        $region48: #{transformer_forward.8} parent=39 // pred_fallthru
          _
        %v351 = vld [vmem:[#allocation3] sm:$0xf]
        %v352 = vld [vmem:[#allocation2] sm:$0xff]
        %v353 = vld [vmem:[#allocation2 + $0x8] sm:$0xff]
        %v354 = vld [vmem:[#allocation2 + $0x10] sm:$0xff]
        %v355 = vld [vmem:[#allocation2 + $0x18] sm:$0xff]
        %v356 = vld [vmem:[#allocation4] sm:$0xff]
        %v357 = vld [vmem:[#allocation4 + $0x8] sm:$0xff]
        %v358 = vld [vmem:[#allocation4 + $0x10] sm:$0xff]
        %v359 = vld [vmem:[#allocation4 + $0x18] sm:$0xff]
        %v360 = vld [vmem:[#allocation4 + $0x20] sm:$0xff]
        %v361 = vld [vmem:[#allocation4 + $0x28] sm:$0xff]
        %v362 = vld [vmem:[#allocation4 + $0x30] sm:$0xff]
        %v363 = vld [vmem:[#allocation4 + $0x38] sm:$0xff]
        %v364 = vld [vmem:[#allocation4 + $0x40] sm:$0xff]
        %v365 = vld [vmem:[#allocation4 + $0x48] sm:$0xff]
        %v366 = vld [vmem:[#allocation4 + $0x50] sm:$0xff]
        %v367 = vld [vmem:[#allocation4 + $0x58] sm:$0xff]
        %v368 = vld [vmem:[#allocation4 + $0x60] sm:$0xff]
        %v369 = vld [vmem:[#allocation4 + $0x68] sm:$0xff]
        %v370 = vld [vmem:[#allocation4 + $0x70] sm:$0xff]
        %v371 = vld [vmem:[#allocation4 + $0x78] sm:$0xff]
        %v372 = vld [vmem:[#allocation4 + $0x80] sm:$0xff]
        %v373 = vld [vmem:[#allocation4 + $0x88] sm:$0xff]
        %v374 = vld [vmem:[#allocation4 + $0x90] sm:$0xff]
        %v375 = vld [vmem:[#allocation4 + $0x98] sm:$0xff]
        %v376 = vld [vmem:[#allocation4 + $0xa0] sm:$0xff]
        %v377 = vld [vmem:[#allocation4 + $0xa8] sm:$0xff]
        %v378 = vld [vmem:[#allocation4 + $0xb0] sm:$0xff]
        %v379 = vld [vmem:[#allocation4 + $0xb8] sm:$0xff]
        %v380 = vld [vmem:[#allocation4 + $0xc0] sm:$0xff]
        %v381 = vld [vmem:[#allocation4 + $0xc8] sm:$0xff]
        %v382 = vld [vmem:[#allocation4 + $0xd0] sm:$0xff]
        %v383 = vld [vmem:[#allocation4 + $0xd8] sm:$0xff]
        %v384 = vld [vmem:[#allocation4 + $0xe0] sm:$0xff]
        %v385 = vld [vmem:[#allocation4 + $0xe8] sm:$0xff]
        %v386 = vld [vmem:[#allocation4 + $0xf0] sm:$0xff]
        %v387 = vld [vmem:[#allocation4 + $0xf8] sm:$0xff]
        %v420 = vunpack.c.l.b16 %v356
        %v421 = vunpack.c.h.b16 %v356
        %v422 = vunpack.c.l.b16 %v357
        %v423 = vunpack.c.h.b16 %v357
        %v424 = vunpack.c.l.b16 %v358
        %v425 = vunpack.c.h.b16 %v358
        %v426 = vunpack.c.l.b16 %v359
        %v427 = vunpack.c.h.b16 %v359
        %v428 = vunpack.c.l.b16 %v360
        %v429 = vunpack.c.h.b16 %v360
        %v430 = vunpack.c.l.b16 %v361
        %v431 = vunpack.c.h.b16 %v361
        %v432 = vunpack.c.l.b16 %v362
        %v433 = vunpack.c.h.b16 %v362
        %v434 = vunpack.c.l.b16 %v363
        %v435 = vunpack.c.h.b16 %v363
        %v436 = vunpack.c.l.b16 %v364
        %v437 = vunpack.c.h.b16 %v364
        %v438 = vunpack.c.l.b16 %v365
        %v439 = vunpack.c.h.b16 %v365
        %v440 = vunpack.c.l.b16 %v366
        %v441 = vunpack.c.h.b16 %v366
        %v442 = vunpack.c.l.b16 %v367
        %v443 = vunpack.c.h.b16 %v367
        %v444 = vunpack.c.l.b16 %v368
        %v445 = vunpack.c.h.b16 %v368
        %v446 = vunpack.c.l.b16 %v369
        %v447 = vunpack.c.h.b16 %v369
        %v448 = vunpack.c.l.b16 %v370
        %v449 = vunpack.c.h.b16 %v370
        %v450 = vunpack.c.l.b16 %v371
        %v451 = vunpack.c.h.b16 %v371
        %v452 = vunpack.c.l.b16 %v372
        %v453 = vunpack.c.h.b16 %v372
        %v454 = vunpack.c.l.b16 %v373
        %v455 = vunpack.c.h.b16 %v373
        %v456 = vunpack.c.l.b16 %v374
        %v457 = vunpack.c.h.b16 %v374
        %v458 = vunpack.c.l.b16 %v375
        %v459 = vunpack.c.h.b16 %v375
        %v460 = vunpack.c.l.b16 %v376
        %v461 = vunpack.c.h.b16 %v376
        %v462 = vunpack.c.l.b16 %v377
        %v463 = vunpack.c.h.b16 %v377
        %v464 = vunpack.c.l.b16 %v378
        %v465 = vunpack.c.h.b16 %v378
        %v466 = vunpack.c.l.b16 %v379
        %v467 = vunpack.c.h.b16 %v379
        %v468 = vunpack.c.l.b16 %v380
        %v469 = vunpack.c.h.b16 %v380
        %v470 = vunpack.c.l.b16 %v381
        %v471 = vunpack.c.h.b16 %v381
        %v472 = vunpack.c.l.b16 %v382
        %v473 = vunpack.c.h.b16 %v382
        %v474 = vunpack.c.l.b16 %v383
        %v475 = vunpack.c.h.b16 %v383
        %v476 = vunpack.c.l.b16 %v384
        %v477 = vunpack.c.h.b16 %v384
        %v478 = vunpack.c.l.b16 %v385
        %v479 = vunpack.c.h.b16 %v385
        %v480 = vunpack.c.l.b16 %v386
        %v481 = vunpack.c.h.b16 %v386
        %v482 = vunpack.c.l.b16 %v387
        %v483 = vunpack.c.h.b16 %v387
        %v484 = vpack.c.b16 %v424, %v420
        %v485 = vpack.c.b16 %v425, %v421
        %v486 = vpack.c.b16 %v426, %v422
        %v487 = vpack.c.b16 %v427, %v423
        %v488 = vpack.c.b16 %v432, %v428
        %v489 = vpack.c.b16 %v433, %v429
        %v490 = vpack.c.b16 %v434, %v430
        %v491 = vpack.c.b16 %v435, %v431
        %v492 = vpack.c.b16 %v440, %v436
        %v493 = vpack.c.b16 %v441, %v437
        %v494 = vpack.c.b16 %v442, %v438
        %v495 = vpack.c.b16 %v443, %v439
        %v496 = vpack.c.b16 %v448, %v444
        %v497 = vpack.c.b16 %v449, %v445
        %v498 = vpack.c.b16 %v450, %v446
        %v499 = vpack.c.b16 %v451, %v447
        %v500 = vpack.c.b16 %v456, %v452
        %v501 = vpack.c.b16 %v457, %v453
        %v502 = vpack.c.b16 %v458, %v454
        %v503 = vpack.c.b16 %v459, %v455
        %v504 = vpack.c.b16 %v464, %v460
        %v505 = vpack.c.b16 %v465, %v461
        %v506 = vpack.c.b16 %v466, %v462
        %v507 = vpack.c.b16 %v467, %v463
        %v508 = vpack.c.b16 %v472, %v468
        %v509 = vpack.c.b16 %v473, %v469
        %v510 = vpack.c.b16 %v474, %v470
        %v511 = vpack.c.b16 %v475, %v471
        %v512 = vpack.c.b16 %v480, %v476
        %v513 = vpack.c.b16 %v481, %v477
        %v514 = vpack.c.b16 %v482, %v478
        %v515 = vpack.c.b16 %v483, %v479
        %548 = vmatpush.bf16.msra.mxu0 %v512
        %549 = vmatpush.bf16.msra.mxu0 %v508
        %550 = vmatpush.bf16.msra.mxu0 %v504
        %551 = vmatpush.bf16.msra.mxu0 %v500
        %552 = vmatpush.bf16.msra.mxu0 %v496
        %553 = vmatpush.bf16.msra.mxu0 %v492
        %554 = vmatpush.bf16.msra.mxu0 %v488
        %555 = vmatpush.bf16.msra.mxu0 %v484
        %556 = vmatmul.bf16.gmra.mxu0 %v351
        %v557 = vpop.f32.mrf.mxu0
        %v558 = vadd.f32 0.0, %v557
        %v559 = vpop.f32.mrf.mxu0
        %560 = vdwg.mxu0
        %561 = vmatpush.bf16.msra.mxu0 %v513
        %562 = vmatpush.bf16.msra.mxu0 %v509
        %563 = vmatpush.bf16.msra.mxu0 %v505
        %564 = vmatpush.bf16.msra.mxu0 %v501
        %565 = vmatpush.bf16.msra.mxu0 %v497
        %566 = vmatpush.bf16.msra.mxu0 %v493
        %567 = vmatpush.bf16.msra.mxu0 %v489
        %568 = vmatpush.bf16.msra.mxu0 %v485
        %569 = vmatmul.bf16.gmra.mxu0 %v351
        %v570 = vpop.f32.mrf.mxu0
        %v571 = vadd.f32 0.0, %v570
        %v572 = vpop.f32.mrf.mxu0
        %573 = vdwg.mxu0
        %574 = vmatpush.bf16.msra.mxu0 %v514
        %575 = vmatpush.bf16.msra.mxu0 %v510
        %576 = vmatpush.bf16.msra.mxu0 %v506
        %577 = vmatpush.bf16.msra.mxu0 %v502
        %578 = vmatpush.bf16.msra.mxu0 %v498
        %579 = vmatpush.bf16.msra.mxu0 %v494
        %580 = vmatpush.bf16.msra.mxu0 %v490
        %581 = vmatpush.bf16.msra.mxu0 %v486
        %582 = vmatmul.bf16.gmra.mxu0 %v351
        %v583 = vpop.f32.mrf.mxu0
        %v584 = vadd.f32 0.0, %v583
        %v585 = vpop.f32.mrf.mxu0
        %586 = vdwg.mxu0
        %587 = vmatpush.bf16.msra.mxu0 %v515
        %588 = vmatpush.bf16.msra.mxu0 %v511
        %589 = vmatpush.bf16.msra.mxu0 %v507
        %590 = vmatpush.bf16.msra.mxu0 %v503
        %591 = vmatpush.bf16.msra.mxu0 %v499
        %592 = vmatpush.bf16.msra.mxu0 %v495
        %593 = vmatpush.bf16.msra.mxu0 %v491
        %594 = vmatpush.bf16.msra.mxu0 %v487
        %595 = vmatmul.bf16.gmra.mxu0 %v351
        %v596 = vpop.f32.mrf.mxu0
        %v597 = vadd.f32 0.0, %v596
        %v598 = vpop.f32.mrf.mxu0
        %599 = vdwg.mxu0
        %v600 = vadd.f32 %v352, %v558
        %v601 = vadd.f32 %v353, %v571
        %v602 = vadd.f32 %v354, %v584
        %v603 = vadd.f32 %v355, %v597
        %604 = vst [vmem:[#allocation2] sm:$0xff] %v600
        %605 = vst [vmem:[#allocation2 + $0x8] sm:$0xff] %v601
        %606 = vst [vmem:[#allocation2 + $0x10] sm:$0xff] %v602
        %607 = vst [vmem:[#allocation2 + $0x18] sm:$0xff] %v603
        // Predicated region
        $region49: #{transformer_forward.8} parent=39 // pred_check
          %p608 = pneg %p303
        $region50: #{transformer_forward.8} parent=39 // pred_check_branch
          %610 = sbr.rel (%p608) target = $region52
        $region51: #{transformer_forward.8} parent=39 // pred_region
          %v611 = vld [vmem:[#allocation2] sm:$0xff]
          %v612 = vld [vmem:[#allocation2 + $0x8] sm:$0xff]
          %v613 = vld [vmem:[#allocation2 + $0x10] sm:$0xff]
          %v614 = vld [vmem:[#allocation2 + $0x18] sm:$0xff]
          %v615 = vld [vmem:[%s291] sm:$0xf]
          %v617 = vperm.slane %v615, 0
          %v618 = vperm.slane %v615, 1
          %v619 = vperm.slane %v615, 2
          %v620 = vperm.slane %v615, 3
          %v625 = vadd.f32 %v611, %v617
          %v626 = vadd.f32 %v612, %v618
          %v627 = vadd.f32 %v613, %v619
          %v628 = vadd.f32 %v614, %v620
          %v629 = vmul.f32 %v625, 0.5
          %v630 = vmul.f32 %v626, 0.5
          %v631 = vmul.f32 %v627, 0.5
          %v632 = vmul.f32 %v628, 0.5
          %v633 = vmul.f32 %v625, 0.044715
          %v634 = vmul.f32 %v626, 0.044715
          %v635 = vmul.f32 %v627, 0.044715
          %v636 = vmul.f32 %v628, 0.044715
          %v637 = vmul.f32 %v633, %v625
          %v638 = vmul.f32 %v634, %v626
          %v639 = vmul.f32 %v635, %v627
          %v640 = vmul.f32 %v636, %v628
          %v641 = vmul.f32 %v637, %v625
          %v642 = vmul.f32 %v638, %v626
          %v643 = vmul.f32 %v639, %v627
          %v644 = vmul.f32 %v640, %v628
          %v645 = vadd.f32 %v625, %v641
          %v646 = vadd.f32 %v626, %v642
          %v647 = vadd.f32 %v627, %v643
          %v648 = vadd.f32 %v628, %v644
          %v649 = vmul.f32 %v645, 0.7978846
          %v650 = vmul.f32 %v646, 0.7978846
          %v651 = vmul.f32 %v647, 0.7978846
          %v652 = vmul.f32 %v648, 0.7978846
          %v653 = vtanh.pop %v649
          %v654 = vtanh.pop %v650
          %v655 = vtanh.pop %v651
          %v656 = vtanh.pop %v652
          %v657 = vadd.f32 %v653, 1.0
          %v658 = vadd.f32 %v654, 1.0
          %v659 = vadd.f32 %v655, 1.0
          %v660 = vadd.f32 %v656, 1.0
          %v661 = vmul.f32 %v629, %v657
          %v662 = vmul.f32 %v630, %v658
          %v663 = vmul.f32 %v631, %v659
          %v664 = vmul.f32 %v632, %v660
          %v665 = vpack.c.bf16 %v662, %v661
          %v666 = vpack.c.bf16 %v664, %v663
          %667 = vst [vmem:[%s301] sm:$0xff] %v665
          %668 = vst [vmem:[%s301 + $0x8] sm:$0xff] %v666
        $region52: #{transformer_forward.8} parent=39 // pred_fallthru
          _
        %s669 = smul.u32 4, %s23
        %p670 = scmp.lt.s32.totalorder %s22, 1
        %s671 = scalar_select %p670, %s22, 1
        %p672 = scmp.lt.s32.totalorder %s669, 3
        %s673 = scalar_select %p672, %s669, 3
        %s674 = smul.addr %s671, 4
        %s675 = sadd.s32 %s673, %s674
        %s676 = smul.addr %s675, 4
        %s677 = scalar_lea.vmem %s5, %s676
        // Predicated region
        $region53: #{transformer_forward.8} parent=39 // pred_check
          %p678 = pneg %p178
        $region54: #{transformer_forward.8} parent=39 // pred_check_branch
          %680 = sbr.rel (%p678) target = $region56
        $region55: #{transformer_forward.8} parent=39 // pred_region
          %s681 = smul.u32 4, %s23
        $region56: #{transformer_forward.8} parent=39 // pred_fallthru
          _
      $region40: #{transformer_forward.8} parent=5 // pred_fallthru
        _
      %p682 = scmp.le.s32.totalorder 2, %s12
      // Predicated region
      $region57: #{transformer_forward.8} parent=5 // pred_check
        %p683 = pneg %p682
      $region58: #{transformer_forward.8} parent=5 // pred_check_branch
        %685 = sbr.rel (%p683) target = $region60
      $region59: #{transformer_forward.8} parent=5 // pred_region
        %s686 = ssub.s32 %s12, 2
        // Predicated region
        $region61: #{transformer_forward.8} parent=59 // pred_check
          %p687 = pneg %p184
        $region62: #{transformer_forward.8} parent=59 // pred_check_branch
          %689 = sbr.rel (%p687) target = $region64
        $region63: #{transformer_forward.8} parent=59 // pred_region
          %s690 = smul.u32 4, %s26
          %p691 = scmp.lt.s32.totalorder %s25, 1
          %s692 = scalar_select %p691, %s25, 1
          %p693 = scmp.lt.s32.totalorder %s690, 3
          %s694 = scalar_select %p693, %s690, 3
          %s695 = smul.addr %s692, 4
          %s696 = sadd.s32 %s694, %s695
          %s697 = smul.addr %s696, 4
          %s698 = scalar_lea.vmem %s5, %s697
        $region64: #{transformer_forward.8} parent=59 // pred_fallthru
          _
      $region60: #{transformer_forward.8} parent=5 // pred_fallthru
        _
    $region6: #{transformer_forward.8} parent=1 // loop_footer
      %s16 = sadd.s32 1, %s12
    $region7: #{transformer_forward.8} parent=1 // loop_footer_branch
      %11 = sbr.rel target = $region3
    $region8: #{transformer_forward.8} parent=1 // loop_exit
      _
    %699 = vsyncpa [#allocation5], 1
    %s700 = scalar_lea.sflag [#allocation5], 1
    %701 = vsyncpa %s700, 1

// kernel: transformer_forward.9
$region0: #{transformer_forward.9}
  #allocation0 [shape = 'u32[]', space=smem, size = 0x4, offset = 0x4, fixed_abs, tag = 'smem constant byte address 0x4 - core index']
  #allocation1 [shape = 'u32[72,128]{1,0:T(1,128)}', space=vmem, size = 0x9000, scoped, tag = 'internal scratch']
  #allocation2 [shape = 'f32[16,128]{1,0:T(8,128)}', space=vmem, size = 0x2000, scoped, tag = 'scratch operand']
  %s0 = inlined_call_operand.vmem [shape: bf16[16,512], index: 0, kind: input, shape index: {}]
  %s1 = inlined_call_operand.hbm [shape: bf16[512,128], index: 1, kind: input, shape index: {}]
  %s2 = inlined_call_operand.vmem [shape: f32[1,128], index: 2, kind: input, shape index: {}]
  %s3 = inlined_call_operand.vmem [shape: f32[16,128], index: 3, kind: input, shape index: {}]
  %s4 = inlined_call_operand.hbm [shape: f32[16,128], index: 4, kind: output, shape index: {}]
  %s5 = sld [smem:[#allocation0]]
  $region38: #{transformer_forward.9} parent=0
    _
  %s7 = ssub.s32 1, %s5
  %s8 = scalar_select 0, %s7, %s5
  $region1: #{transformer_forward.9} parent=0
    #allocation3 [shape = 'u8[131072]{0}', space=vmem, size = 0x20000, scoped, tag = 'input window, operand 1, single buffered']
    #allocation4 [shape = 's32[1]{0}', space=sflag, size = 0x4, scoped, tag = 'scoped memory for transformer_forward.9']
    #allocation5 [shape = 's32[1]{0}', space=sflag, size = 0x4, scoped, tag = 'scoped memory for transformer_forward.9']
    #allocation6 [shape = 'u8[8192]{0}', space=vmem, size = 0x2000, scoped, tag = 'output window, operand 0, single buffered']
    %9 = vsyncpa [#allocation4], 0
    %10 = vsyncpa [#allocation5], 0
    // Predicated region
    $region2: #{transformer_forward.9} parent=1 // pred_check
      _
    $region3: #{transformer_forward.9} parent=1 // pred_check_branch
      %12 = sbr.rel (0) target = $region5
    $region4: #{transformer_forward.9} parent=1 // pred_region
      _
    $region5: #{transformer_forward.9} parent=1 // pred_fallthru
      _
    // Predicated region
    $region6: #{transformer_forward.9} parent=1 // pred_check
      _
    $region7: #{transformer_forward.9} parent=1 // pred_check_branch
      %14 = sbr.rel (0) target = $region9
    $region8: #{transformer_forward.9} parent=1 // pred_region
      %16 = vsyncadd [#allocation4], 0
      %s17 = sshll.u32 %s1, 4
      %s18 = int_to_ptr.hbm [resolvable:$true] %s17
      %s19 = sshll.u32 [#allocation3], 4
      %s20 = int_to_ptr.vmem [resolvable:$true] %s19
      %25 = dma.hbm_to_vmem [thread:$0]  %s18, 4096, %s20, [#allocation4], 64, 64, 4
    $region9: #{transformer_forward.9} parent=1 // pred_fallthru
      _
    // Predicated region
    $region10: #{transformer_forward.9} parent=1 // pred_check
      _
    $region11: #{transformer_forward.9} parent=1 // pred_check_branch
      %27 = sbr.rel (0) target = $region13
    $region12: #{transformer_forward.9} parent=1 // pred_region
      _
    $region13: #{transformer_forward.9} parent=1 // pred_fallthru
      _
    // Predicated region
    $region14: #{transformer_forward.9} parent=1 // pred_check
      _
    $region15: #{transformer_forward.9} parent=1 // pred_check_branch
      %29 = sbr.rel (0) target = $region17
    $region16: #{transformer_forward.9} parent=1 // pred_region
      _
    $region17: #{transformer_forward.9} parent=1 // pred_fallthru
      _
    // Predicated region
    $region18: #{transformer_forward.9} parent=1 // pred_check
      _
    $region19: #{transformer_forward.9} parent=1 // pred_check_branch
      %31 = sbr.rel (0) target = $region21
    $region20: #{transformer_forward.9} parent=1 // pred_region
      %33 = dma.done [#allocation4], 4096
    $region21: #{transformer_forward.9} parent=1 // pred_fallthru
      _
    %p34 = scmp.eq.s32.totalorder 0, 0
    // Predicated region
    $region22: #{transformer_forward.9} parent=1 // pred_check
      %p35 = pneg %p34
    $region23: #{transformer_forward.9} parent=1 // pred_check_branch
      %37 = sbr.rel (%p35) target = $region25
    $region24: #{transformer_forward.9} parent=1 // pred_region
      %38 = vst [vmem:[#allocation2] sm:$0xff] 0.0
      %39 = vst [vmem:[#allocation2 + $0x8] sm:$0xff] 0.0
    $region25: #{transformer_forward.9} parent=1 // pred_fallthru
      _
    %v40 = vld [vmem:[%s0] sm:$0xff]
    %v41 = vld [vmem:[%s0 + $0x8] sm:$0xff]
    %v42 = vld [vmem:[%s0 + $0x10] sm:$0xff]
    %v43 = vld [vmem:[%s0 + $0x18] sm:$0xff]
    %v44 = vld [vmem:[#allocation2] sm:$0xff]
    %v45 = vld [vmem:[#allocation2 + $0x8] sm:$0xff]
    %v46 = vld [vmem:[#allocation3] sm:$0xf]
    %v47 = vld [vmem:[#allocation3 + $0x4] sm:$0xf]
    %v48 = vld [vmem:[#allocation3 + $0x8] sm:$0xf]
    %v49 = vld [vmem:[#allocation3 + $0xc] sm:$0xf]
    %v50 = vld [vmem:[#allocation3 + $0x10] sm:$0xf]
    %v51 = vld [vmem:[#allocation3 + $0x14] sm:$0xf]
    %v52 = vld [vmem:[#allocation3 + $0x18] sm:$0xf]
    %v53 = vld [vmem:[#allocation3 + $0x1c] sm:$0xf]
    %v54 = vld [vmem:[#allocation3 + $0x20] sm:$0xf]
    %v55 = vld [vmem:[#allocation3 + $0x24] sm:$0xf]
    %v56 = vld [vmem:[#allocation3 + $0x28] sm:$0xf]
    %v57 = vld [vmem:[#allocation3 + $0x2c] sm:$0xf]
    %v58 = vld [vmem:[#allocation3 + $0x30] sm:$0xf]
    %v59 = vld [vmem:[#allocation3 + $0x34] sm:$0xf]
    %v60 = vld [vmem:[#allocation3 + $0x38] sm:$0xf]
    %v61 = vld [vmem:[#allocation3 + $0x3c] sm:$0xf]
    %v62 = vld [vmem:[#allocation3 + $0x40] sm:$0xf]
    %v63 = vld [vmem:[#allocation3 + $0x44] sm:$0xf]
    %v64 = vld [vmem:[#allocation3 + $0x48] sm:$0xf]
    %v65 = vld [vmem:[#allocation3 + $0x4c] sm:$0xf]
    %v66 = vld [vmem:[#allocation3 + $0x50] sm:$0xf]
    %v67 = vld [vmem:[#allocation3 + $0x54] sm:$0xf]
    %v68 = vld [vmem:[#allocation3 + $0x58] sm:$0xf]
    %v69 = vld [vmem:[#allocation3 + $0x5c] sm:$0xf]
    %v70 = vld [vmem:[#allocation3 + $0x60] sm:$0xf]
    %v71 = vld [vmem:[#allocation3 + $0x64] sm:$0xf]
    %v72 = vld [vmem:[#allocation3 + $0x68] sm:$0xf]
    %v73 = vld [vmem:[#allocation3 + $0x6c] sm:$0xf]
    %v74 = vld [vmem:[#allocation3 + $0x70] sm:$0xf]
    %v75 = vld [vmem:[#allocation3 + $0x74] sm:$0xf]
    %v76 = vld [vmem:[#allocation3 + $0x78] sm:$0xf]
    %v77 = vld [vmem:[#allocation3 + $0x7c] sm:$0xf]
    %v78 = vld [vmem:[#allocation3 + $0x80] sm:$0xf]
    %v79 = vld [vmem:[#allocation3 + $0x84] sm:$0xf]
    %v80 = vld [vmem:[#allocation3 + $0x88] sm:$0xf]
    %v81 = vld [vmem:[#allocation3 + $0x8c] sm:$0xf]
    %v82 = vld [vmem:[#allocation3 + $0x90] sm:$0xf]
    %v83 = vld [vmem:[#allocation3 + $0x94] sm:$0xf]
    %v84 = vld [vmem:[#allocation3 + $0x98] sm:$0xf]
    %v85 = vld [vmem:[#allocation3 + $0x9c] sm:$0xf]
    %v86 = vld [vmem:[#allocation3 + $0xa0] sm:$0xf]
    %v87 = vld [vmem:[#allocation3 + $0xa4] sm:$0xf]
    %v88 = vld [vmem:[#allocation3 + $0xa8] sm:$0xf]
    %v89 = vld [vmem:[#allocation3 + $0xac] sm:$0xf]
    %v90 = vld [vmem:[#allocation3 + $0xb0] sm:$0xf]
    %v91 = vld [vmem:[#allocation3 + $0xb4] sm:$0xf]
    %v92 = vld [vmem:[#allocation3 + $0xb8] sm:$0xf]
    %v93 = vld [vmem:[#allocation3 + $0xbc] sm:$0xf]
    %v94 = vld [vmem:[#allocation3 + $0xc0] sm:$0xf]
    %v95 = vld [vmem:[#allocation3 + $0xc4] sm:$0xf]
    %v96 = vld [vmem:[#allocation3 + $0xc8] sm:$0xf]
    %v97 = vld [vmem:[#allocation3 + $0xcc] sm:$0xf]
    %v98 = vld [vmem:[#allocation3 + $0xd0] sm:$0xf]
    %v99 = vld [vmem:[#allocation3 + $0xd4] sm:$0xf]
    %v100 = vld [vmem:[#allocation3 + $0xd8] sm:$0xf]
    %v101 = vld [vmem:[#allocation3 + $0xdc] sm:$0xf]
    %v102 = vld [vmem:[#allocation3 + $0xe0] sm:$0xf]
    %v103 = vld [vmem:[#allocation3 + $0xe4] sm:$0xf]
    %v104 = vld [vmem:[#allocation3 + $0xe8] sm:$0xf]
    %v105 = vld [vmem:[#allocation3 + $0xec] sm:$0xf]
    %v106 = vld [vmem:[#allocation3 + $0xf0] sm:$0xf]
    %v107 = vld [vmem:[#allocation3 + $0xf4] sm:$0xf]
    %v108 = vld [vmem:[#allocation3 + $0xf8] sm:$0xf]
    %v109 = vld [vmem:[#allocation3 + $0xfc] sm:$0xf]
    %v114 = vunpack.c.l.b16 %v40
    %v115 = vunpack.c.h.b16 %v40
    %v116 = vunpack.c.l.b16 %v41
    %v117 = vunpack.c.h.b16 %v41
    %v118 = vunpack.c.l.b16 %v42
    %v119 = vunpack.c.h.b16 %v42
    %v120 = vunpack.c.l.b16 %v43
    %v121 = vunpack.c.h.b16 %v43
    %v122 = vpack.c.b16 %v118, %v114
    %v123 = vpack.c.b16 %v119, %v115
    %v124 = vpack.c.b16 %v120, %v116
    %v125 = vpack.c.b16 %v121, %v117
    %v194 = vunpack.c.l.b16 %v46
    %v195 = vunpack.c.l.b16 %v47
    %v196 = vunpack.c.l.b16 %v48
    %v197 = vunpack.c.l.b16 %v49
    %v198 = vunpack.c.l.b16 %v50
    %v199 = vunpack.c.l.b16 %v51
    %v200 = vunpack.c.l.b16 %v52
    %v201 = vunpack.c.l.b16 %v53
    %v202 = vunpack.c.l.b16 %v54
    %v203 = vunpack.c.l.b16 %v55
    %v204 = vunpack.c.l.b16 %v56
    %v205 = vunpack.c.l.b16 %v57
    %v206 = vunpack.c.l.b16 %v58
    %v207 = vunpack.c.l.b16 %v59
    %v208 = vunpack.c.l.b16 %v60
    %v209 = vunpack.c.l.b16 %v61
    %v210 = vunpack.c.l.b16 %v62
    %v211 = vunpack.c.l.b16 %v63
    %v212 = vunpack.c.l.b16 %v64
    %v213 = vunpack.c.l.b16 %v65
    %v214 = vunpack.c.l.b16 %v66
    %v215 = vunpack.c.l.b16 %v67
    %v216 = vunpack.c.l.b16 %v68
    %v217 = vunpack.c.l.b16 %v69
    %v218 = vunpack.c.l.b16 %v70
    %v219 = vunpack.c.l.b16 %v71
    %v220 = vunpack.c.l.b16 %v72
    %v221 = vunpack.c.l.b16 %v73
    %v222 = vunpack.c.l.b16 %v74
    %v223 = vunpack.c.l.b16 %v75
    %v224 = vunpack.c.l.b16 %v76
    %v225 = vunpack.c.l.b16 %v77
    %v226 = vunpack.c.l.b16 %v78
    %v227 = vunpack.c.l.b16 %v79
    %v228 = vunpack.c.l.b16 %v80
    %v229 = vunpack.c.l.b16 %v81
    %v230 = vunpack.c.l.b16 %v82
    %v231 = vunpack.c.l.b16 %v83
    %v232 = vunpack.c.l.b16 %v84
    %v233 = vunpack.c.l.b16 %v85
    %v234 = vunpack.c.l.b16 %v86
    %v235 = vunpack.c.l.b16 %v87
    %v236 = vunpack.c.l.b16 %v88
    %v237 = vunpack.c.l.b16 %v89
    %v238 = vunpack.c.l.b16 %v90
    %v239 = vunpack.c.l.b16 %v91
    %v240 = vunpack.c.l.b16 %v92
    %v241 = vunpack.c.l.b16 %v93
    %v242 = vunpack.c.l.b16 %v94
    %v243 = vunpack.c.l.b16 %v95
    %v244 = vunpack.c.l.b16 %v96
    %v245 = vunpack.c.l.b16 %v97
    %v246 = vunpack.c.l.b16 %v98
    %v247 = vunpack.c.l.b16 %v99
    %v248 = vunpack.c.l.b16 %v100
    %v249 = vunpack.c.l.b16 %v101
    %v250 = vunpack.c.l.b16 %v102
    %v251 = vunpack.c.l.b16 %v103
    %v252 = vunpack.c.l.b16 %v104
    %v253 = vunpack.c.l.b16 %v105
    %v254 = vunpack.c.l.b16 %v106
    %v255 = vunpack.c.l.b16 %v107
    %v256 = vunpack.c.l.b16 %v108
    %v257 = vunpack.c.l.b16 %v109
    %v258 = vpack.c.b16 %v195, %v194
    %v259 = vpack.c.b16 %v197, %v196
    %v260 = vpack.c.b16 %v199, %v198
    %v261 = vpack.c.b16 %v201, %v200
    %v262 = vpack.c.b16 %v203, %v202
    %v263 = vpack.c.b16 %v205, %v204
    %v264 = vpack.c.b16 %v207, %v206
    %v265 = vpack.c.b16 %v209, %v208
    %v266 = vpack.c.b16 %v211, %v210
    %v267 = vpack.c.b16 %v213, %v212
    %v268 = vpack.c.b16 %v215, %v214
    %v269 = vpack.c.b16 %v217, %v216
    %v270 = vpack.c.b16 %v219, %v218
    %v271 = vpack.c.b16 %v221, %v220
    %v272 = vpack.c.b16 %v223, %v222
    %v273 = vpack.c.b16 %v225, %v224
    %v274 = vpack.c.b16 %v227, %v226
    %v275 = vpack.c.b16 %v229, %v228
    %v276 = vpack.c.b16 %v231, %v230
    %v277 = vpack.c.b16 %v233, %v232
    %v278 = vpack.c.b16 %v235, %v234
    %v279 = vpack.c.b16 %v237, %v236
    %v280 = vpack.c.b16 %v239, %v238
    %v281 = vpack.c.b16 %v241, %v240
    %v282 = vpack.c.b16 %v243, %v242
    %v283 = vpack.c.b16 %v245, %v244
    %v284 = vpack.c.b16 %v247, %v246
    %v285 = vpack.c.b16 %v249, %v248
    %v286 = vpack.c.b16 %v251, %v250
    %v287 = vpack.c.b16 %v253, %v252
    %v288 = vpack.c.b16 %v255, %v254
    %v289 = vpack.c.b16 %v257, %v256
    %322 = vmatpush.bf16.msra.mxu0 %v265
    %323 = vmatpush.bf16.msra.mxu0 %v264
    %324 = vmatpush.bf16.msra.mxu0 %v263
    %325 = vmatpush.bf16.msra.mxu0 %v262
    %326 = vmatpush.bf16.msra.mxu0 %v261
    %327 = vmatpush.bf16.msra.mxu0 %v260
    %328 = vmatpush.bf16.msra.mxu0 %v259
    %329 = vmatpush.bf16.msra.mxu0 %v258
    %330 = vmatmul.bf16.gmra.mxu0 %v122
    %v331 = vpop.f32.mrf.mxu0
    %v332 = vadd.f32 0.0, %v331
    %v333 = vpop.f32.mrf.mxu0
    %v334 = vadd.f32 0.0, %v333
    %335 = vdwg.mxu0
    %336 = vmatpush.bf16.msra.mxu0 %v273
    %337 = vmatpush.bf16.msra.mxu0 %v272
    %338 = vmatpush.bf16.msra.mxu0 %v271
    %339 = vmatpush.bf16.msra.mxu0 %v270
    %340 = vmatpush.bf16.msra.mxu0 %v269
    %341 = vmatpush.bf16.msra.mxu0 %v268
    %342 = vmatpush.bf16.msra.mxu0 %v267
    %343 = vmatpush.bf16.msra.mxu0 %v266
    %344 = vmatmul.bf16.gmra.mxu0 %v123
    %v345 = vpop.f32.mrf.mxu0
    %v346 = vadd.f32 %v332, %v345
    %v347 = vpop.f32.mrf.mxu0
    %v348 = vadd.f32 %v334, %v347
    %349 = vdwg.mxu0
    %350 = vmatpush.bf16.msra.mxu0 %v281
    %351 = vmatpush.bf16.msra.mxu0 %v280
    %352 = vmatpush.bf16.msra.mxu0 %v279
    %353 = vmatpush.bf16.msra.mxu0 %v278
    %354 = vmatpush.bf16.msra.mxu0 %v277
    %355 = vmatpush.bf16.msra.mxu0 %v276
    %356 = vmatpush.bf16.msra.mxu0 %v275
    %357 = vmatpush.bf16.msra.mxu0 %v274
    %358 = vmatmul.bf16.gmra.mxu0 %v124
    %v359 = vpop.f32.mrf.mxu0
    %v360 = vadd.f32 %v346, %v359
    %v361 = vpop.f32.mrf.mxu0
    %v362 = vadd.f32 %v348, %v361
    %363 = vdwg.mxu0
    %364 = vmatpush.bf16.msra.mxu0 %v289
    %365 = vmatpush.bf16.msra.mxu0 %v288
    %366 = vmatpush.bf16.msra.mxu0 %v287
    %367 = vmatpush.bf16.msra.mxu0 %v286
    %368 = vmatpush.bf16.msra.mxu0 %v285
    %369 = vmatpush.bf16.msra.mxu0 %v284
    %370 = vmatpush.bf16.msra.mxu0 %v283
    %371 = vmatpush.bf16.msra.mxu0 %v282
    %372 = vmatmul.bf16.gmra.mxu0 %v125
    %v373 = vpop.f32.mrf.mxu0
    %v374 = vadd.f32 %v360, %v373
    %v375 = vpop.f32.mrf.mxu0
    %v376 = vadd.f32 %v362, %v375
    %377 = vdwg.mxu0
    %v378 = vadd.f32 %v44, %v374
    %v379 = vadd.f32 %v45, %v376
    %380 = vst [vmem:[#allocation2] sm:$0xff] %v378
    %381 = vst [vmem:[#allocation2 + $0x8] sm:$0xff] %v379
    // Predicated region
    $region26: #{transformer_forward.9} parent=1 // pred_check
      %p382 = pneg %p34
    $region27: #{transformer_forward.9} parent=1 // pred_check_branch
      %384 = sbr.rel (%p382) target = $region29
    $region28: #{transformer_forward.9} parent=1 // pred_region
      %v385 = vld [vmem:[#allocation2] sm:$0xff]
      %v386 = vld [vmem:[#allocation2 + $0x8] sm:$0xff]
      %v387 = vld [vmem:[%s2] sm:$0x1]
      %v389 = vperm.slane %v387, 0
      %v391 = vadd.f32 %v385, %v389
      %v392 = vadd.f32 %v386, %v389
      %v393 = vld [vmem:[%s3] sm:$0xff]
      %v394 = vld [vmem:[%s3 + $0x8] sm:$0xff]
      %v395 = vadd.f32 %v391, %v393
      %v396 = vadd.f32 %v392, %v394
      %397 = vst [vmem:[#allocation6] sm:$0xff] %v395
      %398 = vst [vmem:[#allocation6 + $0x8] sm:$0xff] %v396
    $region29: #{transformer_forward.9} parent=1 // pred_fallthru
      _
    // Predicated region
    $region30: #{transformer_forward.9} parent=1 // pred_check
      _
    $region31: #{transformer_forward.9} parent=1 // pred_check_branch
      %400 = sbr.rel (0) target = $region33
    $region32: #{transformer_forward.9} parent=1 // pred_region
      %402 = vsyncadd [#allocation5], 0
      %s403 = sshll.u32 [#allocation6], 4
      %s404 = int_to_ptr.vmem [resolvable:$true] %s403
      %s405 = sshll.u32 %s4, 4
      %s406 = int_to_ptr.hbm [resolvable:$true] %s405
      %411 = dma.vmem_to_hbm [thread:$0]  %s404, 256, %s406, [#allocation5], 128, 128, 8
    $region33: #{transformer_forward.9} parent=1 // pred_fallthru
      _
    // Predicated region
    $region34: #{transformer_forward.9} parent=1 // pred_check
      _
    $region35: #{transformer_forward.9} parent=1 // pred_check_branch
      %413 = sbr.rel (0) target = $region37
    $region36: #{transformer_forward.9} parent=1 // pred_region
      %415 = dma.done [#allocation5], 256
    $region37: #{transformer_forward.9} parent=1 // pred_fallthru
      _
    %416 = vsyncpa [#allocation4], 1
    %417 = vsyncpa [#allocation5], 1

</llo_original>
